<compile_context>
chip_gen: v6e
topology: v6e:2x2x1
jax: 0.10.0
libtpu: 0.0.40
codegen_flags: <defaults>
</compile_context>

<pallas_src>
import functools
import math

import jax
import jax.numpy as jnp
from jax.experimental import pallas as pl
from jax.experimental.pallas import tpu as pltpu


# ---------------------------------------------------------------------------
# Small helpers
# ---------------------------------------------------------------------------
def _nbytes(shape, dtype):
    return math.prod(shape) * jnp.dtype(dtype).itemsize


def _vmem_limit(*byte_counts):
    """Scoped-VMEM request derived from the actual block sizes (not hard-coded)."""
    need = int(sum(byte_counts) * 1.5) + (2 << 20)        # pipeline + compiler headroom
    return max(16 << 20, min(40 << 20, need))             # <= 40 MiB also fits v7x (64 MiB)


def _pick_row_tile(extent, target):
    """Largest even divisor of `extent` that is <= target."""
    for t in range(min(target, extent), 1, -1):
        if extent % t == 0 and t % 2 == 0:
            return t
    return extent


# ---------------------------------------------------------------------------
# Kernel 1: conv1 (im2col'd, K=27) + bias + ReLU + maxpool2x2, row-tiled grid
# ---------------------------------------------------------------------------
def _conv1_kernel(x_ref, w_ref, b_ref, o_ref):
    """One K=27 matmul + bias + ReLU + 2x2 maxpool for a tile of output rows.

    x_ref : (1, TH, W, 27)        bf16 im2col'd rows (3x3 halo already folded)
    w_ref : (27, 128)             bf16 fused conv1 weights (age 0:64 | gender 64:128)
    b_ref : (1, 128)              f32 fused bias
    o_ref : (1, TH/2, W/2, 128)   bf16 pooled output rows
    """
    _, th, w, k = x_ref.shape
    cout = w_ref.shape[-1]
    lhs = x_ref[0].reshape(th * w, k)
    acc = jnp.dot(lhs, w_ref[...], preferred_element_type=jnp.float32)
    y = jnp.maximum(acc + b_ref[...], 0.0)                 # bias + ReLU (f32)
    y = y.reshape(th // 2, 2, w // 2, 2, cout)
    y = jnp.maximum(y[:, 0], y[:, 1])                      # pool along H
    y = jnp.maximum(y[:, :, 0], y[:, :, 1])                # pool along W
    o_ref[0] = y.astype(o_ref.dtype)                       # single bf16 downcast


def conv1_relu_pool(x27, w, b, *, row_tile=32):
    """x27: (N, H, W, 27) bf16; w: (27, 128) bf16; b: (1, 128) f32.
    Returns (N, H/2, W/2, 128) bf16 = maxpool2x2(relu(conv3x3(x) + b))."""
    n, h, wd, k = x27.shape
    cout = w.shape[-1]
    assert h % 2 == 0 and wd % 2 == 0
    th = _pick_row_tile(h, row_tile)

    in_block = (1, th, wd, k)
    out_block = (1, th // 2, wd // 2, cout)
    vmem = _vmem_limit(2 * _nbytes(in_block, jnp.bfloat16),
                       _nbytes(w.shape, jnp.bfloat16),
                       _nbytes(b.shape, jnp.float32),
                       2 * _nbytes(out_block, jnp.bfloat16),
                       2 * _nbytes((th * wd, cout), jnp.float32))   # acc + epilogue temps

    return pl.pallas_call(
        _conv1_kernel,
        out_shape=jax.ShapeDtypeStruct((n, h // 2, wd // 2, cout), jnp.bfloat16),
        grid=(n, h // th),
        in_specs=[
            pl.BlockSpec(in_block, lambda i, r: (i, r, 0, 0)),
            pl.BlockSpec((k, cout), lambda i, r: (0, 0)),
            pl.BlockSpec((1, cout), lambda i, r: (0, 0)),
        ],
        out_specs=pl.BlockSpec(out_block, lambda i, r: (i, r, 0, 0)),
        compiler_params=pltpu.CompilerParams(
            dimension_semantics=("parallel", "parallel"),
            vmem_limit_bytes=vmem),
        cost_estimate=pl.CostEstimate(
            flops=2 * n * h * wd * k * cout, transcendentals=0,
            bytes_accessed=(x27.size * 2 + w.size * 2 + b.size * 4
                            + n * (h // 2) * (wd // 2) * cout * 2)),
    )(x27, w, b)


# ---------------------------------------------------------------------------
# Kernel 2: conv2 (both branches block-diagonal) + bias + ReLU + maxpool2x2
# ---------------------------------------------------------------------------
def _conv2_kernel(x_ref, w_ref, b_ref, o_ref, scr3_ref, *, row_tile):
    """Fused (block-diagonal) conv3x3(pad=1) + bias + ReLU + 2x2 maxpool.

    x_ref : (1, H, W, 128)        bf16 conv1 output (one image)
    w_ref : (3, 384, 256)         bf16; bank dy, rows = dx*128 + cin, block-diag Cout
    b_ref : (1, 256)              f32 fused bias
    o_ref : (1, H/2, W/2, 256)    bf16 pooled output
    scr3  : (H+2, W, 384)         bf16 zero-padded, width-im2col'd input
    """
    _, h, w, c = x_ref.shape
    c3 = 3 * c
    cout = w_ref.shape[-1]
    th = row_tile
    th2, w2 = th // 2, w // 2

    # Build the zero-padded, dx-folded copy ONCE per image: lane block j of
    # scr3[y, x] holds P[y, x + j] where P is the 1-px zero-padded image.  The
    # tap matmuls below then slice only along the (major) row dim -- no
    # per-tap W-offset relayout copies inside the accumulation loop, and no
    # wrapper-side jnp.pad HBM round trip.
    scr3_ref[...] = jnp.zeros_like(scr3_ref)
    scr3_ref[pl.ds(1, h), pl.ds(1, w - 1), pl.ds(0, c)] = x_ref[0, :, pl.ds(0, w - 1), :]
    scr3_ref[pl.ds(1, h), pl.ds(0, w), pl.ds(c, c)] = x_ref[0]
    scr3_ref[pl.ds(1, h), pl.ds(0, w - 1), pl.ds(2 * c, c)] = x_ref[0, :, pl.ds(1, w - 1), :]

    # Row-chunked accumulation keeps the f32 accumulator at (th*w, 256), which
    # stays bounded (a few MiB) even at the real 256x256 model size.
    for r in range(h // th):                         # static trip count / offsets
        acc = jnp.zeros((th * w, cout), jnp.float32)
        for dy in range(3):                          # three K=384 matmuls per chunk
            lhs = scr3_ref[pl.ds(r * th + dy, th), :, :].reshape(th * w, c3)
            acc = acc + jnp.dot(lhs, w_ref[dy], preferred_element_type=jnp.float32)
        y = jnp.maximum(acc + b_ref[...], 0.0)       # bias + ReLU (f32)
        y = y.reshape(th2, 2, w2, 2, cout)
        y = jnp.maximum(y[:, 0], y[:, 1])            # pool along H
        y = jnp.maximum(y[:, :, 0], y[:, :, 1])      # pool along W
        o_ref[0, pl.ds(r * th2, th2), :, :] = y.astype(o_ref.dtype)


def conv2_relu_pool(x, w3, b, *, row_tile=16):
    """x: (N, H, W, 128) bf16; w3: (3, 384, 256) bf16; b: (1, 256) f32.
    Returns (N, H/2, W/2, 256) bf16; channels 0:128 = age, 128:256 = gender."""
    n, h, wd, c = x.shape
    _, c3, cout = w3.shape
    assert c3 == 3 * c and h % 2 == 0 and wd % 2 == 0
    th = _pick_row_tile(h, row_tile)

    in_block = (1, h, wd, c)
    out_block = (1, h // 2, wd // 2, cout)
    vmem = _vmem_limit(2 * _nbytes(in_block, jnp.bfloat16),
                       2 * _nbytes(w3.shape, jnp.bfloat16),
                       _nbytes(b.shape, jnp.float32),
                       2 * _nbytes(out_block, jnp.bfloat16),
                       _nbytes((h + 2, wd, c3), jnp.bfloat16),      # scr3
                       2 * _nbytes((th * wd, cout), jnp.float32))   # acc + temps

    return pl.pallas_call(
        functools.partial(_conv2_kernel, row_tile=th),
        out_shape=jax.ShapeDtypeStruct((n, h // 2, wd // 2, cout), jnp.bfloat16),
        grid=(n,),
        in_specs=[
            pl.BlockSpec(in_block, lambda i: (i, 0, 0, 0)),
            pl.BlockSpec(w3.shape, lambda i: (0, 0, 0)),
            pl.BlockSpec((1, cout), lambda i: (0, 0)),
        ],
        out_specs=pl.BlockSpec(out_block, lambda i: (i, 0, 0, 0)),
        scratch_shapes=[pltpu.VMEM((h + 2, wd, c3), jnp.bfloat16)],
        compiler_params=pltpu.CompilerParams(
            dimension_semantics=("parallel",),
            vmem_limit_bytes=vmem),
        cost_estimate=pl.CostEstimate(
            flops=2 * n * h * wd * 3 * c3 * cout, transcendentals=0,
            bytes_accessed=(x.size * 2 + w3.size * 2 + b.size * 4
                            + n * (h // 2) * (wd // 2) * cout * 2)),
    )(x, w3, b)


# ---------------------------------------------------------------------------
# Kernel 3: both FC heads (fc1 K-tiled -> fc2), lane-dense 128-wide everywhere
# ---------------------------------------------------------------------------
def _fc_heads_kernel(x_ref, w1_ref, b1_ref, w2_ref, b2_ref, o_ref, acc_ref):
    """grid = (branch, K-tile).  fc1 is K-tiled into a lane-dense (N, 128) f32
    accumulator; fc2 runs at the last K step.  There is intentionally NO
    activation between fc1 and fc2 (matches the reference module); the gender
    sigmoid is applied in the wrapper (keeps program_id out of pl.when bodies)."""
    k = pl.program_id(1)
    k_last = pl.num_programs(1) - 1          # top level only (interpret/lowering safe)

    @pl.when(k == 0)
    def _init():
        acc_ref[...] = jnp.zeros_like(acc_ref)

    acc_ref[...] += jnp.dot(x_ref[0], w1_ref[0], preferred_element_type=jnp.float32)

    @pl.when(k == k_last)
    def _finalize():
        h = (acc_ref[...] + b1_ref[0]).astype(jnp.bfloat16)   # fc1 out; cols 64: are 0
        y = jnp.dot(h, w2_ref[0], preferred_element_type=jnp.float32) + b2_ref[0]
        o_ref[0] = y


def fc_heads(feats, w1, b1, w2, b2, *, tile_k=4096):
    """feats: (2, N, K) bf16; w1: (2, K, 128) bf16 (cols 64: zero); b1: (2, 1, 128) f32;
    w2: (2, 128, 128) bf16 (col 0 real); b2: (2, 1, 128) f32.
    Returns (2, N, 128) f32; column 0 holds each head's scalar output."""
    nb, n, k = feats.shape
    tile_k = min(tile_k, k)
    assert k % tile_k == 0 and tile_k % 128 == 0

    vmem = _vmem_limit(2 * _nbytes((1, n, tile_k), jnp.bfloat16),
                       2 * _nbytes((1, tile_k, 128), jnp.bfloat16),
                       2 * _nbytes((1, 128, 128), jnp.bfloat16),
                       2 * _nbytes((1, n, 128), jnp.float32),
                       _nbytes((n, 128), jnp.float32))

    # TODO(synk): at the real fc_in=524288, consider pipeline_mode=pl.Buffered(3)
    # on the w1 spec if the weight-stream DMA is still exposed.
    return pl.pallas_call(
        _fc_heads_kernel,
        out_shape=jax.ShapeDtypeStruct((nb, n, 128), jnp.float32),
        grid=(nb, k // tile_k),
        in_specs=[
            pl.BlockSpec((1, n, tile_k), lambda b, kk: (b, 0, kk)),
            pl.BlockSpec((1, tile_k, 128), lambda b, kk: (b, kk, 0)),
            pl.BlockSpec((1, 1, 128), lambda b, kk: (b, 0, 0)),
            pl.BlockSpec((1, 128, 128), lambda b, kk: (b, 0, 0)),
            pl.BlockSpec((1, 1, 128), lambda b, kk: (b, 0, 0)),
        ],
        out_specs=pl.BlockSpec((1, n, 128), lambda b, kk: (b, 0, 0)),
        scratch_shapes=[pltpu.VMEM((n, 128), jnp.float32)],
        compiler_params=pltpu.CompilerParams(
            dimension_semantics=("parallel", "arbitrary"),
            vmem_limit_bytes=vmem),
        cost_estimate=pl.CostEstimate(
            flops=2 * nb * n * k * 128 + 2 * nb * n * 128 * 128,
            transcendentals=0,
            bytes_accessed=(feats.size * 2 + w1.size * 2 + w2.size * 2
                            + (b1.size + b2.size) * 4 + nb * n * 128 * 4)),
    )(feats, w1, b1, w2, b2)


# ---------------------------------------------------------------------------
# Full forward
# ---------------------------------------------------------------------------
def age_gender_forward(x_nchw, kp):
    """x_nchw: (N, 3, H, W) f32.  kp: kernel-layout params (prepare_params).
    Returns (age (N,), gender (N,)) matching AgeGenderDetectNN.forward."""
    n, _, h, w = x_nchw.shape
    x = jnp.transpose(x_nchw, (0, 2, 3, 1)).astype(jnp.bfloat16)    # NCHW -> NHWC

    # Cheap 27-channel im2col for conv1 (Cin=3): one K=27 MXU pass per row tile
    # instead of nine K=3 pushes.
    xp = jnp.pad(x, ((0, 0), (1, 1), (1, 1), (0, 0)))
    x27 = jnp.concatenate(
        [xp[:, dy:dy + h, dx:dx + w, :] for dy in range(3) for dx in range(3)],
        axis=-1)                                                    # (N, H, W, 27)

    # conv1 of BOTH branches fused along Cout (age -> 0:64, gender -> 64:128).
    h1 = conv1_relu_pool(x27, kp["conv1_w"], kp["conv1_b"])         # (N, H/2, W/2, 128)

    # conv2, both branches fused block-diagonally (age -> 0:128, gender -> 128:256);
    # halo handled in-kernel, no wrapper pad, no duplicated input DMA.
    h2 = conv2_relu_pool(h1, kp["conv2_w"], kp["conv2_b"])          # (N, H/4, W/4, 256)

    # Per-branch NHWC flatten; fc1 weight rows were permuted ONCE at prep time
    # to this order, so no NCHW transpose of the feature map at runtime.
    feats = jnp.stack([h2[..., :128].reshape(n, -1),
                       h2[..., 128:].reshape(n, -1)])               # (2, N, K)

    out = fc_heads(feats, kp["fc1_w"], kp["fc1_b"], kp["fc2_w"], kp["fc2_b"])
    age = out[0, :, 0]
    gender = jax.nn.sigmoid(out[1, :, 0])          # sigmoid only on the gender head
    return age, gender


# ---------------------------------------------------------------------------
# Parameters (PyTorch layout) and one-time conversion to kernel layout
# ---------------------------------------------------------------------------
def init_params(key, fc_in):
    """Parameters in PyTorch layout: Conv2d (Cout, Cin, kh, kw); Linear (out, in)."""
    ks = iter(jax.random.split(key, 32))
    p = {}
    for prefix in ("age", "gender"):
        p[f"{prefix}_conv1_w"] = 0.05 * jax.random.normal(next(ks), (64, 3, 3, 3), jnp.float32)
        p[f"{prefix}_conv1_b"] = 0.01 * jax.random.normal(next(ks), (64,), jnp.float32)
        p[f"{prefix}_conv2_w"] = 0.05 * jax.random.normal(next(ks), (128, 64, 3, 3), jnp.float32)
        p[f"{prefix}_conv2_b"] = 0.01 * jax.random.normal(next(ks), (128,), jnp.float32)
        p[f"{prefix}_fc1_w"] = 0.01 * jax.random.normal(next(ks), (64, fc_in), jnp.float32)
        p[f"{prefix}_fc1_b"] = 0.01 * jax.random.normal(next(ks), (64,), jnp.float32)
        p[f"{prefix}_fc2_w"] = 0.01 * jax.random.normal(next(ks), (1, 64), jnp.float32)
        p[f"{prefix}_fc2_b"] = 0.01 * jax.random.normal(next(ks), (1,), jnp.float32)
    return p


def prepare_params(p, h4, w4):
    """One-time conversion from PyTorch layout to the fused kernel layout."""
    def taps(w_oihw):            # (Cout, Cin, 3, 3) -> (dy, dx, Cin, Cout)
        return jnp.transpose(w_oihw, (2, 3, 1, 0))

    kp = {}
    # conv1: both branches fused along Cout; rows ordered (dy, dx, cin) = im2col order.
    w1 = jnp.concatenate([taps(p["age_conv1_w"]), taps(p["gender_conv1_w"])], axis=-1)
    kp["conv1_w"] = w1.reshape(27, 128).astype(jnp.bfloat16)        # (27, 128)
    kp["conv1_b"] = jnp.concatenate(
        [p["age_conv1_b"], p["gender_conv1_b"]]).reshape(1, 128)    # (1, 128) f32

    # conv2: block-diagonal branch fusion (in 0:64 -> out 0:128 age,
    # in 64:128 -> out 128:256 gender); dx taps folded into K (rows = dx*128+cin).
    wf = jnp.zeros((3, 3, 128, 256), jnp.float32)
    wf = wf.at[:, :, 0:64, 0:128].set(taps(p["age_conv2_w"]))
    wf = wf.at[:, :, 64:128, 128:256].set(taps(p["gender_conv2_w"]))
    kp["conv2_w"] = wf.reshape(3, 384, 256).astype(jnp.bfloat16)    # (3, 384, 256)
    kp["conv2_b"] = jnp.concatenate(
        [p["age_conv2_b"], p["gender_conv2_b"]]).reshape(1, 256)    # (1, 256) f32

    # fc1: rows permuted once from PyTorch NCHW-flatten (c, h, w) to the kernels'
    # NHWC-flatten (h, w, c); columns zero-padded 64 -> 128 for lane-dense acc.
    def fc1_mat(w_torch):
        m = jnp.transpose(w_torch.reshape(64, 128, h4, w4),
                          (2, 3, 1, 0)).reshape(h4 * w4 * 128, 64)
        return jnp.pad(m, ((0, 0), (0, 64)))
    kp["fc1_w"] = jnp.stack(
        [fc1_mat(p["age_fc1_w"]), fc1_mat(p["gender_fc1_w"])]).astype(jnp.bfloat16)
    kp["fc1_b"] = jnp.stack([jnp.pad(p["age_fc1_b"], (0, 64)),
                             jnp.pad(p["gender_fc1_b"], (0, 64))]).reshape(2, 1, 128)

    # fc2: (1, 64) -> (128, 128); rows 0:64 of column 0 hold the real weights.
    def fc2_mat(w_torch):
        return jnp.zeros((128, 128), jnp.float32).at[0:64, 0].set(w_torch[0])
    kp["fc2_w"] = jnp.stack(
        [fc2_mat(p["age_fc2_w"]), fc2_mat(p["gender_fc2_w"])]).astype(jnp.bfloat16)
    kp["fc2_b"] = jnp.stack(
        [jnp.zeros((1, 128), jnp.float32).at[0, 0].set(p["age_fc2_b"][0]),
         jnp.zeros((1, 128), jnp.float32).at[0, 0].set(p["gender_fc2_b"][0])])
    return kp


# ---------------------------------------------------------------------------
# Pure-JAX float32 reference (semantics check)
# ---------------------------------------------------------------------------
def reference_forward(x_nchw, p):
    def conv(x, w, b):
        y = jax.lax.conv_general_dilated(x, w, (1, 1), ((1, 1), (1, 1)),
                                         dimension_numbers=("NCHW", "OIHW", "NCHW"))
        return jax.nn.relu(y + b[None, :, None, None])

    def pool(x):
        return jax.lax.reduce_window(x, -jnp.inf, jax.lax.max,
                                     (1, 1, 2, 2), (1, 1, 2, 2), "VALID")

    def branch(prefix):
        h = pool(conv(x_nchw, p[f"{prefix}_conv1_w"], p[f"{prefix}_conv1_b"]))
        h = pool(conv(h, p[f"{prefix}_conv2_w"], p[f"{prefix}_conv2_b"]))
        h = h.reshape(h.shape[0], -1)                              # NCHW flatten
        h = h @ p[f"{prefix}_fc1_w"].T + p[f"{prefix}_fc1_b"]
        h = h @ p[f"{prefix}_fc2_w"].T + p[f"{prefix}_fc2_b"]
        return h.reshape(-1)

    return branch("age"), jax.nn.sigmoid(branch("gender"))


# ---------------------------------------------------------------------------
if __name__ == "__main__":
    key = jax.random.PRNGKey(0)
    kx, kparam = jax.random.split(key)

    N, C, H, W = 2, 3, 16, 16                 # small analogue of the 256x256 spec
    fc_in = 128 * (H // 4) * (W // 4)         # = 2048 (real model: 128*64*64)

    x = jax.random.normal(kx, (N, C, H, W), jnp.float32)
    torch_params = init_params(kparam, fc_in)
    kernel_params = prepare_params(torch_params, H // 4, W // 4)

    fwd = jax.jit(age_gender_forward)
    age, gender = fwd(x, kernel_params)
    jax.block_until_ready((age, gender))

    # sanity checks vs. a pure-JAX float32 reference (kernels compute in bf16).
    age_ref, gender_ref = reference_forward(x, torch_params)
    assert age.shape == (N,) and gender.shape == (N,)
    assert bool(jnp.all((gender >= 0.0) & (gender <= 1.0)))
    assert bool(jnp.allclose(age, age_ref, rtol=1e-1, atol=5e-2)), (age, age_ref)
    assert bool(jnp.allclose(gender, gender_ref, rtol=1e-1, atol=5e-2)), (gender, gender_ref)
    print("KERNEL_OK")
</pallas_src>

<mosaic_0001>
module attributes {stable_mosaic.version = 11 : i64} {
  func.func @_conv2_kernel(%arg0: i32, %arg1: memref<1x8x8x128xbf16, #tpu.memory_space<vmem>>, %arg2: memref<3x384x256xbf16, #tpu.memory_space<vmem>>, %arg3: memref<1x256xf32, #tpu.memory_space<vmem>>, %arg4: memref<1x4x4x256xbf16, #tpu.memory_space<vmem>>, %arg5: memref<10x8x384xbf16, #tpu.memory_space<vmem>>) attributes {dimension_semantics = [#tpu.dimension_semantics<parallel>], iteration_bounds = array<i64: 2>, scalar_prefetch = 0 : i64, scratch_operands = 1 : i64, tpu.core_type = #tpu.core_type<tc>, window_params = [{transform_indices = @transform_0, window_bounds = array<i64: 1, 8, 8, 128>}, {pipeline_mode = #tpu.pipeline_mode<synchronous>, transform_indices = @transform_1, window_bounds = array<i64: 3, 384, 256>}, {pipeline_mode = #tpu.pipeline_mode<synchronous>, transform_indices = @transform_2, window_bounds = array<i64: 1, 256>}, {transform_indices = @transform_3, window_bounds = array<i64: 1, 4, 4, 256>}]} {
    %cst = arith.constant 0.000000e+00 : bf16
    %0 = vector.broadcast %cst : bf16 to vector<10x8x384xbf16>
    %c0 = arith.constant 0 : index
    %c0_0 = arith.constant 0 : index
    %c0_1 = arith.constant 0 : index
    %1 = vector.load %arg5[%c0, %c0_0, %c0_1] : memref<10x8x384xbf16, #tpu.memory_space<vmem>>, vector<10x8x384xbf16>
    tpu.vector_store %arg5[%c0, %c0_0, %c0_1], %0 {strides = array<i32>} : memref<10x8x384xbf16, #tpu.memory_space<vmem>>, vector<10x8x384xbf16>,
    %c0_2 = arith.constant 0 : index
    %c0_3 = arith.constant 0 : index
    %c0_4 = arith.constant 0 : index
    %c0_5 = arith.constant 0 : index
    %2 = vector.load %arg1[%c0_2, %c0_3, %c0_4, %c0_5] : memref<1x8x8x128xbf16, #tpu.memory_space<vmem>>, vector<1x8x7x128xbf16>
    %3 = vector.shape_cast %2 : vector<1x8x7x128xbf16> to vector<8x7x128xbf16>
    %c1 = arith.constant 1 : index
    %c1_6 = arith.constant 1 : index
    %c0_7 = arith.constant 0 : index
    %4 = vector.load %arg5[%c1, %c1_6, %c0_7] : memref<10x8x384xbf16, #tpu.memory_space<vmem>>, vector<8x7x128xbf16>
    tpu.vector_store %arg5[%c1, %c1_6, %c0_7], %3 {strides = array<i32>} : memref<10x8x384xbf16, #tpu.memory_space<vmem>>, vector<8x7x128xbf16>,
    %c0_8 = arith.constant 0 : index
    %c0_9 = arith.constant 0 : index
    %c0_10 = arith.constant 0 : index
    %c0_11 = arith.constant 0 : index
    %5 = vector.load %arg1[%c0_8, %c0_9, %c0_10, %c0_11] : memref<1x8x8x128xbf16, #tpu.memory_space<vmem>>, vector<1x8x8x128xbf16>
    %6 = vector.shape_cast %5 : vector<1x8x8x128xbf16> to vector<8x8x128xbf16>
    %c1_12 = arith.constant 1 : index
    %c0_13 = arith.constant 0 : index
    %c128 = arith.constant 128 : index
    %7 = vector.load %arg5[%c1_12, %c0_13, %c128] : memref<10x8x384xbf16, #tpu.memory_space<vmem>>, vector<8x8x128xbf16>
    tpu.vector_store %arg5[%c1_12, %c0_13, %c128], %6 {strides = array<i32>} : memref<10x8x384xbf16, #tpu.memory_space<vmem>>, vector<8x8x128xbf16>,
    %c0_14 = arith.constant 0 : index
    %c0_15 = arith.constant 0 : index
    %c1_16 = arith.constant 1 : index
    %c0_17 = arith.constant 0 : index
    %8 = vector.load %arg1[%c0_14, %c0_15, %c1_16, %c0_17] : memref<1x8x8x128xbf16, #tpu.memory_space<vmem>>, vector<1x8x7x128xbf16>
    %9 = vector.shape_cast %8 : vector<1x8x7x128xbf16> to vector<8x7x128xbf16>
    %c1_18 = arith.constant 1 : index
    %c0_19 = arith.constant 0 : index
    %c256 = arith.constant 256 : index
    %10 = vector.load %arg5[%c1_18, %c0_19, %c256] : memref<10x8x384xbf16, #tpu.memory_space<vmem>>, vector<8x7x128xbf16>
    tpu.vector_store %arg5[%c1_18, %c0_19, %c256], %9 {strides = array<i32>} : memref<10x8x384xbf16, #tpu.memory_space<vmem>>, vector<8x7x128xbf16>,
    %cst_20 = arith.constant 0.000000e+00 : f32
    %11 = vector.broadcast %cst_20 : f32 to vector<64x256xf32>
    %c0_21 = arith.constant 0 : index
    %c0_22 = arith.constant 0 : index
    %c0_23 = arith.constant 0 : index
    %12 = vector.load %arg5[%c0_21, %c0_22, %c0_23] : memref<10x8x384xbf16, #tpu.memory_space<vmem>>, vector<8x8x384xbf16>
    %13 = vector.shape_cast %12 : vector<8x8x384xbf16> to vector<64x384xbf16>
    %c0_24 = arith.constant 0 : index
    %c0_25 = arith.constant 0 : index
    %c0_26 = arith.constant 0 : index
    %14 = vector.load %arg2[%c0_24, %c0_25, %c0_26] : memref<3x384x256xbf16, #tpu.memory_space<vmem>>, vector<1x384x256xbf16>
    %15 = vector.shape_cast %14 : vector<1x384x256xbf16> to vector<384x256xbf16>
    %cst_27 = arith.constant dense<0.000000e+00> : vector<64x256xf32>
    %16 = tpu.matmul %13, %15, %cst_27 {dimension_numbers = #tpu.dot_dimension_numbers<[1], [0], [0], [1], [0, 0, 1, 1], [], []>} : vector<64x384xbf16>, vector<384x256xbf16>, vector<64x256xf32> -> vector<64x256xf32>
    %17 = arith.addf %11, %16 : vector<64x256xf32>
    %c1_28 = arith.constant 1 : index
    %c0_29 = arith.constant 0 : index
    %c0_30 = arith.constant 0 : index
    %18 = vector.load %arg5[%c1_28, %c0_29, %c0_30] : memref<10x8x384xbf16, #tpu.memory_space<vmem>>, vector<8x8x384xbf16>
    %19 = vector.shape_cast %18 : vector<8x8x384xbf16> to vector<64x384xbf16>
    %c1_31 = arith.constant 1 : index
    %c0_32 = arith.constant 0 : index
    %c0_33 = arith.constant 0 : index
    %20 = vector.load %arg2[%c1_31, %c0_32, %c0_33] : memref<3x384x256xbf16, #tpu.memory_space<vmem>>, vector<1x384x256xbf16>
    %21 = vector.shape_cast %20 : vector<1x384x256xbf16> to vector<384x256xbf16>
    %cst_34 = arith.constant dense<0.000000e+00> : vector<64x256xf32>
    %22 = tpu.matmul %19, %21, %cst_34 {dimension_numbers = #tpu.dot_dimension_numbers<[1], [0], [0], [1], [0, 0, 1, 1], [], []>} : vector<64x384xbf16>, vector<384x256xbf16>, vector<64x256xf32> -> vector<64x256xf32>
    %23 = arith.addf %17, %22 : vector<64x256xf32>
    %c2 = arith.constant 2 : index
    %c0_35 = arith.constant 0 : index
    %c0_36 = arith.constant 0 : index
    %24 = vector.load %arg5[%c2, %c0_35, %c0_36] : memref<10x8x384xbf16, #tpu.memory_space<vmem>>, vector<8x8x384xbf16>
    %25 = vector.shape_cast %24 : vector<8x8x384xbf16> to vector<64x384xbf16>
    %c2_37 = arith.constant 2 : index
    %c0_38 = arith.constant 0 : index
    %c0_39 = arith.constant 0 : index
    %26 = vector.load %arg2[%c2_37, %c0_38, %c0_39] : memref<3x384x256xbf16, #tpu.memory_space<vmem>>, vector<1x384x256xbf16>
    %27 = vector.shape_cast %26 : vector<1x384x256xbf16> to vector<384x256xbf16>
    %cst_40 = arith.constant dense<0.000000e+00> : vector<64x256xf32>
    %28 = tpu.matmul %25, %27, %cst_40 {dimension_numbers = #tpu.dot_dimension_numbers<[1], [0], [0], [1], [0, 0, 1, 1], [], []>} : vector<64x384xbf16>, vector<384x256xbf16>, vector<64x256xf32> -> vector<64x256xf32>
    %29 = arith.addf %23, %28 : vector<64x256xf32>
    %c0_41 = arith.constant 0 : index
    %c0_42 = arith.constant 0 : index
    %30 = vector.load %arg3[%c0_41, %c0_42] : memref<1x256xf32, #tpu.memory_space<vmem>>, vector<1x256xf32>
    %31 = vector.broadcast %30 : vector<1x256xf32> to vector<64x256xf32>
    %32 = arith.addf %29, %31 : vector<64x256xf32>
    %cst_43 = arith.constant 0.000000e+00 : f32
    %33 = vector.broadcast %cst_43 : f32 to vector<64x256xf32>
    %34 = arith.maximumf %32, %33 : vector<64x256xf32>
    %35 = vector.shape_cast %34 : vector<64x256xf32> to vector<4x2x4x2x256xf32>
    %36 = vector.extract_strided_slice %35 {offsets = [0, 0, 0, 0, 0], sizes = [4, 1, 4, 2, 256], strides = [1, 1, 1, 1, 1]} : vector<4x2x4x2x256xf32> to vector<4x1x4x2x256xf32>
    %37 = vector.shape_cast %36 : vector<4x1x4x2x256xf32> to vector<4x4x2x256xf32>
    %38 = vector.extract_strided_slice %35 {offsets = [0, 1, 0, 0, 0], sizes = [4, 1, 4, 2, 256], strides = [1, 1, 1, 1, 1]} : vector<4x2x4x2x256xf32> to vector<4x1x4x2x256xf32>
    %39 = vector.shape_cast %38 : vector<4x1x4x2x256xf32> to vector<4x4x2x256xf32>
    %40 = arith.maximumf %37, %39 : vector<4x4x2x256xf32>
    %41 = vector.extract_strided_slice %40 {offsets = [0, 0, 0, 0], sizes = [4, 4, 1, 256], strides = [1, 1, 1, 1]} : vector<4x4x2x256xf32> to vector<4x4x1x256xf32>
    %42 = vector.shape_cast %41 : vector<4x4x1x256xf32> to vector<4x4x256xf32>
    %43 = vector.extract_strided_slice %40 {offsets = [0, 0, 1, 0], sizes = [4, 4, 1, 256], strides = [1, 1, 1, 1]} : vector<4x4x2x256xf32> to vector<4x4x1x256xf32>
    %44 = vector.shape_cast %43 : vector<4x4x1x256xf32> to vector<4x4x256xf32>
    %45 = arith.maximumf %42, %44 : vector<4x4x256xf32>
    %46 = arith.truncf %45 : vector<4x4x256xf32> to vector<4x4x256xbf16>
    %c0_44 = arith.constant 0 : index
    %c0_45 = arith.constant 0 : index
    %c0_46 = arith.constant 0 : index
    %c0_47 = arith.constant 0 : index
    %47 = vector.load %arg4[%c0_44, %c0_45, %c0_46, %c0_47] : memref<1x4x4x256xbf16, #tpu.memory_space<vmem>>, vector<1x4x4x256xbf16>
    %48 = vector.shape_cast %47 : vector<1x4x4x256xbf16> to vector<4x4x256xbf16>
    %49 = vector.shape_cast %46 : vector<4x4x256xbf16> to vector<1x4x4x256xbf16>
    tpu.vector_store %arg4[%c0_44, %c0_45, %c0_46, %c0_47], %49 {strides = array<i32>} : memref<1x4x4x256xbf16, #tpu.memory_space<vmem>>, vector<1x4x4x256xbf16>,
    return
  }
  func.func @transform_0(%arg0: i32) -> (i32, i32, i32, i32) {
    %c0_i32 = arith.constant 0 : i32
    %c0_i32_0 = arith.constant 0 : i32
    %c0_i32_1 = arith.constant 0 : i32
    %c0_i32_2 = arith.constant 0 : i32
    return %arg0, %c0_i32, %c0_i32_0, %c0_i32_1 : i32, i32, i32, i32
  }
  func.func @transform_1(%arg0: i32) -> (i32, i32, i32) {
    %c0_i32 = arith.constant 0 : i32
    %c0_i32_0 = arith.constant 0 : i32
    %c0_i32_1 = arith.constant 0 : i32
    %c0_i32_2 = arith.constant 0 : i32
    return %c0_i32, %c0_i32_0, %c0_i32_1 : i32, i32, i32
  }
  func.func @transform_2(%arg0: i32) -> (i32, i32) {
    %c0_i32 = arith.constant 0 : i32
    %c0_i32_0 = arith.constant 0 : i32
    %c0_i32_1 = arith.constant 0 : i32
    return %c0_i32, %c0_i32_0 : i32, i32
  }
  func.func @transform_3(%arg0: i32) -> (i32, i32, i32, i32) {
    %c0_i32 = arith.constant 0 : i32
    %c0_i32_0 = arith.constant 0 : i32
    %c0_i32_1 = arith.constant 0 : i32
    %c0_i32_2 = arith.constant 0 : i32
    return %arg0, %c0_i32, %c0_i32_0, %c0_i32_1 : i32, i32, i32, i32
  }
}

module attributes {stable_mosaic.version = 11 : i64} {
  func.func @_conv1_kernel(%arg0: i32, %arg1: i32, %arg2: memref<1x16x16x27xbf16, #tpu.memory_space<vmem>>, %arg3: memref<27x128xbf16, #tpu.memory_space<vmem>>, %arg4: memref<1x128xf32, #tpu.memory_space<vmem>>, %arg5: memref<1x8x8x128xbf16, #tpu.memory_space<vmem>>) attributes {dimension_semantics = [#tpu.dimension_semantics<parallel>, #tpu.dimension_semantics<parallel>], iteration_bounds = array<i64: 2, 1>, scalar_prefetch = 0 : i64, scratch_operands = 0 : i64, tpu.core_type = #tpu.core_type<tc>, window_params = [{transform_indices = @transform_0, window_bounds = array<i64: 1, 16, 16, 27>}, {pipeline_mode = #tpu.pipeline_mode<synchronous>, transform_indices = @transform_1, window_bounds = array<i64: 27, 128>}, {pipeline_mode = #tpu.pipeline_mode<synchronous>, transform_indices = @transform_2, window_bounds = array<i64: 1, 128>}, {transform_indices = @transform_3, window_bounds = array<i64: 1, 8, 8, 128>}]} {
    %c0 = arith.constant 0 : index
    %c0_0 = arith.constant 0 : index
    %c0_1 = arith.constant 0 : index
    %c0_2 = arith.constant 0 : index
    %0 = vector.load %arg2[%c0, %c0_0, %c0_1, %c0_2] : memref<1x16x16x27xbf16, #tpu.memory_space<vmem>>, vector<1x16x16x27xbf16>
    %1 = vector.shape_cast %0 : vector<1x16x16x27xbf16> to vector<16x16x27xbf16>
    %2 = vector.shape_cast %1 : vector<16x16x27xbf16> to vector<256x27xbf16>
    %c0_3 = arith.constant 0 : index
    %c0_4 = arith.constant 0 : index
    %3 = vector.load %arg3[%c0_3, %c0_4] : memref<27x128xbf16, #tpu.memory_space<vmem>>, vector<27x128xbf16>
    %cst = arith.constant dense<0.000000e+00> : vector<256x128xf32>
    %4 = tpu.matmul %2, %3, %cst {dimension_numbers = #tpu.dot_dimension_numbers<[1], [0], [0], [1], [0, 0, 1, 1], [], []>} : vector<256x27xbf16>, vector<27x128xbf16>, vector<256x128xf32> -> vector<256x128xf32>
    %c0_5 = arith.constant 0 : index
    %c0_6 = arith.constant 0 : index
    %5 = vector.load %arg4[%c0_5, %c0_6] : memref<1x128xf32, #tpu.memory_space<vmem>>, vector<1x128xf32>
    %6 = vector.broadcast %5 : vector<1x128xf32> to vector<256x128xf32>
    %7 = arith.addf %4, %6 : vector<256x128xf32>
    %cst_7 = arith.constant 0.000000e+00 : f32
    %8 = vector.broadcast %cst_7 : f32 to vector<256x128xf32>
    %9 = arith.maximumf %7, %8 : vector<256x128xf32>
    %10 = vector.shape_cast %9 : vector<256x128xf32> to vector<8x2x8x2x128xf32>
    %11 = vector.extract_strided_slice %10 {offsets = [0, 0, 0, 0, 0], sizes = [8, 1, 8, 2, 128], strides = [1, 1, 1, 1, 1]} : vector<8x2x8x2x128xf32> to vector<8x1x8x2x128xf32>
    %12 = vector.shape_cast %11 : vector<8x1x8x2x128xf32> to vector<8x8x2x128xf32>
    %13 = vector.extract_strided_slice %10 {offsets = [0, 1, 0, 0, 0], sizes = [8, 1, 8, 2, 128], strides = [1, 1, 1, 1, 1]} : vector<8x2x8x2x128xf32> to vector<8x1x8x2x128xf32>
    %14 = vector.shape_cast %13 : vector<8x1x8x2x128xf32> to vector<8x8x2x128xf32>
    %15 = arith.maximumf %12, %14 : vector<8x8x2x128xf32>
    %16 = vector.extract_strided_slice %15 {offsets = [0, 0, 0, 0], sizes = [8, 8, 1, 128], strides = [1, 1, 1, 1]} : vector<8x8x2x128xf32> to vector<8x8x1x128xf32>
    %17 = vector.shape_cast %16 : vector<8x8x1x128xf32> to vector<8x8x128xf32>
    %18 = vector.extract_strided_slice %15 {offsets = [0, 0, 1, 0], sizes = [8, 8, 1, 128], strides = [1, 1, 1, 1]} : vector<8x8x2x128xf32> to vector<8x8x1x128xf32>
    %19 = vector.shape_cast %18 : vector<8x8x1x128xf32> to vector<8x8x128xf32>
    %20 = arith.maximumf %17, %19 : vector<8x8x128xf32>
    %21 = arith.truncf %20 : vector<8x8x128xf32> to vector<8x8x128xbf16>
    %c0_8 = arith.constant 0 : index
    %c0_9 = arith.constant 0 : index
    %c0_10 = arith.constant 0 : index
    %c0_11 = arith.constant 0 : index
    %22 = vector.load %arg5[%c0_8, %c0_9, %c0_10, %c0_11] : memref<1x8x8x128xbf16, #tpu.memory_space<vmem>>, vector<1x8x8x128xbf16>
    %23 = vector.shape_cast %22 : vector<1x8x8x128xbf16> to vector<8x8x128xbf16>
    %24 = vector.shape_cast %21 : vector<8x8x128xbf16> to vector<1x8x8x128xbf16>
    tpu.vector_store %arg5[%c0_8, %c0_9, %c0_10, %c0_11], %24 {strides = array<i32>} : memref<1x8x8x128xbf16, #tpu.memory_space<vmem>>, vector<1x8x8x128xbf16>,
    return
  }
  func.func @transform_0(%arg0: i32, %arg1: i32) -> (i32, i32, i32, i32) {
    %c0_i32 = arith.constant 0 : i32
    %c0_i32_0 = arith.constant 0 : i32
    %c0_i32_1 = arith.constant 0 : i32
    return %arg0, %arg1, %c0_i32, %c0_i32_0 : i32, i32, i32, i32
  }
  func.func @transform_1(%arg0: i32, %arg1: i32) -> (i32, i32) {
    %c0_i32 = arith.constant 0 : i32
    %c0_i32_0 = arith.constant 0 : i32
    %c0_i32_1 = arith.constant 0 : i32
    return %c0_i32, %c0_i32_0 : i32, i32
  }
  func.func @transform_2(%arg0: i32, %arg1: i32) -> (i32, i32) {
    %c0_i32 = arith.constant 0 : i32
    %c0_i32_0 = arith.constant 0 : i32
    %c0_i32_1 = arith.constant 0 : i32
    return %c0_i32, %c0_i32_0 : i32, i32
  }
  func.func @transform_3(%arg0: i32, %arg1: i32) -> (i32, i32, i32, i32) {
    %c0_i32 = arith.constant 0 : i32
    %c0_i32_0 = arith.constant 0 : i32
    %c0_i32_1 = arith.constant 0 : i32
    return %arg0, %arg1, %c0_i32, %c0_i32_0 : i32, i32, i32, i32
  }
}

module attributes {stable_mosaic.version = 11 : i64} {
  func.func @_fc_heads_kernel(%arg0: i32, %arg1: i32, %arg2: memref<1x2x2048xbf16, #tpu.memory_space<vmem>>, %arg3: memref<1x2048x128xbf16, #tpu.memory_space<vmem>>, %arg4: memref<1x1x128xf32, #tpu.memory_space<vmem>>, %arg5: memref<1x128x128xbf16, #tpu.memory_space<vmem>>, %arg6: memref<1x1x128xf32, #tpu.memory_space<vmem>>, %arg7: memref<1x2x128xf32, #tpu.memory_space<vmem>>, %arg8: memref<2x128xf32, #tpu.memory_space<vmem>>) attributes {dimension_semantics = [#tpu.dimension_semantics<parallel>, #tpu.dimension_semantics<arbitrary>], iteration_bounds = array<i64: 2, 1>, scalar_prefetch = 0 : i64, scratch_operands = 1 : i64, tpu.core_type = #tpu.core_type<tc>, window_params = [{transform_indices = @transform_0, window_bounds = array<i64: 1, 2, 2048>}, {transform_indices = @transform_1, window_bounds = array<i64: 1, 2048, 128>}, {transform_indices = @transform_2, window_bounds = array<i64: 1, 1, 128>}, {transform_indices = @transform_3, window_bounds = array<i64: 1, 128, 128>}, {transform_indices = @transform_4, window_bounds = array<i64: 1, 1, 128>}, {transform_indices = @transform_5, window_bounds = array<i64: 1, 2, 128>}]} {
    %c0_i32 = arith.constant 0 : i32
    %0 = arith.cmpi eq, %arg1, %c0_i32 : i32
    %1 = arith.extui %0 : i1 to i32
    %c0_i32_0 = arith.constant 0 : i32
    %2 = arith.cmpi ne, %1, %c0_i32_0 : i32
    scf.if %2 {
      %cst_12 = arith.constant 0.000000e+00 : f32
      %14 = vector.broadcast %cst_12 : f32 to vector<2x128xf32>
      %c0_13 = arith.constant 0 : index
      %c0_14 = arith.constant 0 : index
      %15 = vector.load %arg8[%c0_13, %c0_14] : memref<2x128xf32, #tpu.memory_space<vmem>>, vector<2x128xf32>
      tpu.vector_store %arg8[%c0_13, %c0_14], %14 {strides = array<i32>} : memref<2x128xf32, #tpu.memory_space<vmem>>, vector<2x128xf32>,
    } else {
    }
    %c0 = arith.constant 0 : index
    %c0_1 = arith.constant 0 : index
    %3 = vector.load %arg8[%c0, %c0_1] : memref<2x128xf32, #tpu.memory_space<vmem>>, vector<2x128xf32>
    %c0_2 = arith.constant 0 : index
    %c0_3 = arith.constant 0 : index
    %c0_4 = arith.constant 0 : index
    %4 = vector.load %arg2[%c0_2, %c0_3, %c0_4] : memref<1x2x2048xbf16, #tpu.memory_space<vmem>>, vector<1x2x2048xbf16>
    %5 = vector.shape_cast %4 : vector<1x2x2048xbf16> to vector<2x2048xbf16>
    %c0_5 = arith.constant 0 : index
    %c0_6 = arith.constant 0 : index
    %c0_7 = arith.constant 0 : index
    %6 = vector.load %arg3[%c0_5, %c0_6, %c0_7] : memref<1x2048x128xbf16, #tpu.memory_space<vmem>>, vector<1x2048x128xbf16>
    %7 = vector.shape_cast %6 : vector<1x2048x128xbf16> to vector<2048x128xbf16>
    %cst = arith.constant dense<0.000000e+00> : vector<2x128xf32>
    %8 = tpu.matmul %5, %7, %cst {dimension_numbers = #tpu.dot_dimension_numbers<[1], [0], [0], [1], [0, 0, 1, 1], [], []>} : vector<2x2048xbf16>, vector<2048x128xbf16>, vector<2x128xf32> -> vector<2x128xf32>
    %9 = arith.addf %3, %8 : vector<2x128xf32>
    %c0_8 = arith.constant 0 : index
    %c0_9 = arith.constant 0 : index
    %10 = vector.load %arg8[%c0_8, %c0_9] : memref<2x128xf32, #tpu.memory_space<vmem>>, vector<2x128xf32>
    tpu.vector_store %arg8[%c0_8, %c0_9], %9 {strides = array<i32>} : memref<2x128xf32, #tpu.memory_space<vmem>>, vector<2x128xf32>,
    %c0_i32_10 = arith.constant 0 : i32
    %11 = arith.cmpi eq, %arg1, %c0_i32_10 : i32
    %12 = arith.extui %11 : i1 to i32
    %c0_i32_11 = arith.constant 0 : i32
    %13 = arith.cmpi ne, %12, %c0_i32_11 : i32
    scf.if %13 {
      %c0_12 = arith.constant 0 : index
      %c0_13 = arith.constant 0 : index
      %14 = vector.load %arg8[%c0_12, %c0_13] : memref<2x128xf32, #tpu.memory_space<vmem>>, vector<2x128xf32>
      %c0_14 = arith.constant 0 : index
      %c0_15 = arith.constant 0 : index
      %c0_16 = arith.constant 0 : index
      %15 = vector.load %arg4[%c0_14, %c0_15, %c0_16] : memref<1x1x128xf32, #tpu.memory_space<vmem>>, vector<1x1x128xf32>
      %16 = vector.shape_cast %15 : vector<1x1x128xf32> to vector<1x128xf32>
      %17 = vector.broadcast %16 : vector<1x128xf32> to vector<2x128xf32>
      %18 = arith.addf %14, %17 : vector<2x128xf32>
      %19 = arith.truncf %18 : vector<2x128xf32> to vector<2x128xbf16>
      %c0_17 = arith.constant 0 : index
      %c0_18 = arith.constant 0 : index
      %c0_19 = arith.constant 0 : index
      %20 = vector.load %arg5[%c0_17, %c0_18, %c0_19] : memref<1x128x128xbf16, #tpu.memory_space<vmem>>, vector<1x128x128xbf16>
      %21 = vector.shape_cast %20 : vector<1x128x128xbf16> to vector<128x128xbf16>
      %cst_20 = arith.constant dense<0.000000e+00> : vector<2x128xf32>
      %22 = tpu.matmul %19, %21, %cst_20 {dimension_numbers = #tpu.dot_dimension_numbers<[1], [0], [0], [1], [0, 0, 1, 1], [], []>} : vector<2x128xbf16>, vector<128x128xbf16>, vector<2x128xf32> -> vector<2x128xf32>
      %c0_21 = arith.constant 0 : index
      %c0_22 = arith.constant 0 : index
      %c0_23 = arith.constant 0 : index
      %23 = vector.load %arg6[%c0_21, %c0_22, %c0_23] : memref<1x1x128xf32, #tpu.memory_space<vmem>>, vector<1x1x128xf32>
      %24 = vector.shape_cast %23 : vector<1x1x128xf32> to vector<1x128xf32>
      %25 = vector.broadcast %24 : vector<1x128xf32> to vector<2x128xf32>
      %26 = arith.addf %22, %25 : vector<2x128xf32>
      %c0_24 = arith.constant 0 : index
      %c0_25 = arith.constant 0 : index
      %c0_26 = arith.constant 0 : index
      %27 = vector.load %arg7[%c0_24, %c0_25, %c0_26] : memref<1x2x128xf32, #tpu.memory_space<vmem>>, vector<1x2x128xf32>
      %28 = vector.shape_cast %27 : vector<1x2x128xf32> to vector<2x128xf32>
      %29 = vector.shape_cast %26 : vector<2x128xf32> to vector<1x2x128xf32>
      tpu.vector_store %arg7[%c0_24, %c0_25, %c0_26], %29 {strides = array<i32>} : memref<1x2x128xf32, #tpu.memory_space<vmem>>, vector<1x2x128xf32>,
    } else {
    }
    return
  }
  func.func @transform_0(%arg0: i32, %arg1: i32) -> (i32, i32, i32) {
    %c0_i32 = arith.constant 0 : i32
    %c0_i32_0 = arith.constant 0 : i32
    return %arg0, %c0_i32, %arg1 : i32, i32, i32
  }
  func.func @transform_1(%arg0: i32, %arg1: i32) -> (i32, i32, i32) {
    %c0_i32 = arith.constant 0 : i32
    %c0_i32_0 = arith.constant 0 : i32
    return %arg0, %arg1, %c0_i32 : i32, i32, i32
  }
  func.func @transform_2(%arg0: i32, %arg1: i32) -> (i32, i32, i32) {
    %c0_i32 = arith.constant 0 : i32
    %c0_i32_0 = arith.constant 0 : i32
    %c0_i32_1 = arith.constant 0 : i32
    return %arg0, %c0_i32, %c0_i32_0 : i32, i32, i32
  }
  func.func @transform_3(%arg0: i32, %arg1: i32) -> (i32, i32, i32) {
    %c0_i32 = arith.constant 0 : i32
    %c0_i32_0 = arith.constant 0 : i32
    %c0_i32_1 = arith.constant 0 : i32
    return %arg0, %c0_i32, %c0_i32_0 : i32, i32, i32
  }
  func.func @transform_4(%arg0: i32, %arg1: i32) -> (i32, i32, i32) {
    %c0_i32 = arith.constant 0 : i32
    %c0_i32_0 = arith.constant 0 : i32
    %c0_i32_1 = arith.constant 0 : i32
    return %arg0, %c0_i32, %c0_i32_0 : i32, i32, i32
  }
  func.func @transform_5(%arg0: i32, %arg1: i32) -> (i32, i32, i32) {
    %c0_i32 = arith.constant 0 : i32
    %c0_i32_0 = arith.constant 0 : i32
    %c0_i32_1 = arith.constant 0 : i32
    return %arg0, %c0_i32, %c0_i32_0 : i32, i32, i32
  }
}

</mosaic_0001>

<llo_original>
// kernel: age_gender_forward.3
$region0: #{age_gender_forward.3}
  #allocation0 [shape = 'u32[]', space=smem, size = 0x4, offset = 0x4, fixed_abs, tag = 'smem constant byte address 0x4 - core index']
  #allocation1 [shape = 'u32[144,128]{1,0:T(1,128)}', space=vmem, size = 0x12000, scoped, tag = 'internal scratch']
  %s0 = inlined_call_operand.vmem [shape: bf16[2,16,16,27], index: 0, kind: input, shape index: {}]
  %s1 = inlined_call_operand.vmem [shape: bf16[27,128], index: 1, kind: input, shape index: {}]
  %s2 = inlined_call_operand.vmem [shape: f32[1,128], index: 2, kind: input, shape index: {}]
  %s3 = inlined_call_operand.vmem [shape: bf16[2,8,8,128], index: 3, kind: output, shape index: {}]
  %s4 = sld [smem:[#allocation0]]
  $region45: #{age_gender_forward.3} parent=0
    _
  %s6 = ssub.s32 1, %s4
  %s7 = scalar_select 0, %s6, %s4
  loop: start=0, step=1, limit=4
  $region2: #{age_gender_forward.3} parent=0 // loop_pre_header
    _
  $region3: #{age_gender_forward.3} parent=0 // loop_header
    %s9 = sphi 0, %s13
    %p10 = scmp.ge.s32.totalorder %s9, 4
    %s16 = sphi 0, %s28
    %s17 = sphi 0, %s24
    %s18 = sphi 0, %s16
    %s19 = sphi 0, %s17
    %s20 = sphi 0, %s18
    %s21 = sphi 0, %s19
    %s33 = sphi 0, %s35
    %s36 = sphi 0, %s33
    %s37 = sphi 0, %s36
    %s53 = sphi 0, %s37
    %s57 = sphi 0, %s57
    %s59 = sphi 0, %s57
    %s60 = sphi 0, %s59
    %s74 = sphi 0, %s60
    %s78 = sphi 0, %s78
    %s80 = sphi 0, %s78
    %s81 = sphi 0, %s80
    %s95 = sphi 0, %s81
    %s103 = sphi 0, %s105
    %s106 = sphi 0, %s103
    %s107 = sphi 0, %s106
    %s123 = sphi 0, %s107
  $region4: #{age_gender_forward.3} parent=0 // loop_header_branch
    %12 = sbr.rel (%p10) target = $region8
  $region5: #{age_gender_forward.3} parent=0 // loop_body
    %s14 = ssub.s32 %s9, 1
    %s15 = ssub.s32 %s9, 2
    %s22 = sadd.s32 1, %s17
    %p23 = scmp.ge.s32.totalorder %s22, 1
    %s24 = scalar_select %p23, 0, %s22
    %s25 = sadd.s32 1, %s16
    %s26 = scalar_select %p23, %s25, %s16
    %p27 = scmp.ge.s32.totalorder %s26, 2
    %s28 = scalar_select %p27, 0, %s26
    %s29 = ssub.s32 %s16, %s28
    %s30 = ssub.s32 %s17, %s24
    %s31 = sor.u32 %s29, %s30
    %p32 = scmp.eq.s32.totalorder %s31, 0
    %s34 = sadd.s32 %s33, 1
    %s35 = scalar_select %p32, %s33, %s34
    %p38 = pneg %p32
    %p39 = scmp.eq.s32.totalorder %s9, 1
    %p40 = por %p38, %p39
    %p41 = scmp.ne.s32.totalorder %s33, %s36
    %p42 = scmp.eq.s32.totalorder %s9, 0
    %p43 = por %p41, %p42
    %p44 = scmp.ne.s32.totalorder %s33, %s36
    %p45 = scmp.eq.s32.totalorder %s14, 1
    %p46 = por %p44, %p45
    %p47 = scmp.ne.s32.totalorder %s36, %s37
    %p48 = scmp.eq.s32.totalorder %s14, 0
    %p49 = por %p47, %p48
    %p50 = scmp.ne.s32.totalorder %s36, %s37
    %p51 = scmp.eq.s32.totalorder %s15, 1
    %p52 = por %p50, %p51
    %p54 = scmp.ne.s32.totalorder %s37, %s53
    %p55 = scmp.eq.s32.totalorder %s15, 0
    %p56 = por %p54, %p55
    %s58 = sadd.s32 %s57, 1
    %p61 = scmp.eq.s32.totalorder %s9, 1
    %p62 = scmp.ne.s32.totalorder %s57, %s59
    %p63 = scmp.eq.s32.totalorder %s9, 0
    %p64 = por %p62, %p63
    %p65 = scmp.ne.s32.totalorder %s57, %s59
    %p66 = scmp.eq.s32.totalorder %s14, 1
    %p67 = por %p65, %p66
    %p68 = scmp.ne.s32.totalorder %s59, %s60
    %p69 = scmp.eq.s32.totalorder %s14, 0
    %p70 = por %p68, %p69
    %p71 = scmp.ne.s32.totalorder %s59, %s60
    %p72 = scmp.eq.s32.totalorder %s15, 1
    %p73 = por %p71, %p72
    %p75 = scmp.ne.s32.totalorder %s60, %s74
    %p76 = scmp.eq.s32.totalorder %s15, 0
    %p77 = por %p75, %p76
    %s79 = sadd.s32 %s78, 1
    %p82 = scmp.eq.s32.totalorder %s9, 1
    %p83 = scmp.ne.s32.totalorder %s78, %s80
    %p84 = scmp.eq.s32.totalorder %s9, 0
    %p85 = por %p83, %p84
    %p86 = scmp.ne.s32.totalorder %s78, %s80
    %p87 = scmp.eq.s32.totalorder %s14, 1
    %p88 = por %p86, %p87
    %p89 = scmp.ne.s32.totalorder %s80, %s81
    %p90 = scmp.eq.s32.totalorder %s14, 0
    %p91 = por %p89, %p90
    %p92 = scmp.ne.s32.totalorder %s80, %s81
    %p93 = scmp.eq.s32.totalorder %s15, 1
    %p94 = por %p92, %p93
    %p96 = scmp.ne.s32.totalorder %s81, %s95
    %p97 = scmp.eq.s32.totalorder %s15, 0
    %p98 = por %p96, %p97
    %s99 = ssub.s32 %s16, %s28
    %s100 = ssub.s32 %s17, %s24
    %s101 = sor.u32 %s99, %s100
    %p102 = scmp.eq.s32.totalorder %s101, 0
    %s104 = sadd.s32 %s103, 1
    %s105 = scalar_select %p102, %s103, %s104
    %p108 = pneg %p102
    %p109 = scmp.eq.s32.totalorder %s9, 1
    %p110 = por %p108, %p109
    %p111 = scmp.ne.s32.totalorder %s103, %s106
    %p112 = scmp.eq.s32.totalorder %s9, 0
    %p113 = por %p111, %p112
    %p114 = scmp.ne.s32.totalorder %s103, %s106
    %p115 = scmp.eq.s32.totalorder %s14, 1
    %p116 = por %p114, %p115
    %p117 = scmp.ne.s32.totalorder %s106, %s107
    %p118 = scmp.eq.s32.totalorder %s14, 0
    %p119 = por %p117, %p118
    %p120 = scmp.ne.s32.totalorder %s106, %s107
    %p121 = scmp.eq.s32.totalorder %s15, 1
    %p122 = por %p120, %p121
    %p124 = scmp.ne.s32.totalorder %s107, %s123
    %p125 = scmp.eq.s32.totalorder %s15, 0
    %p126 = por %p124, %p125
    %p127 = scmp.le.s32.totalorder 1, %s9
    %p128 = scmp.lt.s32.totalorder %s9, 3
    %p129 = pnand %p127, %p128
    %p130 = pneg %p129
    // Predicated region
    $region9: #{age_gender_forward.3} parent=5 // pred_check
      _
    $region10: #{age_gender_forward.3} parent=5 // pred_check_branch
      %132 = sbr.rel (%p129) target = $region12
    $region11: #{age_gender_forward.3} parent=5 // pred_region
      %s133 = ssub.s32 %s9, 1
      // Predicated region
      $region13: #{age_gender_forward.3} parent=11 // pred_check
        %p134 = pneg %p70
      $region14: #{age_gender_forward.3} parent=11 // pred_check_branch
        %136 = sbr.rel (%p134) target = $region16
      $region15: #{age_gender_forward.3} parent=11 // pred_region
        _
      $region16: #{age_gender_forward.3} parent=11 // pred_fallthru
        _
      // Predicated region
      $region17: #{age_gender_forward.3} parent=11 // pred_check
        %p137 = pneg %p91
      $region18: #{age_gender_forward.3} parent=11 // pred_check_branch
        %139 = sbr.rel (%p137) target = $region20
      $region19: #{age_gender_forward.3} parent=11 // pred_region
        _
      $region20: #{age_gender_forward.3} parent=11 // pred_fallthru
        _
    $region12: #{age_gender_forward.3} parent=5 // pred_fallthru
      _
    %p140 = scmp.lt.s32.totalorder %s9, 2
    // Predicated region
    $region21: #{age_gender_forward.3} parent=5 // pred_check
      %p141 = pneg %p140
    $region22: #{age_gender_forward.3} parent=5 // pred_check_branch
      %143 = sbr.rel (%p141) target = $region24
    $region23: #{age_gender_forward.3} parent=5 // pred_region
      // Predicated region
      $region25: #{age_gender_forward.3} parent=23 // pred_check
        %p144 = pneg %p43
      $region26: #{age_gender_forward.3} parent=23 // pred_check_branch
        %146 = sbr.rel (%p144) target = $region28
      $region27: #{age_gender_forward.3} parent=23 // pred_region
        %s147 = smul.u32 16, %s17
        %p148 = scmp.lt.s32.totalorder %s16, 1
        %s149 = scalar_select %p148, %s16, 1
        %p150 = scmp.lt.s32.totalorder %s147, 15
        %s151 = scalar_select %p150, %s147, 15
        %s152 = smul.addr %s151, 2
        %s153 = smul.addr %s149, 32
        %s154 = sadd.s32 %s152, %s153
        %s155 = smul.addr %s154, 4
        %s156 = scalar_lea.vmem %s0, %s155
        %s157 = smul.u32 16, %s17
      $region28: #{age_gender_forward.3} parent=23 // pred_fallthru
        _
    $region24: #{age_gender_forward.3} parent=5 // pred_fallthru
      _
    %p158 = scmp.le.s32.totalorder 1, %s9
    %p159 = scmp.lt.s32.totalorder %s9, 3
    %p160 = pnand %p158, %p159
    %p161 = pneg %p160
    // Predicated region
    $region29: #{age_gender_forward.3} parent=5 // pred_check
      _
    $region30: #{age_gender_forward.3} parent=5 // pred_check_branch
      %163 = sbr.rel (%p160) target = $region32
    $region31: #{age_gender_forward.3} parent=5 // pred_region
      %s164 = ssub.s32 %s9, 1
      %s165 = smul.u32 16, %s19
      %p166 = scmp.lt.s32.totalorder %s18, 1
      %s167 = scalar_select %p166, %s18, 1
      %p168 = scmp.lt.s32.totalorder %s165, 15
      %s169 = scalar_select %p168, %s165, 15
      %s170 = smul.addr %s169, 2
      %s171 = smul.addr %s167, 32
      %s172 = sadd.s32 %s170, %s171
      %s173 = smul.addr %s172, 4
      %s174 = scalar_lea.vmem %s0, %s173
      %p175 = pneg %p49
      %p176 = pneg %p46
      %p177 = pneg %p70
      %p178 = pneg %p67
      %p179 = pneg %p91
      %p180 = pneg %p88
      %p181 = pneg %p119
      %p182 = pneg %p116
      %s183 = smul.u32 8, %s19
      %p184 = scmp.lt.s32.totalorder %s18, 1
      %s185 = scalar_select %p184, %s18, 1
      %p186 = scmp.lt.s32.totalorder %s183, 7
      %s187 = scalar_select %p186, %s183, 7
      %s188 = smul.addr %s185, 8
      %s189 = sadd.s32 %s187, %s188
      %s190 = smul.addr %s189, 4
      %s191 = scalar_lea.vmem %s3, %s190
      %s192 = smul.u32 16, %s19
      %p193 = scmp.lt.s32.totalorder %s18, 1
      %s194 = scalar_select %p193, %s18, 1
      %p195 = scmp.lt.s32.totalorder %s192, 15
      %s196 = scalar_select %p195, %s192, 15
      %s197 = smul.addr %s196, 2
      %s198 = smul.addr %s194, 32
      %s199 = sadd.s32 %s197, %s198
      %s200 = smul.addr %s199, 4
      %s201 = scalar_lea.vmem %s0, %s200
      %s202 = smul.u32 16, %s19
      %s203 = smul.u32 8, %s19
      %p204 = scmp.lt.s32.totalorder %s18, 1
      %s205 = scalar_select %p204, %s18, 1
      %p206 = scmp.lt.s32.totalorder %s203, 7
      %s207 = scalar_select %p206, %s203, 7
      %s208 = smul.addr %s205, 8
      %s209 = sadd.s32 %s207, %s208
      %s210 = smul.addr %s209, 4
      %s211 = scalar_lea.vmem %s3, %s210
      %s212 = smul.u32 8, %s19
      %v214 = vld [vmem:[%s201] sm:$0xf]
      %v215 = vld [vmem:[%s201 + $0x4] sm:$0xf]
      %v216 = vld [vmem:[%s201 + $0x8] sm:$0xf]
      %v217 = vld [vmem:[%s201 + $0xc] sm:$0xf]
      %v218 = vld [vmem:[%s201 + $0x10] sm:$0xf]
      %v219 = vld [vmem:[%s201 + $0x14] sm:$0xf]
      %v220 = vld [vmem:[%s201 + $0x18] sm:$0xf]
      %v221 = vld [vmem:[%s201 + $0x1c] sm:$0xf]
      %v222 = vld [vmem:[%s201 + $0x20] sm:$0xf]
      %v223 = vld [vmem:[%s201 + $0x24] sm:$0xf]
      %v224 = vld [vmem:[%s201 + $0x28] sm:$0xf]
      %v225 = vld [vmem:[%s201 + $0x2c] sm:$0xf]
      %v226 = vld [vmem:[%s201 + $0x30] sm:$0xf]
      %v227 = vld [vmem:[%s201 + $0x34] sm:$0xf]
      %v228 = vld [vmem:[%s201 + $0x38] sm:$0xf]
      %v229 = vld [vmem:[%s201 + $0x3c] sm:$0xf]
      %v230 = vld [vmem:[%s201 + $0x40] sm:$0xf]
      %v231 = vld [vmem:[%s201 + $0x44] sm:$0xf]
      %v232 = vld [vmem:[%s201 + $0x48] sm:$0xf]
      %v233 = vld [vmem:[%s201 + $0x4c] sm:$0xf]
      %v234 = vld [vmem:[%s201 + $0x50] sm:$0xf]
      %v235 = vld [vmem:[%s201 + $0x54] sm:$0xf]
      %v236 = vld [vmem:[%s201 + $0x58] sm:$0xf]
      %v237 = vld [vmem:[%s201 + $0x5c] sm:$0xf]
      %v238 = vld [vmem:[%s201 + $0x60] sm:$0xf]
      %v239 = vld [vmem:[%s201 + $0x64] sm:$0xf]
      %v240 = vld [vmem:[%s201 + $0x68] sm:$0xf]
      %v241 = vld [vmem:[%s201 + $0x6c] sm:$0xf]
      %v242 = vld [vmem:[%s201 + $0x70] sm:$0xf]
      %v243 = vld [vmem:[%s201 + $0x74] sm:$0xf]
      %v244 = vld [vmem:[%s201 + $0x78] sm:$0xf]
      %v245 = vld [vmem:[%s201 + $0x7c] sm:$0xf]
      %v246 = vld [vmem:[%s1] sm:$0xf]
      %v247 = vld [vmem:[%s1 + $0x4] sm:$0xf]
      %v248 = vld [vmem:[%s1 + $0x8] sm:$0xf]
      %v249 = vld [vmem:[%s1 + $0xc] sm:$0x3]
      %v250 = vld [vmem:[%s2] sm:$0x1]
      %v252 = vlaneseq
      %v253 = vshrl.u32 %v252, 7
      %v254 = vsub.s32 0, %v253
      %v255 = vrot.slane %v250, %v254
      %v289 = vunpack.c.l.b16 %v214
      %v290 = vunpack.c.l.b16 %v215
      %v291 = vunpack.c.l.b16 %v216
      %v292 = vunpack.c.l.b16 %v217
      %v293 = vunpack.c.l.b16 %v218
      %v294 = vunpack.c.l.b16 %v219
      %v295 = vunpack.c.l.b16 %v220
      %v296 = vunpack.c.l.b16 %v221
      %v297 = vunpack.c.l.b16 %v222
      %v298 = vunpack.c.l.b16 %v223
      %v299 = vunpack.c.l.b16 %v224
      %v300 = vunpack.c.l.b16 %v225
      %v301 = vunpack.c.l.b16 %v226
      %v302 = vunpack.c.l.b16 %v227
      %v303 = vunpack.c.l.b16 %v228
      %v304 = vunpack.c.l.b16 %v229
      %v305 = vunpack.c.l.b16 %v230
      %v306 = vunpack.c.l.b16 %v231
      %v307 = vunpack.c.l.b16 %v232
      %v308 = vunpack.c.l.b16 %v233
      %v309 = vunpack.c.l.b16 %v234
      %v310 = vunpack.c.l.b16 %v235
      %v311 = vunpack.c.l.b16 %v236
      %v312 = vunpack.c.l.b16 %v237
      %v313 = vunpack.c.l.b16 %v238
      %v314 = vunpack.c.l.b16 %v239
      %v315 = vunpack.c.l.b16 %v240
      %v316 = vunpack.c.l.b16 %v241
      %v317 = vunpack.c.l.b16 %v242
      %v318 = vunpack.c.l.b16 %v243
      %v319 = vunpack.c.l.b16 %v244
      %v320 = vunpack.c.l.b16 %v245
      %v321 = vpack.c.b16 %v290, %v289
      %v322 = vpack.c.b16 %v292, %v291
      %v323 = vpack.c.b16 %v294, %v293
      %v324 = vpack.c.b16 %v296, %v295
      %v325 = vpack.c.b16 %v298, %v297
      %v326 = vpack.c.b16 %v300, %v299
      %v327 = vpack.c.b16 %v302, %v301
      %v328 = vpack.c.b16 %v304, %v303
      %v329 = vpack.c.b16 %v306, %v305
      %v330 = vpack.c.b16 %v308, %v307
      %v331 = vpack.c.b16 %v310, %v309
      %v332 = vpack.c.b16 %v312, %v311
      %v333 = vpack.c.b16 %v314, %v313
      %v334 = vpack.c.b16 %v316, %v315
      %v335 = vpack.c.b16 %v318, %v317
      %v336 = vpack.c.b16 %v320, %v319
      %v341 = vunpack.c.l.b16 %v246
      %v342 = vunpack.c.l.b16 %v247
      %v343 = vunpack.c.l.b16 %v248
      %v344 = vunpack.c.l.b16 %v249
      %v345 = vpack.c.b16 %v342, %v341
      %v346 = vpack.c.b16 %v344, %v343
      %vm348 = vcmask 220160
      %v350 = vsel %vm348, %v321, 0
      %v353 = vsel %vm348, %v322, 0
      %v356 = vsel %vm348, %v323, 0
      %v359 = vsel %vm348, %v324, 0
      %v362 = vsel %vm348, %v325, 0
      %v365 = vsel %vm348, %v326, 0
      %v368 = vsel %vm348, %v327, 0
      %v371 = vsel %vm348, %v328, 0
      %v374 = vsel %vm348, %v329, 0
      %v377 = vsel %vm348, %v330, 0
      %v380 = vsel %vm348, %v331, 0
      %v383 = vsel %vm348, %v332, 0
      %v386 = vsel %vm348, %v333, 0
      %v389 = vsel %vm348, %v334, 0
      %v392 = vsel %vm348, %v335, 0
      %v395 = vsel %vm348, %v336, 0
      %vm397 = vcmask 1044480
      %vm398 = vcmask 1045504
      %v399 = vsel %vm397, 4294967295, 65535
      %v400 = vsel %vm398, %v399, 0
      %v402 = vand.u32 %v346, %v400
      %404 = vmatprep.subr.bf16.mxu0 0
      %405 = vmatpush1.bf16.msra.mxu0 0
      %406 = vmatprep.subr.bf16.mxu0 0
      %407 = vmatpush1.bf16.msra.mxu0 0
      %408 = vmatprep.subr.bf16.mxu0 0
      %409 = vmatpush1.bf16.msra.mxu0 0
      %410 = vmatprep.subr.bf16.mxu0 0
      %411 = vmatpush1.bf16.msra.mxu0 0
      %412 = vmatprep.subr.bf16.mxu0 0
      %413 = vmatpush1.bf16.msra.mxu0 0
      %414 = vmatprep.subr.bf16.mxu0 0
      %415 = vmatpush1.bf16.msra.mxu0 0
      %416 = vmatprep.subr.bf16.mxu0 0
      %417 = vmatpush1.bf16.msra.mxu0 %v402
      %418 = vmatprep.subr.bf16.mxu0 0
      %419 = vmatpush1.bf16.msra.mxu0 %v345
      %420 = vmatprep.subr.bf16.mxu0 0
      %421 = vmatpush2.bf16.msra.mxu0 0
      %422 = vmatprep.subr.bf16.mxu0 0
      %423 = vmatpush2.bf16.msra.mxu0 0
      %424 = vmatprep.subr.bf16.mxu0 0
      %425 = vmatpush2.bf16.msra.mxu0 0
      %426 = vmatprep.subr.bf16.mxu0 0
      %427 = vmatpush2.bf16.msra.mxu0 0
      %428 = vmatprep.subr.bf16.mxu0 0
      %429 = vmatpush2.bf16.msra.mxu0 0
      %430 = vmatprep.subr.bf16.mxu0 0
      %431 = vmatpush2.bf16.msra.mxu0 0
      %432 = vmatprep.subr.bf16.mxu0 0
      %433 = vmatpush2.bf16.msra.mxu0 0
      %434 = vmatprep.subr.bf16.mxu0 0
      %435 = vmatpush2.bf16.msra.mxu0 0
      %436 = vmatprep.mubr.bf16.mxu0 0
      %437 = vmatmul.mubr.bf16.gmra.mxu0 %v350
      %v438 = vpop.f32.mrf.mxu0
      %v439 = vadd.f32 %v255, %v438
      %v440 = vpop.f32.mrf.mxu0
      %v441 = vpop.f32.mrf.mxu0
      %v442 = vadd.f32 %v255, %v441
      %v443 = vpop.f32.mrf.mxu0
      %444 = vmatprep.mubr.bf16.mxu0 0
      %445 = vmatmul.mubr.bf16.gmra.mxu0 %v353
      %v446 = vpop.f32.mrf.mxu0
      %v447 = vadd.f32 %v255, %v446
      %v448 = vpop.f32.mrf.mxu0
      %v449 = vpop.f32.mrf.mxu0
      %v450 = vadd.f32 %v255, %v449
      %v451 = vpop.f32.mrf.mxu0
      %452 = vmatprep.mubr.bf16.mxu0 0
      %453 = vmatmul.mubr.bf16.gmra.mxu0 %v356
      %v454 = vpop.f32.mrf.mxu0
      %v455 = vadd.f32 %v255, %v454
      %v456 = vpop.f32.mrf.mxu0
      %v457 = vpop.f32.mrf.mxu0
      %v458 = vadd.f32 %v255, %v457
      %v459 = vpop.f32.mrf.mxu0
      %460 = vmatprep.mubr.bf16.mxu0 0
      %461 = vmatmul.mubr.bf16.gmra.mxu0 %v359
      %v462 = vpop.f32.mrf.mxu0
      %v463 = vadd.f32 %v255, %v462
      %v464 = vpop.f32.mrf.mxu0
      %v465 = vpop.f32.mrf.mxu0
      %v466 = vadd.f32 %v255, %v465
      %v467 = vpop.f32.mrf.mxu0
      %468 = vmatprep.mubr.bf16.mxu0 0
      %469 = vmatmul.mubr.bf16.gmra.mxu0 %v362
      %v470 = vpop.f32.mrf.mxu0
      %v471 = vadd.f32 %v255, %v470
      %v472 = vpop.f32.mrf.mxu0
      %v473 = vpop.f32.mrf.mxu0
      %v474 = vadd.f32 %v255, %v473
      %v475 = vpop.f32.mrf.mxu0
      %476 = vmatprep.mubr.bf16.mxu0 0
      %477 = vmatmul.mubr.bf16.gmra.mxu0 %v365
      %v478 = vpop.f32.mrf.mxu0
      %v479 = vadd.f32 %v255, %v478
      %v480 = vpop.f32.mrf.mxu0
      %v481 = vpop.f32.mrf.mxu0
      %v482 = vadd.f32 %v255, %v481
      %v483 = vpop.f32.mrf.mxu0
      %484 = vmatprep.mubr.bf16.mxu0 0
      %485 = vmatmul.mubr.bf16.gmra.mxu0 %v368
      %v486 = vpop.f32.mrf.mxu0
      %v487 = vadd.f32 %v255, %v486
      %v488 = vpop.f32.mrf.mxu0
      %v489 = vpop.f32.mrf.mxu0
      %v490 = vadd.f32 %v255, %v489
      %v491 = vpop.f32.mrf.mxu0
      %492 = vmatprep.mubr.bf16.mxu0 0
      %493 = vmatmul.mubr.bf16.gmra.mxu0 %v371
      %v494 = vpop.f32.mrf.mxu0
      %v495 = vadd.f32 %v255, %v494
      %v496 = vpop.f32.mrf.mxu0
      %v497 = vpop.f32.mrf.mxu0
      %v498 = vadd.f32 %v255, %v497
      %v499 = vpop.f32.mrf.mxu0
      %500 = vmatprep.mubr.bf16.mxu0 0
      %501 = vmatmul.mubr.bf16.gmra.mxu0 %v374
      %v502 = vpop.f32.mrf.mxu0
      %v503 = vadd.f32 %v255, %v502
      %v504 = vpop.f32.mrf.mxu0
      %v505 = vpop.f32.mrf.mxu0
      %v506 = vadd.f32 %v255, %v505
      %v507 = vpop.f32.mrf.mxu0
      %508 = vmatprep.mubr.bf16.mxu0 0
      %509 = vmatmul.mubr.bf16.gmra.mxu0 %v377
      %v510 = vpop.f32.mrf.mxu0
      %v511 = vadd.f32 %v255, %v510
      %v512 = vpop.f32.mrf.mxu0
      %v513 = vpop.f32.mrf.mxu0
      %v514 = vadd.f32 %v255, %v513
      %v515 = vpop.f32.mrf.mxu0
      %516 = vmatprep.mubr.bf16.mxu0 0
      %517 = vmatmul.mubr.bf16.gmra.mxu0 %v380
      %v518 = vpop.f32.mrf.mxu0
      %v519 = vadd.f32 %v255, %v518
      %v520 = vpop.f32.mrf.mxu0
      %v521 = vpop.f32.mrf.mxu0
      %v522 = vadd.f32 %v255, %v521
      %v523 = vpop.f32.mrf.mxu0
      %524 = vmatprep.mubr.bf16.mxu0 0
      %525 = vmatmul.mubr.bf16.gmra.mxu0 %v383
      %v526 = vpop.f32.mrf.mxu0
      %v527 = vadd.f32 %v255, %v526
      %v528 = vpop.f32.mrf.mxu0
      %v529 = vpop.f32.mrf.mxu0
      %v530 = vadd.f32 %v255, %v529
      %v531 = vpop.f32.mrf.mxu0
      %532 = vmatprep.mubr.bf16.mxu0 0
      %533 = vmatmul.mubr.bf16.gmra.mxu0 %v386
      %v534 = vpop.f32.mrf.mxu0
      %v535 = vadd.f32 %v255, %v534
      %v536 = vpop.f32.mrf.mxu0
      %v537 = vpop.f32.mrf.mxu0
      %v538 = vadd.f32 %v255, %v537
      %v539 = vpop.f32.mrf.mxu0
      %540 = vmatprep.mubr.bf16.mxu0 0
      %541 = vmatmul.mubr.bf16.gmra.mxu0 %v389
      %v542 = vpop.f32.mrf.mxu0
      %v543 = vadd.f32 %v255, %v542
      %v544 = vpop.f32.mrf.mxu0
      %v545 = vpop.f32.mrf.mxu0
      %v546 = vadd.f32 %v255, %v545
      %v547 = vpop.f32.mrf.mxu0
      %548 = vmatprep.mubr.bf16.mxu0 0
      %549 = vmatmul.mubr.bf16.gmra.mxu0 %v392
      %v550 = vpop.f32.mrf.mxu0
      %v551 = vadd.f32 %v255, %v550
      %v552 = vpop.f32.mrf.mxu0
      %v553 = vpop.f32.mrf.mxu0
      %v554 = vadd.f32 %v255, %v553
      %v555 = vpop.f32.mrf.mxu0
      %556 = vmatprep.mubr.bf16.mxu0 0
      %557 = vmatmul.mubr.bf16.gmra.mxu0 %v395
      %v558 = vpop.f32.mrf.mxu0
      %v559 = vadd.f32 %v255, %v558
      %v560 = vpop.f32.mrf.mxu0
      %v561 = vpop.f32.mrf.mxu0
      %v562 = vadd.f32 %v255, %v561
      %v563 = vpop.f32.mrf.mxu0
      %564 = vdwg.mxu0
      %v565 = vmax.f32 %v439, 0.0
      %v566 = vmax.f32 %v442, 0.0
      %v567 = vmax.f32 %v447, 0.0
      %v568 = vmax.f32 %v450, 0.0
      %v569 = vmax.f32 %v455, 0.0
      %v570 = vmax.f32 %v458, 0.0
      %v571 = vmax.f32 %v463, 0.0
      %v572 = vmax.f32 %v466, 0.0
      %v573 = vmax.f32 %v471, 0.0
      %v574 = vmax.f32 %v474, 0.0
      %v575 = vmax.f32 %v479, 0.0
      %v576 = vmax.f32 %v482, 0.0
      %v577 = vmax.f32 %v487, 0.0
      %v578 = vmax.f32 %v490, 0.0
      %v579 = vmax.f32 %v495, 0.0
      %v580 = vmax.f32 %v498, 0.0
      %v581 = vmax.f32 %v503, 0.0
      %v582 = vmax.f32 %v506, 0.0
      %v583 = vmax.f32 %v511, 0.0
      %v584 = vmax.f32 %v514, 0.0
      %v585 = vmax.f32 %v519, 0.0
      %v586 = vmax.f32 %v522, 0.0
      %v587 = vmax.f32 %v527, 0.0
      %v588 = vmax.f32 %v530, 0.0
      %v589 = vmax.f32 %v535, 0.0
      %v590 = vmax.f32 %v538, 0.0
      %v591 = vmax.f32 %v543, 0.0
      %v592 = vmax.f32 %v546, 0.0
      %v593 = vmax.f32 %v551, 0.0
      %v594 = vmax.f32 %v554, 0.0
      %v595 = vmax.f32 %v559, 0.0
      %v596 = vmax.f32 %v562, 0.0
      %v629 = vcombine.high %v565, %v565
      %v631 = vunpack.c.l.s4 1983009808
      %v632 = vunpack.c.0.s8 %v631
      %v633 = vlaneseq
      %v634 = vshrl.u32 %v633, 7
      %v635 = vsub.s32 %v632, %v634
      %v636 = vrot.slane %v565, %v635
      %v638 = vunpack.c.l.s4 1983009808
      %v639 = vunpack.c.0.s8 %v638
      %v640 = vlaneseq
      %v641 = vshrl.u32 %v640, 7
      %v642 = vsub.s32 %v639, %v641
      %v643 = vrot.slane %v629, %v642
      %v644 = vcombine.high %v636, %v636
      %v645 = vcombine.high %v643, %v643
      %v646 = vcombine.high %v566, %v566
      %v648 = vunpack.c.l.s4 1983009808
      %v649 = vunpack.c.0.s8 %v648
      %v650 = vlaneseq
      %v651 = vshrl.u32 %v650, 7
      %v652 = vsub.s32 %v649, %v651
      %v653 = vrot.slane %v566, %v652
      %v655 = vunpack.c.l.s4 1983009808
      %v656 = vunpack.c.0.s8 %v655
      %v657 = vlaneseq
      %v658 = vshrl.u32 %v657, 7
      %v659 = vsub.s32 %v656, %v658
      %v660 = vrot.slane %v646, %v659
      %v661 = vcombine.high %v653, %v653
      %v662 = vcombine.high %v660, %v660
      %v663 = vcombine.high %v567, %v567
      %v665 = vunpack.c.l.s4 1983009808
      %v666 = vunpack.c.0.s8 %v665
      %v667 = vlaneseq
      %v668 = vshrl.u32 %v667, 7
      %v669 = vsub.s32 %v666, %v668
      %v670 = vrot.slane %v567, %v669
      %v672 = vunpack.c.l.s4 1983009808
      %v673 = vunpack.c.0.s8 %v672
      %v674 = vlaneseq
      %v675 = vshrl.u32 %v674, 7
      %v676 = vsub.s32 %v673, %v675
      %v677 = vrot.slane %v663, %v676
      %v678 = vcombine.high %v670, %v670
      %v679 = vcombine.high %v677, %v677
      %v680 = vcombine.high %v568, %v568
      %v682 = vunpack.c.l.s4 1983009808
      %v683 = vunpack.c.0.s8 %v682
      %v684 = vlaneseq
      %v685 = vshrl.u32 %v684, 7
      %v686 = vsub.s32 %v683, %v685
      %v687 = vrot.slane %v568, %v686
      %v689 = vunpack.c.l.s4 1983009808
      %v690 = vunpack.c.0.s8 %v689
      %v691 = vlaneseq
      %v692 = vshrl.u32 %v691, 7
      %v693 = vsub.s32 %v690, %v692
      %v694 = vrot.slane %v680, %v693
      %v695 = vcombine.high %v687, %v687
      %v696 = vcombine.high %v694, %v694
      %v697 = vcombine.high %v569, %v569
      %v699 = vunpack.c.l.s4 1983009808
      %v700 = vunpack.c.0.s8 %v699
      %v701 = vlaneseq
      %v702 = vshrl.u32 %v701, 7
      %v703 = vsub.s32 %v700, %v702
      %v704 = vrot.slane %v569, %v703
      %v706 = vunpack.c.l.s4 1983009808
      %v707 = vunpack.c.0.s8 %v706
      %v708 = vlaneseq
      %v709 = vshrl.u32 %v708, 7
      %v710 = vsub.s32 %v707, %v709
      %v711 = vrot.slane %v697, %v710
      %v712 = vcombine.high %v704, %v704
      %v713 = vcombine.high %v711, %v711
      %v714 = vcombine.high %v570, %v570
      %v716 = vunpack.c.l.s4 1983009808
      %v717 = vunpack.c.0.s8 %v716
      %v718 = vlaneseq
      %v719 = vshrl.u32 %v718, 7
      %v720 = vsub.s32 %v717, %v719
      %v721 = vrot.slane %v570, %v720
      %v723 = vunpack.c.l.s4 1983009808
      %v724 = vunpack.c.0.s8 %v723
      %v725 = vlaneseq
      %v726 = vshrl.u32 %v725, 7
      %v727 = vsub.s32 %v724, %v726
      %v728 = vrot.slane %v714, %v727
      %v729 = vcombine.high %v721, %v721
      %v730 = vcombine.high %v728, %v728
      %v731 = vcombine.high %v571, %v571
      %v733 = vunpack.c.l.s4 1983009808
      %v734 = vunpack.c.0.s8 %v733
      %v735 = vlaneseq
      %v736 = vshrl.u32 %v735, 7
      %v737 = vsub.s32 %v734, %v736
      %v738 = vrot.slane %v571, %v737
      %v740 = vunpack.c.l.s4 1983009808
      %v741 = vunpack.c.0.s8 %v740
      %v742 = vlaneseq
      %v743 = vshrl.u32 %v742, 7
      %v744 = vsub.s32 %v741, %v743
      %v745 = vrot.slane %v731, %v744
      %v746 = vcombine.high %v738, %v738
      %v747 = vcombine.high %v745, %v745
      %v748 = vcombine.high %v572, %v572
      %v750 = vunpack.c.l.s4 1983009808
      %v751 = vunpack.c.0.s8 %v750
      %v752 = vlaneseq
      %v753 = vshrl.u32 %v752, 7
      %v754 = vsub.s32 %v751, %v753
      %v755 = vrot.slane %v572, %v754
      %v757 = vunpack.c.l.s4 1983009808
      %v758 = vunpack.c.0.s8 %v757
      %v759 = vlaneseq
      %v760 = vshrl.u32 %v759, 7
      %v761 = vsub.s32 %v758, %v760
      %v762 = vrot.slane %v748, %v761
      %v763 = vcombine.high %v755, %v755
      %v764 = vcombine.high %v762, %v762
      %v765 = vcombine.high %v573, %v573
      %v767 = vunpack.c.l.s4 1983009808
      %v768 = vunpack.c.0.s8 %v767
      %v769 = vlaneseq
      %v770 = vshrl.u32 %v769, 7
      %v771 = vsub.s32 %v768, %v770
      %v772 = vrot.slane %v573, %v771
      %v774 = vunpack.c.l.s4 1983009808
      %v775 = vunpack.c.0.s8 %v774
      %v776 = vlaneseq
      %v777 = vshrl.u32 %v776, 7
      %v778 = vsub.s32 %v775, %v777
      %v779 = vrot.slane %v765, %v778
      %v780 = vcombine.high %v772, %v772
      %v781 = vcombine.high %v779, %v779
      %v782 = vcombine.high %v574, %v574
      %v784 = vunpack.c.l.s4 1983009808
      %v785 = vunpack.c.0.s8 %v784
      %v786 = vlaneseq
      %v787 = vshrl.u32 %v786, 7
      %v788 = vsub.s32 %v785, %v787
      %v789 = vrot.slane %v574, %v788
      %v791 = vunpack.c.l.s4 1983009808
      %v792 = vunpack.c.0.s8 %v791
      %v793 = vlaneseq
      %v794 = vshrl.u32 %v793, 7
      %v795 = vsub.s32 %v792, %v794
      %v796 = vrot.slane %v782, %v795
      %v797 = vcombine.high %v789, %v789
      %v798 = vcombine.high %v796, %v796
      %v799 = vcombine.high %v575, %v575
      %v801 = vunpack.c.l.s4 1983009808
      %v802 = vunpack.c.0.s8 %v801
      %v803 = vlaneseq
      %v804 = vshrl.u32 %v803, 7
      %v805 = vsub.s32 %v802, %v804
      %v806 = vrot.slane %v575, %v805
      %v808 = vunpack.c.l.s4 1983009808
      %v809 = vunpack.c.0.s8 %v808
      %v810 = vlaneseq
      %v811 = vshrl.u32 %v810, 7
      %v812 = vsub.s32 %v809, %v811
      %v813 = vrot.slane %v799, %v812
      %v814 = vcombine.high %v806, %v806
      %v815 = vcombine.high %v813, %v813
      %v816 = vcombine.high %v576, %v576
      %v818 = vunpack.c.l.s4 1983009808
      %v819 = vunpack.c.0.s8 %v818
      %v820 = vlaneseq
      %v821 = vshrl.u32 %v820, 7
      %v822 = vsub.s32 %v819, %v821
      %v823 = vrot.slane %v576, %v822
      %v825 = vunpack.c.l.s4 1983009808
      %v826 = vunpack.c.0.s8 %v825
      %v827 = vlaneseq
      %v828 = vshrl.u32 %v827, 7
      %v829 = vsub.s32 %v826, %v828
      %v830 = vrot.slane %v816, %v829
      %v831 = vcombine.high %v823, %v823
      %v832 = vcombine.high %v830, %v830
      %v833 = vcombine.high %v577, %v577
      %v835 = vunpack.c.l.s4 1983009808
      %v836 = vunpack.c.0.s8 %v835
      %v837 = vlaneseq
      %v838 = vshrl.u32 %v837, 7
      %v839 = vsub.s32 %v836, %v838
      %v840 = vrot.slane %v577, %v839
      %v842 = vunpack.c.l.s4 1983009808
      %v843 = vunpack.c.0.s8 %v842
      %v844 = vlaneseq
      %v845 = vshrl.u32 %v844, 7
      %v846 = vsub.s32 %v843, %v845
      %v847 = vrot.slane %v833, %v846
      %v848 = vcombine.high %v840, %v840
      %v849 = vcombine.high %v847, %v847
      %v850 = vcombine.high %v578, %v578
      %v852 = vunpack.c.l.s4 1983009808
      %v853 = vunpack.c.0.s8 %v852
      %v854 = vlaneseq
      %v855 = vshrl.u32 %v854, 7
      %v856 = vsub.s32 %v853, %v855
      %v857 = vrot.slane %v578, %v856
      %v859 = vunpack.c.l.s4 1983009808
      %v860 = vunpack.c.0.s8 %v859
      %v861 = vlaneseq
      %v862 = vshrl.u32 %v861, 7
      %v863 = vsub.s32 %v860, %v862
      %v864 = vrot.slane %v850, %v863
      %v865 = vcombine.high %v857, %v857
      %v866 = vcombine.high %v864, %v864
      %v867 = vcombine.high %v579, %v579
      %v869 = vunpack.c.l.s4 1983009808
      %v870 = vunpack.c.0.s8 %v869
      %v871 = vlaneseq
      %v872 = vshrl.u32 %v871, 7
      %v873 = vsub.s32 %v870, %v872
      %v874 = vrot.slane %v579, %v873
      %v876 = vunpack.c.l.s4 1983009808
      %v877 = vunpack.c.0.s8 %v876
      %v878 = vlaneseq
      %v879 = vshrl.u32 %v878, 7
      %v880 = vsub.s32 %v877, %v879
      %v881 = vrot.slane %v867, %v880
      %v882 = vcombine.high %v874, %v874
      %v883 = vcombine.high %v881, %v881
      %v884 = vcombine.high %v580, %v580
      %v886 = vunpack.c.l.s4 1983009808
      %v887 = vunpack.c.0.s8 %v886
      %v888 = vlaneseq
      %v889 = vshrl.u32 %v888, 7
      %v890 = vsub.s32 %v887, %v889
      %v891 = vrot.slane %v580, %v890
      %v893 = vunpack.c.l.s4 1983009808
      %v894 = vunpack.c.0.s8 %v893
      %v895 = vlaneseq
      %v896 = vshrl.u32 %v895, 7
      %v897 = vsub.s32 %v894, %v896
      %v898 = vrot.slane %v884, %v897
      %v899 = vcombine.high %v891, %v891
      %v900 = vcombine.high %v898, %v898
      %v901 = vcombine.high %v581, %v581
      %v903 = vunpack.c.l.s4 1983009808
      %v904 = vunpack.c.0.s8 %v903
      %v905 = vlaneseq
      %v906 = vshrl.u32 %v905, 7
      %v907 = vsub.s32 %v904, %v906
      %v908 = vrot.slane %v581, %v907
      %v910 = vunpack.c.l.s4 1983009808
      %v911 = vunpack.c.0.s8 %v910
      %v912 = vlaneseq
      %v913 = vshrl.u32 %v912, 7
      %v914 = vsub.s32 %v911, %v913
      %v915 = vrot.slane %v901, %v914
      %v916 = vcombine.high %v908, %v908
      %v917 = vcombine.high %v915, %v915
      %v918 = vcombine.high %v582, %v582
      %v920 = vunpack.c.l.s4 1983009808
      %v921 = vunpack.c.0.s8 %v920
      %v922 = vlaneseq
      %v923 = vshrl.u32 %v922, 7
      %v924 = vsub.s32 %v921, %v923
      %v925 = vrot.slane %v582, %v924
      %v927 = vunpack.c.l.s4 1983009808
      %v928 = vunpack.c.0.s8 %v927
      %v929 = vlaneseq
      %v930 = vshrl.u32 %v929, 7
      %v931 = vsub.s32 %v928, %v930
      %v932 = vrot.slane %v918, %v931
      %v933 = vcombine.high %v925, %v925
      %v934 = vcombine.high %v932, %v932
      %v935 = vcombine.high %v583, %v583
      %v937 = vunpack.c.l.s4 1983009808
      %v938 = vunpack.c.0.s8 %v937
      %v939 = vlaneseq
      %v940 = vshrl.u32 %v939, 7
      %v941 = vsub.s32 %v938, %v940
      %v942 = vrot.slane %v583, %v941
      %v944 = vunpack.c.l.s4 1983009808
      %v945 = vunpack.c.0.s8 %v944
      %v946 = vlaneseq
      %v947 = vshrl.u32 %v946, 7
      %v948 = vsub.s32 %v945, %v947
      %v949 = vrot.slane %v935, %v948
      %v950 = vcombine.high %v942, %v942
      %v951 = vcombine.high %v949, %v949
      %v952 = vcombine.high %v584, %v584
      %v954 = vunpack.c.l.s4 1983009808
      %v955 = vunpack.c.0.s8 %v954
      %v956 = vlaneseq
      %v957 = vshrl.u32 %v956, 7
      %v958 = vsub.s32 %v955, %v957
      %v959 = vrot.slane %v584, %v958
      %v961 = vunpack.c.l.s4 1983009808
      %v962 = vunpack.c.0.s8 %v961
      %v963 = vlaneseq
      %v964 = vshrl.u32 %v963, 7
      %v965 = vsub.s32 %v962, %v964
      %v966 = vrot.slane %v952, %v965
      %v967 = vcombine.high %v959, %v959
      %v968 = vcombine.high %v966, %v966
      %v969 = vcombine.high %v585, %v585
      %v971 = vunpack.c.l.s4 1983009808
      %v972 = vunpack.c.0.s8 %v971
      %v973 = vlaneseq
      %v974 = vshrl.u32 %v973, 7
      %v975 = vsub.s32 %v972, %v974
      %v976 = vrot.slane %v585, %v975
      %v978 = vunpack.c.l.s4 1983009808
      %v979 = vunpack.c.0.s8 %v978
      %v980 = vlaneseq
      %v981 = vshrl.u32 %v980, 7
      %v982 = vsub.s32 %v979, %v981
      %v983 = vrot.slane %v969, %v982
      %v984 = vcombine.high %v976, %v976
      %v985 = vcombine.high %v983, %v983
      %v986 = vcombine.high %v586, %v586
      %v988 = vunpack.c.l.s4 1983009808
      %v989 = vunpack.c.0.s8 %v988
      %v990 = vlaneseq
      %v991 = vshrl.u32 %v990, 7
      %v992 = vsub.s32 %v989, %v991
      %v993 = vrot.slane %v586, %v992
      %v995 = vunpack.c.l.s4 1983009808
      %v996 = vunpack.c.0.s8 %v995
      %v997 = vlaneseq
      %v998 = vshrl.u32 %v997, 7
      %v999 = vsub.s32 %v996, %v998
      %v1000 = vrot.slane %v986, %v999
      %v1001 = vcombine.high %v993, %v993
      %v1002 = vcombine.high %v1000, %v1000
      %v1003 = vcombine.high %v587, %v587
      %v1005 = vunpack.c.l.s4 1983009808
      %v1006 = vunpack.c.0.s8 %v1005
      %v1007 = vlaneseq
      %v1008 = vshrl.u32 %v1007, 7
      %v1009 = vsub.s32 %v1006, %v1008
      %v1010 = vrot.slane %v587, %v1009
      %v1012 = vunpack.c.l.s4 1983009808
      %v1013 = vunpack.c.0.s8 %v1012
      %v1014 = vlaneseq
      %v1015 = vshrl.u32 %v1014, 7
      %v1016 = vsub.s32 %v1013, %v1015
      %v1017 = vrot.slane %v1003, %v1016
      %v1018 = vcombine.high %v1010, %v1010
      %v1019 = vcombine.high %v1017, %v1017
      %v1020 = vcombine.high %v588, %v588
      %v1022 = vunpack.c.l.s4 1983009808
      %v1023 = vunpack.c.0.s8 %v1022
      %v1024 = vlaneseq
      %v1025 = vshrl.u32 %v1024, 7
      %v1026 = vsub.s32 %v1023, %v1025
      %v1027 = vrot.slane %v588, %v1026
      %v1029 = vunpack.c.l.s4 1983009808
      %v1030 = vunpack.c.0.s8 %v1029
      %v1031 = vlaneseq
      %v1032 = vshrl.u32 %v1031, 7
      %v1033 = vsub.s32 %v1030, %v1032
      %v1034 = vrot.slane %v1020, %v1033
      %v1035 = vcombine.high %v1027, %v1027
      %v1036 = vcombine.high %v1034, %v1034
      %v1037 = vcombine.high %v589, %v589
      %v1039 = vunpack.c.l.s4 1983009808
      %v1040 = vunpack.c.0.s8 %v1039
      %v1041 = vlaneseq
      %v1042 = vshrl.u32 %v1041, 7
      %v1043 = vsub.s32 %v1040, %v1042
      %v1044 = vrot.slane %v589, %v1043
      %v1046 = vunpack.c.l.s4 1983009808
      %v1047 = vunpack.c.0.s8 %v1046
      %v1048 = vlaneseq
      %v1049 = vshrl.u32 %v1048, 7
      %v1050 = vsub.s32 %v1047, %v1049
      %v1051 = vrot.slane %v1037, %v1050
      %v1052 = vcombine.high %v1044, %v1044
      %v1053 = vcombine.high %v1051, %v1051
      %v1054 = vcombine.high %v590, %v590
      %v1056 = vunpack.c.l.s4 1983009808
      %v1057 = vunpack.c.0.s8 %v1056
      %v1058 = vlaneseq
      %v1059 = vshrl.u32 %v1058, 7
      %v1060 = vsub.s32 %v1057, %v1059
      %v1061 = vrot.slane %v590, %v1060
      %v1063 = vunpack.c.l.s4 1983009808
      %v1064 = vunpack.c.0.s8 %v1063
      %v1065 = vlaneseq
      %v1066 = vshrl.u32 %v1065, 7
      %v1067 = vsub.s32 %v1064, %v1066
      %v1068 = vrot.slane %v1054, %v1067
      %v1069 = vcombine.high %v1061, %v1061
      %v1070 = vcombine.high %v1068, %v1068
      %v1071 = vcombine.high %v591, %v591
      %v1073 = vunpack.c.l.s4 1983009808
      %v1074 = vunpack.c.0.s8 %v1073
      %v1075 = vlaneseq
      %v1076 = vshrl.u32 %v1075, 7
      %v1077 = vsub.s32 %v1074, %v1076
      %v1078 = vrot.slane %v591, %v1077
      %v1080 = vunpack.c.l.s4 1983009808
      %v1081 = vunpack.c.0.s8 %v1080
      %v1082 = vlaneseq
      %v1083 = vshrl.u32 %v1082, 7
      %v1084 = vsub.s32 %v1081, %v1083
      %v1085 = vrot.slane %v1071, %v1084
      %v1086 = vcombine.high %v1078, %v1078
      %v1087 = vcombine.high %v1085, %v1085
      %v1088 = vcombine.high %v592, %v592
      %v1090 = vunpack.c.l.s4 1983009808
      %v1091 = vunpack.c.0.s8 %v1090
      %v1092 = vlaneseq
      %v1093 = vshrl.u32 %v1092, 7
      %v1094 = vsub.s32 %v1091, %v1093
      %v1095 = vrot.slane %v592, %v1094
      %v1097 = vunpack.c.l.s4 1983009808
      %v1098 = vunpack.c.0.s8 %v1097
      %v1099 = vlaneseq
      %v1100 = vshrl.u32 %v1099, 7
      %v1101 = vsub.s32 %v1098, %v1100
      %v1102 = vrot.slane %v1088, %v1101
      %v1103 = vcombine.high %v1095, %v1095
      %v1104 = vcombine.high %v1102, %v1102
      %v1105 = vcombine.high %v593, %v593
      %v1107 = vunpack.c.l.s4 1983009808
      %v1108 = vunpack.c.0.s8 %v1107
      %v1109 = vlaneseq
      %v1110 = vshrl.u32 %v1109, 7
      %v1111 = vsub.s32 %v1108, %v1110
      %v1112 = vrot.slane %v593, %v1111
      %v1114 = vunpack.c.l.s4 1983009808
      %v1115 = vunpack.c.0.s8 %v1114
      %v1116 = vlaneseq
      %v1117 = vshrl.u32 %v1116, 7
      %v1118 = vsub.s32 %v1115, %v1117
      %v1119 = vrot.slane %v1105, %v1118
      %v1120 = vcombine.high %v1112, %v1112
      %v1121 = vcombine.high %v1119, %v1119
      %v1122 = vcombine.high %v594, %v594
      %v1124 = vunpack.c.l.s4 1983009808
      %v1125 = vunpack.c.0.s8 %v1124
      %v1126 = vlaneseq
      %v1127 = vshrl.u32 %v1126, 7
      %v1128 = vsub.s32 %v1125, %v1127
      %v1129 = vrot.slane %v594, %v1128
      %v1131 = vunpack.c.l.s4 1983009808
      %v1132 = vunpack.c.0.s8 %v1131
      %v1133 = vlaneseq
      %v1134 = vshrl.u32 %v1133, 7
      %v1135 = vsub.s32 %v1132, %v1134
      %v1136 = vrot.slane %v1122, %v1135
      %v1137 = vcombine.high %v1129, %v1129
      %v1138 = vcombine.high %v1136, %v1136
      %v1139 = vcombine.high %v595, %v595
      %v1141 = vunpack.c.l.s4 1983009808
      %v1142 = vunpack.c.0.s8 %v1141
      %v1143 = vlaneseq
      %v1144 = vshrl.u32 %v1143, 7
      %v1145 = vsub.s32 %v1142, %v1144
      %v1146 = vrot.slane %v595, %v1145
      %v1148 = vunpack.c.l.s4 1983009808
      %v1149 = vunpack.c.0.s8 %v1148
      %v1150 = vlaneseq
      %v1151 = vshrl.u32 %v1150, 7
      %v1152 = vsub.s32 %v1149, %v1151
      %v1153 = vrot.slane %v1139, %v1152
      %v1154 = vcombine.high %v1146, %v1146
      %v1155 = vcombine.high %v1153, %v1153
      %v1156 = vcombine.high %v596, %v596
      %v1158 = vunpack.c.l.s4 1983009808
      %v1159 = vunpack.c.0.s8 %v1158
      %v1160 = vlaneseq
      %v1161 = vshrl.u32 %v1160, 7
      %v1162 = vsub.s32 %v1159, %v1161
      %v1163 = vrot.slane %v596, %v1162
      %v1165 = vunpack.c.l.s4 1983009808
      %v1166 = vunpack.c.0.s8 %v1165
      %v1167 = vlaneseq
      %v1168 = vshrl.u32 %v1167, 7
      %v1169 = vsub.s32 %v1166, %v1168
      %v1170 = vrot.slane %v1156, %v1169
      %v1171 = vcombine.high %v1163, %v1163
      %v1172 = vcombine.high %v1170, %v1170
      %v1301 = vmax.f32 %v636, %v670
      %v1302 = vmax.f32 %v644, %v678
      %v1303 = vmax.f32 %v643, %v677
      %v1304 = vmax.f32 %v645, %v679
      %v1305 = vmax.f32 %v653, %v687
      %v1306 = vmax.f32 %v661, %v695
      %v1307 = vmax.f32 %v660, %v694
      %v1308 = vmax.f32 %v662, %v696
      %v1309 = vmax.f32 %v704, %v738
      %v1310 = vmax.f32 %v712, %v746
      %v1311 = vmax.f32 %v711, %v745
      %v1312 = vmax.f32 %v713, %v747
      %v1313 = vmax.f32 %v721, %v755
      %v1314 = vmax.f32 %v729, %v763
      %v1315 = vmax.f32 %v728, %v762
      %v1316 = vmax.f32 %v730, %v764
      %v1317 = vmax.f32 %v772, %v806
      %v1318 = vmax.f32 %v780, %v814
      %v1319 = vmax.f32 %v779, %v813
      %v1320 = vmax.f32 %v781, %v815
      %v1321 = vmax.f32 %v789, %v823
      %v1322 = vmax.f32 %v797, %v831
      %v1323 = vmax.f32 %v796, %v830
      %v1324 = vmax.f32 %v798, %v832
      %v1325 = vmax.f32 %v840, %v874
      %v1326 = vmax.f32 %v848, %v882
      %v1327 = vmax.f32 %v847, %v881
      %v1328 = vmax.f32 %v849, %v883
      %v1329 = vmax.f32 %v857, %v891
      %v1330 = vmax.f32 %v865, %v899
      %v1331 = vmax.f32 %v864, %v898
      %v1332 = vmax.f32 %v866, %v900
      %v1333 = vmax.f32 %v908, %v942
      %v1334 = vmax.f32 %v916, %v950
      %v1335 = vmax.f32 %v915, %v949
      %v1336 = vmax.f32 %v917, %v951
      %v1337 = vmax.f32 %v925, %v959
      %v1338 = vmax.f32 %v933, %v967
      %v1339 = vmax.f32 %v932, %v966
      %v1340 = vmax.f32 %v934, %v968
      %v1341 = vmax.f32 %v976, %v1010
      %v1342 = vmax.f32 %v984, %v1018
      %v1343 = vmax.f32 %v983, %v1017
      %v1344 = vmax.f32 %v985, %v1019
      %v1345 = vmax.f32 %v993, %v1027
      %v1346 = vmax.f32 %v1001, %v1035
      %v1347 = vmax.f32 %v1000, %v1034
      %v1348 = vmax.f32 %v1002, %v1036
      %v1349 = vmax.f32 %v1044, %v1078
      %v1350 = vmax.f32 %v1052, %v1086
      %v1351 = vmax.f32 %v1051, %v1085
      %v1352 = vmax.f32 %v1053, %v1087
      %v1353 = vmax.f32 %v1061, %v1095
      %v1354 = vmax.f32 %v1069, %v1103
      %v1355 = vmax.f32 %v1068, %v1102
      %v1356 = vmax.f32 %v1070, %v1104
      %v1357 = vmax.f32 %v1112, %v1146
      %v1358 = vmax.f32 %v1120, %v1154
      %v1359 = vmax.f32 %v1119, %v1153
      %v1360 = vmax.f32 %v1121, %v1155
      %v1361 = vmax.f32 %v1129, %v1163
      %v1362 = vmax.f32 %v1137, %v1171
      %v1363 = vmax.f32 %v1136, %v1170
      %v1364 = vmax.f32 %v1138, %v1172
      %v1429 = vrot.slane %v1301, 7
      %v1430 = vrot.slane %v1429, 2
      %v1431 = vrot.slane %v1302, 7
      %v1432 = vrot.slane %v1431, 2
      %v1433 = vrot.slane %v1303, 7
      %v1434 = vrot.slane %v1433, 2
      %v1435 = vrot.slane %v1304, 7
      %v1436 = vrot.slane %v1435, 2
      %v1437 = vrot.slane %v1305, 7
      %v1438 = vrot.slane %v1437, 2
      %v1439 = vrot.slane %v1306, 7
      %v1440 = vrot.slane %v1439, 2
      %v1441 = vrot.slane %v1307, 7
      %v1442 = vrot.slane %v1441, 2
      %v1443 = vrot.slane %v1308, 7
      %v1444 = vrot.slane %v1443, 2
      %v1445 = vrot.slane %v1309, 7
      %v1446 = vrot.slane %v1445, 2
      %v1447 = vrot.slane %v1310, 7
      %v1448 = vrot.slane %v1447, 2
      %v1449 = vrot.slane %v1311, 7
      %v1450 = vrot.slane %v1449, 2
      %v1451 = vrot.slane %v1312, 7
      %v1452 = vrot.slane %v1451, 2
      %v1453 = vrot.slane %v1313, 7
      %v1454 = vrot.slane %v1453, 2
      %v1455 = vrot.slane %v1314, 7
      %v1456 = vrot.slane %v1455, 2
      %v1457 = vrot.slane %v1315, 7
      %v1458 = vrot.slane %v1457, 2
      %v1459 = vrot.slane %v1316, 7
      %v1460 = vrot.slane %v1459, 2
      %v1461 = vrot.slane %v1317, 7
      %v1462 = vrot.slane %v1461, 2
      %v1463 = vrot.slane %v1318, 7
      %v1464 = vrot.slane %v1463, 2
      %v1465 = vrot.slane %v1319, 7
      %v1466 = vrot.slane %v1465, 2
      %v1467 = vrot.slane %v1320, 7
      %v1468 = vrot.slane %v1467, 2
      %v1469 = vrot.slane %v1321, 7
      %v1470 = vrot.slane %v1469, 2
      %v1471 = vrot.slane %v1322, 7
      %v1472 = vrot.slane %v1471, 2
      %v1473 = vrot.slane %v1323, 7
      %v1474 = vrot.slane %v1473, 2
      %v1475 = vrot.slane %v1324, 7
      %v1476 = vrot.slane %v1475, 2
      %v1477 = vrot.slane %v1325, 7
      %v1478 = vrot.slane %v1477, 2
      %v1479 = vrot.slane %v1326, 7
      %v1480 = vrot.slane %v1479, 2
      %v1481 = vrot.slane %v1327, 7
      %v1482 = vrot.slane %v1481, 2
      %v1483 = vrot.slane %v1328, 7
      %v1484 = vrot.slane %v1483, 2
      %v1485 = vrot.slane %v1329, 7
      %v1486 = vrot.slane %v1485, 2
      %v1487 = vrot.slane %v1330, 7
      %v1488 = vrot.slane %v1487, 2
      %v1489 = vrot.slane %v1331, 7
      %v1490 = vrot.slane %v1489, 2
      %v1491 = vrot.slane %v1332, 7
      %v1492 = vrot.slane %v1491, 2
      %v1493 = vrot.slane %v1333, 7
      %v1494 = vrot.slane %v1493, 2
      %v1495 = vrot.slane %v1334, 7
      %v1496 = vrot.slane %v1495, 2
      %v1497 = vrot.slane %v1335, 7
      %v1498 = vrot.slane %v1497, 2
      %v1499 = vrot.slane %v1336, 7
      %v1500 = vrot.slane %v1499, 2
      %v1501 = vrot.slane %v1337, 7
      %v1502 = vrot.slane %v1501, 2
      %v1503 = vrot.slane %v1338, 7
      %v1504 = vrot.slane %v1503, 2
      %v1505 = vrot.slane %v1339, 7
      %v1506 = vrot.slane %v1505, 2
      %v1507 = vrot.slane %v1340, 7
      %v1508 = vrot.slane %v1507, 2
      %v1509 = vrot.slane %v1341, 7
      %v1510 = vrot.slane %v1509, 2
      %v1511 = vrot.slane %v1342, 7
      %v1512 = vrot.slane %v1511, 2
      %v1513 = vrot.slane %v1343, 7
      %v1514 = vrot.slane %v1513, 2
      %v1515 = vrot.slane %v1344, 7
      %v1516 = vrot.slane %v1515, 2
      %v1517 = vrot.slane %v1345, 7
      %v1518 = vrot.slane %v1517, 2
      %v1519 = vrot.slane %v1346, 7
      %v1520 = vrot.slane %v1519, 2
      %v1521 = vrot.slane %v1347, 7
      %v1522 = vrot.slane %v1521, 2
      %v1523 = vrot.slane %v1348, 7
      %v1524 = vrot.slane %v1523, 2
      %v1525 = vrot.slane %v1349, 7
      %v1526 = vrot.slane %v1525, 2
      %v1527 = vrot.slane %v1350, 7
      %v1528 = vrot.slane %v1527, 2
      %v1529 = vrot.slane %v1351, 7
      %v1530 = vrot.slane %v1529, 2
      %v1531 = vrot.slane %v1352, 7
      %v1532 = vrot.slane %v1531, 2
      %v1533 = vrot.slane %v1353, 7
      %v1534 = vrot.slane %v1533, 2
      %v1535 = vrot.slane %v1354, 7
      %v1536 = vrot.slane %v1535, 2
      %v1537 = vrot.slane %v1355, 7
      %v1538 = vrot.slane %v1537, 2
      %v1539 = vrot.slane %v1356, 7
      %v1540 = vrot.slane %v1539, 2
      %v1541 = vrot.slane %v1357, 7
      %v1542 = vrot.slane %v1541, 2
      %v1543 = vrot.slane %v1358, 7
      %v1544 = vrot.slane %v1543, 2
      %v1545 = vrot.slane %v1359, 7
      %v1546 = vrot.slane %v1545, 2
      %v1547 = vrot.slane %v1360, 7
      %v1548 = vrot.slane %v1547, 2
      %v1549 = vrot.slane %v1361, 7
      %v1550 = vrot.slane %v1549, 2
      %v1551 = vrot.slane %v1362, 7
      %v1552 = vrot.slane %v1551, 2
      %v1553 = vrot.slane %v1363, 7
      %v1554 = vrot.slane %v1553, 2
      %v1555 = vrot.slane %v1364, 7
      %v1556 = vrot.slane %v1555, 2
      %v1621 = vmax.f32 %v1301, %v1430
      %v1622 = vmax.f32 %v1302, %v1432
      %v1623 = vmax.f32 %v1303, %v1434
      %v1624 = vmax.f32 %v1304, %v1436
      %v1625 = vmax.f32 %v1305, %v1438
      %v1626 = vmax.f32 %v1306, %v1440
      %v1627 = vmax.f32 %v1307, %v1442
      %v1628 = vmax.f32 %v1308, %v1444
      %v1629 = vmax.f32 %v1309, %v1446
      %v1630 = vmax.f32 %v1310, %v1448
      %v1631 = vmax.f32 %v1311, %v1450
      %v1632 = vmax.f32 %v1312, %v1452
      %v1633 = vmax.f32 %v1313, %v1454
      %v1634 = vmax.f32 %v1314, %v1456
      %v1635 = vmax.f32 %v1315, %v1458
      %v1636 = vmax.f32 %v1316, %v1460
      %v1637 = vmax.f32 %v1317, %v1462
      %v1638 = vmax.f32 %v1318, %v1464
      %v1639 = vmax.f32 %v1319, %v1466
      %v1640 = vmax.f32 %v1320, %v1468
      %v1641 = vmax.f32 %v1321, %v1470
      %v1642 = vmax.f32 %v1322, %v1472
      %v1643 = vmax.f32 %v1323, %v1474
      %v1644 = vmax.f32 %v1324, %v1476
      %v1645 = vmax.f32 %v1325, %v1478
      %v1646 = vmax.f32 %v1326, %v1480
      %v1647 = vmax.f32 %v1327, %v1482
      %v1648 = vmax.f32 %v1328, %v1484
      %v1649 = vmax.f32 %v1329, %v1486
      %v1650 = vmax.f32 %v1330, %v1488
      %v1651 = vmax.f32 %v1331, %v1490
      %v1652 = vmax.f32 %v1332, %v1492
      %v1653 = vmax.f32 %v1333, %v1494
      %v1654 = vmax.f32 %v1334, %v1496
      %v1655 = vmax.f32 %v1335, %v1498
      %v1656 = vmax.f32 %v1336, %v1500
      %v1657 = vmax.f32 %v1337, %v1502
      %v1658 = vmax.f32 %v1338, %v1504
      %v1659 = vmax.f32 %v1339, %v1506
      %v1660 = vmax.f32 %v1340, %v1508
      %v1661 = vmax.f32 %v1341, %v1510
      %v1662 = vmax.f32 %v1342, %v1512
      %v1663 = vmax.f32 %v1343, %v1514
      %v1664 = vmax.f32 %v1344, %v1516
      %v1665 = vmax.f32 %v1345, %v1518
      %v1666 = vmax.f32 %v1346, %v1520
      %v1667 = vmax.f32 %v1347, %v1522
      %v1668 = vmax.f32 %v1348, %v1524
      %v1669 = vmax.f32 %v1349, %v1526
      %v1670 = vmax.f32 %v1350, %v1528
      %v1671 = vmax.f32 %v1351, %v1530
      %v1672 = vmax.f32 %v1352, %v1532
      %v1673 = vmax.f32 %v1353, %v1534
      %v1674 = vmax.f32 %v1354, %v1536
      %v1675 = vmax.f32 %v1355, %v1538
      %v1676 = vmax.f32 %v1356, %v1540
      %v1677 = vmax.f32 %v1357, %v1542
      %v1678 = vmax.f32 %v1358, %v1544
      %v1679 = vmax.f32 %v1359, %v1546
      %v1680 = vmax.f32 %v1360, %v1548
      %v1681 = vmax.f32 %v1361, %v1550
      %v1682 = vmax.f32 %v1362, %v1552
      %v1683 = vmax.f32 %v1363, %v1554
      %v1684 = vmax.f32 %v1364, %v1556
      %v1685 = vpack.c.bf16 %v1621, %v1621
      %v1686 = vpack.c.bf16 %v1622, %v1622
      %v1687 = vpack.c.bf16 %v1623, %v1623
      %v1688 = vpack.c.bf16 %v1624, %v1624
      %v1689 = vpack.c.bf16 %v1625, %v1625
      %v1690 = vpack.c.bf16 %v1626, %v1626
      %v1691 = vpack.c.bf16 %v1627, %v1627
      %v1692 = vpack.c.bf16 %v1628, %v1628
      %v1693 = vpack.c.bf16 %v1629, %v1629
      %v1694 = vpack.c.bf16 %v1630, %v1630
      %v1695 = vpack.c.bf16 %v1631, %v1631
      %v1696 = vpack.c.bf16 %v1632, %v1632
      %v1697 = vpack.c.bf16 %v1633, %v1633
      %v1698 = vpack.c.bf16 %v1634, %v1634
      %v1699 = vpack.c.bf16 %v1635, %v1635
      %v1700 = vpack.c.bf16 %v1636, %v1636
      %v1701 = vpack.c.bf16 %v1637, %v1637
      %v1702 = vpack.c.bf16 %v1638, %v1638
      %v1703 = vpack.c.bf16 %v1639, %v1639
      %v1704 = vpack.c.bf16 %v1640, %v1640
      %v1705 = vpack.c.bf16 %v1641, %v1641
      %v1706 = vpack.c.bf16 %v1642, %v1642
      %v1707 = vpack.c.bf16 %v1643, %v1643
      %v1708 = vpack.c.bf16 %v1644, %v1644
      %v1709 = vpack.c.bf16 %v1645, %v1645
      %v1710 = vpack.c.bf16 %v1646, %v1646
      %v1711 = vpack.c.bf16 %v1647, %v1647
      %v1712 = vpack.c.bf16 %v1648, %v1648
      %v1713 = vpack.c.bf16 %v1649, %v1649
      %v1714 = vpack.c.bf16 %v1650, %v1650
      %v1715 = vpack.c.bf16 %v1651, %v1651
      %v1716 = vpack.c.bf16 %v1652, %v1652
      %v1717 = vpack.c.bf16 %v1653, %v1653
      %v1718 = vpack.c.bf16 %v1654, %v1654
      %v1719 = vpack.c.bf16 %v1655, %v1655
      %v1720 = vpack.c.bf16 %v1656, %v1656
      %v1721 = vpack.c.bf16 %v1657, %v1657
      %v1722 = vpack.c.bf16 %v1658, %v1658
      %v1723 = vpack.c.bf16 %v1659, %v1659
      %v1724 = vpack.c.bf16 %v1660, %v1660
      %v1725 = vpack.c.bf16 %v1661, %v1661
      %v1726 = vpack.c.bf16 %v1662, %v1662
      %v1727 = vpack.c.bf16 %v1663, %v1663
      %v1728 = vpack.c.bf16 %v1664, %v1664
      %v1729 = vpack.c.bf16 %v1665, %v1665
      %v1730 = vpack.c.bf16 %v1666, %v1666
      %v1731 = vpack.c.bf16 %v1667, %v1667
      %v1732 = vpack.c.bf16 %v1668, %v1668
      %v1733 = vpack.c.bf16 %v1669, %v1669
      %v1734 = vpack.c.bf16 %v1670, %v1670
      %v1735 = vpack.c.bf16 %v1671, %v1671
      %v1736 = vpack.c.bf16 %v1672, %v1672
      %v1737 = vpack.c.bf16 %v1673, %v1673
      %v1738 = vpack.c.bf16 %v1674, %v1674
      %v1739 = vpack.c.bf16 %v1675, %v1675
      %v1740 = vpack.c.bf16 %v1676, %v1676
      %v1741 = vpack.c.bf16 %v1677, %v1677
      %v1742 = vpack.c.bf16 %v1678, %v1678
      %v1743 = vpack.c.bf16 %v1679, %v1679
      %v1744 = vpack.c.bf16 %v1680, %v1680
      %v1745 = vpack.c.bf16 %v1681, %v1681
      %v1746 = vpack.c.bf16 %v1682, %v1682
      %v1747 = vpack.c.bf16 %v1683, %v1683
      %v1748 = vpack.c.bf16 %v1684, %v1684
      %v1813 = vunpack.c.l.b16 %v1685
      %v1814 = vunpack.c.l.b16 %v1686
      %v1815 = vunpack.c.l.b16 %v1687
      %v1816 = vunpack.c.l.b16 %v1688
      %v1817 = vunpack.c.l.b16 %v1689
      %v1818 = vunpack.c.l.b16 %v1690
      %v1819 = vunpack.c.l.b16 %v1691
      %v1820 = vunpack.c.l.b16 %v1692
      %v1821 = vunpack.c.l.b16 %v1693
      %v1822 = vunpack.c.l.b16 %v1694
      %v1823 = vunpack.c.l.b16 %v1695
      %v1824 = vunpack.c.l.b16 %v1696
      %v1825 = vunpack.c.l.b16 %v1697
      %v1826 = vunpack.c.l.b16 %v1698
      %v1827 = vunpack.c.l.b16 %v1699
      %v1828 = vunpack.c.l.b16 %v1700
      %v1829 = vunpack.c.l.b16 %v1701
      %v1830 = vunpack.c.l.b16 %v1702
      %v1831 = vunpack.c.l.b16 %v1703
      %v1832 = vunpack.c.l.b16 %v1704
      %v1833 = vunpack.c.l.b16 %v1705
      %v1834 = vunpack.c.l.b16 %v1706
      %v1835 = vunpack.c.l.b16 %v1707
      %v1836 = vunpack.c.l.b16 %v1708
      %v1837 = vunpack.c.l.b16 %v1709
      %v1838 = vunpack.c.l.b16 %v1710
      %v1839 = vunpack.c.l.b16 %v1711
      %v1840 = vunpack.c.l.b16 %v1712
      %v1841 = vunpack.c.l.b16 %v1713
      %v1842 = vunpack.c.l.b16 %v1714
      %v1843 = vunpack.c.l.b16 %v1715
      %v1844 = vunpack.c.l.b16 %v1716
      %v1845 = vunpack.c.l.b16 %v1717
      %v1846 = vunpack.c.l.b16 %v1718
      %v1847 = vunpack.c.l.b16 %v1719
      %v1848 = vunpack.c.l.b16 %v1720
      %v1849 = vunpack.c.l.b16 %v1721
      %v1850 = vunpack.c.l.b16 %v1722
      %v1851 = vunpack.c.l.b16 %v1723
      %v1852 = vunpack.c.l.b16 %v1724
      %v1853 = vunpack.c.l.b16 %v1725
      %v1854 = vunpack.c.l.b16 %v1726
      %v1855 = vunpack.c.l.b16 %v1727
      %v1856 = vunpack.c.l.b16 %v1728
      %v1857 = vunpack.c.l.b16 %v1729
      %v1858 = vunpack.c.l.b16 %v1730
      %v1859 = vunpack.c.l.b16 %v1731
      %v1860 = vunpack.c.l.b16 %v1732
      %v1861 = vunpack.c.l.b16 %v1733
      %v1862 = vunpack.c.l.b16 %v1734
      %v1863 = vunpack.c.l.b16 %v1735
      %v1864 = vunpack.c.l.b16 %v1736
      %v1865 = vunpack.c.l.b16 %v1737
      %v1866 = vunpack.c.l.b16 %v1738
      %v1867 = vunpack.c.l.b16 %v1739
      %v1868 = vunpack.c.l.b16 %v1740
      %v1869 = vunpack.c.l.b16 %v1741
      %v1870 = vunpack.c.l.b16 %v1742
      %v1871 = vunpack.c.l.b16 %v1743
      %v1872 = vunpack.c.l.b16 %v1744
      %v1873 = vunpack.c.l.b16 %v1745
      %v1874 = vunpack.c.l.b16 %v1746
      %v1875 = vunpack.c.l.b16 %v1747
      %v1876 = vunpack.c.l.b16 %v1748
      %v1877 = vpack.c.b16 %v1813, %v1813
      %v1878 = vpack.c.b16 %v1814, %v1814
      %v1879 = vpack.c.b16 %v1815, %v1815
      %v1880 = vpack.c.b16 %v1816, %v1816
      %v1881 = vpack.c.b16 %v1817, %v1817
      %v1882 = vpack.c.b16 %v1818, %v1818
      %v1883 = vpack.c.b16 %v1819, %v1819
      %v1884 = vpack.c.b16 %v1820, %v1820
      %v1885 = vpack.c.b16 %v1821, %v1821
      %v1886 = vpack.c.b16 %v1822, %v1822
      %v1887 = vpack.c.b16 %v1823, %v1823
      %v1888 = vpack.c.b16 %v1824, %v1824
      %v1889 = vpack.c.b16 %v1825, %v1825
      %v1890 = vpack.c.b16 %v1826, %v1826
      %v1891 = vpack.c.b16 %v1827, %v1827
      %v1892 = vpack.c.b16 %v1828, %v1828
      %v1893 = vpack.c.b16 %v1829, %v1829
      %v1894 = vpack.c.b16 %v1830, %v1830
      %v1895 = vpack.c.b16 %v1831, %v1831
      %v1896 = vpack.c.b16 %v1832, %v1832
      %v1897 = vpack.c.b16 %v1833, %v1833
      %v1898 = vpack.c.b16 %v1834, %v1834
      %v1899 = vpack.c.b16 %v1835, %v1835
      %v1900 = vpack.c.b16 %v1836, %v1836
      %v1901 = vpack.c.b16 %v1837, %v1837
      %v1902 = vpack.c.b16 %v1838, %v1838
      %v1903 = vpack.c.b16 %v1839, %v1839
      %v1904 = vpack.c.b16 %v1840, %v1840
      %v1905 = vpack.c.b16 %v1841, %v1841
      %v1906 = vpack.c.b16 %v1842, %v1842
      %v1907 = vpack.c.b16 %v1843, %v1843
      %v1908 = vpack.c.b16 %v1844, %v1844
      %v1909 = vpack.c.b16 %v1845, %v1845
      %v1910 = vpack.c.b16 %v1846, %v1846
      %v1911 = vpack.c.b16 %v1847, %v1847
      %v1912 = vpack.c.b16 %v1848, %v1848
      %v1913 = vpack.c.b16 %v1849, %v1849
      %v1914 = vpack.c.b16 %v1850, %v1850
      %v1915 = vpack.c.b16 %v1851, %v1851
      %v1916 = vpack.c.b16 %v1852, %v1852
      %v1917 = vpack.c.b16 %v1853, %v1853
      %v1918 = vpack.c.b16 %v1854, %v1854
      %v1919 = vpack.c.b16 %v1855, %v1855
      %v1920 = vpack.c.b16 %v1856, %v1856
      %v1921 = vpack.c.b16 %v1857, %v1857
      %v1922 = vpack.c.b16 %v1858, %v1858
      %v1923 = vpack.c.b16 %v1859, %v1859
      %v1924 = vpack.c.b16 %v1860, %v1860
      %v1925 = vpack.c.b16 %v1861, %v1861
      %v1926 = vpack.c.b16 %v1862, %v1862
      %v1927 = vpack.c.b16 %v1863, %v1863
      %v1928 = vpack.c.b16 %v1864, %v1864
      %v1929 = vpack.c.b16 %v1865, %v1865
      %v1930 = vpack.c.b16 %v1866, %v1866
      %v1931 = vpack.c.b16 %v1867, %v1867
      %v1932 = vpack.c.b16 %v1868, %v1868
      %v1933 = vpack.c.b16 %v1869, %v1869
      %v1934 = vpack.c.b16 %v1870, %v1870
      %v1935 = vpack.c.b16 %v1871, %v1871
      %v1936 = vpack.c.b16 %v1872, %v1872
      %v1937 = vpack.c.b16 %v1873, %v1873
      %v1938 = vpack.c.b16 %v1874, %v1874
      %v1939 = vpack.c.b16 %v1875, %v1875
      %v1940 = vpack.c.b16 %v1876, %v1876
      %v1941 = vunpack.c.l.b16 %v1877
      %v1942 = vunpack.c.l.b16 %v1878
      %v1943 = vunpack.c.l.b16 %v1879
      %v1944 = vunpack.c.l.b16 %v1880
      %v1945 = vunpack.c.l.b16 %v1881
      %v1946 = vunpack.c.l.b16 %v1882
      %v1947 = vunpack.c.l.b16 %v1883
      %v1948 = vunpack.c.l.b16 %v1884
      %v1949 = vunpack.c.l.b16 %v1885
      %v1950 = vunpack.c.l.b16 %v1886
      %v1951 = vunpack.c.l.b16 %v1887
      %v1952 = vunpack.c.l.b16 %v1888
      %v1953 = vunpack.c.l.b16 %v1889
      %v1954 = vunpack.c.l.b16 %v1890
      %v1955 = vunpack.c.l.b16 %v1891
      %v1956 = vunpack.c.l.b16 %v1892
      %v1957 = vunpack.c.l.b16 %v1893
      %v1958 = vunpack.c.l.b16 %v1894
      %v1959 = vunpack.c.l.b16 %v1895
      %v1960 = vunpack.c.l.b16 %v1896
      %v1961 = vunpack.c.l.b16 %v1897
      %v1962 = vunpack.c.l.b16 %v1898
      %v1963 = vunpack.c.l.b16 %v1899
      %v1964 = vunpack.c.l.b16 %v1900
      %v1965 = vunpack.c.l.b16 %v1901
      %v1966 = vunpack.c.l.b16 %v1902
      %v1967 = vunpack.c.l.b16 %v1903
      %v1968 = vunpack.c.l.b16 %v1904
      %v1969 = vunpack.c.l.b16 %v1905
      %v1970 = vunpack.c.l.b16 %v1906
      %v1971 = vunpack.c.l.b16 %v1907
      %v1972 = vunpack.c.l.b16 %v1908
      %v1973 = vunpack.c.l.b16 %v1909
      %v1974 = vunpack.c.l.b16 %v1910
      %v1975 = vunpack.c.l.b16 %v1911
      %v1976 = vunpack.c.l.b16 %v1912
      %v1977 = vunpack.c.l.b16 %v1913
      %v1978 = vunpack.c.l.b16 %v1914
      %v1979 = vunpack.c.l.b16 %v1915
      %v1980 = vunpack.c.l.b16 %v1916
      %v1981 = vunpack.c.l.b16 %v1917
      %v1982 = vunpack.c.l.b16 %v1918
      %v1983 = vunpack.c.l.b16 %v1919
      %v1984 = vunpack.c.l.b16 %v1920
      %v1985 = vunpack.c.l.b16 %v1921
      %v1986 = vunpack.c.l.b16 %v1922
      %v1987 = vunpack.c.l.b16 %v1923
      %v1988 = vunpack.c.l.b16 %v1924
      %v1989 = vunpack.c.l.b16 %v1925
      %v1990 = vunpack.c.l.b16 %v1926
      %v1991 = vunpack.c.l.b16 %v1927
      %v1992 = vunpack.c.l.b16 %v1928
      %v1993 = vunpack.c.l.b16 %v1929
      %v1994 = vunpack.c.l.b16 %v1930
      %v1995 = vunpack.c.l.b16 %v1931
      %v1996 = vunpack.c.l.b16 %v1932
      %v1997 = vunpack.c.l.b16 %v1933
      %v1998 = vunpack.c.l.b16 %v1934
      %v1999 = vunpack.c.l.b16 %v1935
      %v2000 = vunpack.c.l.b16 %v1936
      %v2001 = vunpack.c.l.b16 %v1937
      %v2002 = vunpack.c.l.b16 %v1938
      %v2003 = vunpack.c.l.b16 %v1939
      %v2004 = vunpack.c.l.b16 %v1940
      %v2005 = vrot.slane %v1942, 7
      %vm2006 = vcmask 1041409
      %v2007 = vsel %vm2006, %v2005, %v1941
      %v2008 = vrot.slane %v1943, 6
      %vm2009 = vcmask 1042434
      %v2010 = vsel %vm2009, %v2008, %v2007
      %v2011 = vrot.slane %v1944, 5
      %vm2012 = vcmask 1043459
      %v2013 = vsel %vm2012, %v2011, %v2010
      %v2014 = vrot.slane %v1945, 4
      %vm2015 = vcmask 1044484
      %v2016 = vsel %vm2015, %v2014, %v2013
      %v2017 = vrot.slane %v1946, 3
      %vm2018 = vcmask 1045509
      %v2019 = vsel %vm2018, %v2017, %v2016
      %v2020 = vrot.slane %v1947, 2
      %vm2021 = vcmask 1046534
      %v2022 = vsel %vm2021, %v2020, %v2019
      %v2023 = vrot.slane %v1948, 1
      %vm2024 = vcmask 1047559
      %v2025 = vsel %vm2024, %v2023, %v2022
      %v2026 = vrot.slane %v1950, 7
      %v2027 = vsel %vm2006, %v2026, %v1949
      %v2028 = vrot.slane %v1951, 6
      %v2029 = vsel %vm2009, %v2028, %v2027
      %v2030 = vrot.slane %v1952, 5
      %v2031 = vsel %vm2012, %v2030, %v2029
      %v2032 = vrot.slane %v1953, 4
      %v2033 = vsel %vm2015, %v2032, %v2031
      %v2034 = vrot.slane %v1954, 3
      %v2035 = vsel %vm2018, %v2034, %v2033
      %v2036 = vrot.slane %v1955, 2
      %v2037 = vsel %vm2021, %v2036, %v2035
      %v2038 = vrot.slane %v1956, 1
      %v2039 = vsel %vm2024, %v2038, %v2037
      %v2040 = vrot.slane %v1958, 7
      %v2041 = vsel %vm2006, %v2040, %v1957
      %v2042 = vrot.slane %v1959, 6
      %v2043 = vsel %vm2009, %v2042, %v2041
      %v2044 = vrot.slane %v1960, 5
      %v2045 = vsel %vm2012, %v2044, %v2043
      %v2046 = vrot.slane %v1961, 4
      %v2047 = vsel %vm2015, %v2046, %v2045
      %v2048 = vrot.slane %v1962, 3
      %v2049 = vsel %vm2018, %v2048, %v2047
      %v2050 = vrot.slane %v1963, 2
      %v2051 = vsel %vm2021, %v2050, %v2049
      %v2052 = vrot.slane %v1964, 1
      %v2053 = vsel %vm2024, %v2052, %v2051
      %v2054 = vrot.slane %v1966, 7
      %v2055 = vsel %vm2006, %v2054, %v1965
      %v2056 = vrot.slane %v1967, 6
      %v2057 = vsel %vm2009, %v2056, %v2055
      %v2058 = vrot.slane %v1968, 5
      %v2059 = vsel %vm2012, %v2058, %v2057
      %v2060 = vrot.slane %v1969, 4
      %v2061 = vsel %vm2015, %v2060, %v2059
      %v2062 = vrot.slane %v1970, 3
      %v2063 = vsel %vm2018, %v2062, %v2061
      %v2064 = vrot.slane %v1971, 2
      %v2065 = vsel %vm2021, %v2064, %v2063
      %v2066 = vrot.slane %v1972, 1
      %v2067 = vsel %vm2024, %v2066, %v2065
      %v2068 = vrot.slane %v1974, 7
      %v2069 = vsel %vm2006, %v2068, %v1973
      %v2070 = vrot.slane %v1975, 6
      %v2071 = vsel %vm2009, %v2070, %v2069
      %v2072 = vrot.slane %v1976, 5
      %v2073 = vsel %vm2012, %v2072, %v2071
      %v2074 = vrot.slane %v1977, 4
      %v2075 = vsel %vm2015, %v2074, %v2073
      %v2076 = vrot.slane %v1978, 3
      %v2077 = vsel %vm2018, %v2076, %v2075
      %v2078 = vrot.slane %v1979, 2
      %v2079 = vsel %vm2021, %v2078, %v2077
      %v2080 = vrot.slane %v1980, 1
      %v2081 = vsel %vm2024, %v2080, %v2079
      %v2082 = vrot.slane %v1982, 7
      %v2083 = vsel %vm2006, %v2082, %v1981
      %v2084 = vrot.slane %v1983, 6
      %v2085 = vsel %vm2009, %v2084, %v2083
      %v2086 = vrot.slane %v1984, 5
      %v2087 = vsel %vm2012, %v2086, %v2085
      %v2088 = vrot.slane %v1985, 4
      %v2089 = vsel %vm2015, %v2088, %v2087
      %v2090 = vrot.slane %v1986, 3
      %v2091 = vsel %vm2018, %v2090, %v2089
      %v2092 = vrot.slane %v1987, 2
      %v2093 = vsel %vm2021, %v2092, %v2091
      %v2094 = vrot.slane %v1988, 1
      %v2095 = vsel %vm2024, %v2094, %v2093
      %v2096 = vrot.slane %v1990, 7
      %v2097 = vsel %vm2006, %v2096, %v1989
      %v2098 = vrot.slane %v1991, 6
      %v2099 = vsel %vm2009, %v2098, %v2097
      %v2100 = vrot.slane %v1992, 5
      %v2101 = vsel %vm2012, %v2100, %v2099
      %v2102 = vrot.slane %v1993, 4
      %v2103 = vsel %vm2015, %v2102, %v2101
      %v2104 = vrot.slane %v1994, 3
      %v2105 = vsel %vm2018, %v2104, %v2103
      %v2106 = vrot.slane %v1995, 2
      %v2107 = vsel %vm2021, %v2106, %v2105
      %v2108 = vrot.slane %v1996, 1
      %v2109 = vsel %vm2024, %v2108, %v2107
      %v2110 = vrot.slane %v1998, 7
      %v2111 = vsel %vm2006, %v2110, %v1997
      %v2112 = vrot.slane %v1999, 6
      %v2113 = vsel %vm2009, %v2112, %v2111
      %v2114 = vrot.slane %v2000, 5
      %v2115 = vsel %vm2012, %v2114, %v2113
      %v2116 = vrot.slane %v2001, 4
      %v2117 = vsel %vm2015, %v2116, %v2115
      %v2118 = vrot.slane %v2002, 3
      %v2119 = vsel %vm2018, %v2118, %v2117
      %v2120 = vrot.slane %v2003, 2
      %v2121 = vsel %vm2021, %v2120, %v2119
      %v2122 = vrot.slane %v2004, 1
      %v2123 = vsel %vm2024, %v2122, %v2121
      %v2124 = vpack.c.b16 %v2025, %v2025
      %v2125 = vpack.c.b16 %v2039, %v2039
      %v2126 = vpack.c.b16 %v2053, %v2053
      %v2127 = vpack.c.b16 %v2067, %v2067
      %v2128 = vpack.c.b16 %v2081, %v2081
      %v2129 = vpack.c.b16 %v2095, %v2095
      %v2130 = vpack.c.b16 %v2109, %v2109
      %v2131 = vpack.c.b16 %v2123, %v2123
      %2140 = vst [vmem:[%s211] sm:$0xf] %v2124
      %2141 = vst [vmem:[%s211 + $0x4] sm:$0xf] %v2125
      %2142 = vst [vmem:[%s211 + $0x8] sm:$0xf] %v2126
      %2143 = vst [vmem:[%s211 + $0xc] sm:$0xf] %v2127
      %2144 = vst [vmem:[%s211 + $0x10] sm:$0xf] %v2128
      %2145 = vst [vmem:[%s211 + $0x14] sm:$0xf] %v2129
      %2146 = vst [vmem:[%s211 + $0x18] sm:$0xf] %v2130
      %2147 = vst [vmem:[%s211 + $0x1c] sm:$0xf] %v2131
      %s2148 = smul.u32 8, %s19
      %p2149 = scmp.lt.s32.totalorder %s18, 1
      %s2150 = scalar_select %p2149, %s18, 1
      %p2151 = scmp.lt.s32.totalorder %s2148, 7
      %s2152 = scalar_select %p2151, %s2148, 7
      %s2153 = smul.addr %s2150, 8
      %s2154 = sadd.s32 %s2152, %s2153
      %s2155 = smul.addr %s2154, 4
      %s2156 = scalar_lea.vmem %s3, %s2155
      // Predicated region
      $region33: #{age_gender_forward.3} parent=31 // pred_check
        %p2157 = pneg %p116
      $region34: #{age_gender_forward.3} parent=31 // pred_check_branch
        %2159 = sbr.rel (%p2157) target = $region36
      $region35: #{age_gender_forward.3} parent=31 // pred_region
        %s2160 = smul.u32 8, %s19
      $region36: #{age_gender_forward.3} parent=31 // pred_fallthru
        _
    $region32: #{age_gender_forward.3} parent=5 // pred_fallthru
      _
    %p2161 = scmp.le.s32.totalorder 2, %s9
    // Predicated region
    $region37: #{age_gender_forward.3} parent=5 // pred_check
      %p2162 = pneg %p2161
    $region38: #{age_gender_forward.3} parent=5 // pred_check_branch
      %2164 = sbr.rel (%p2162) target = $region40
    $region39: #{age_gender_forward.3} parent=5 // pred_region
      %s2165 = ssub.s32 %s9, 2
      // Predicated region
      $region41: #{age_gender_forward.3} parent=39 // pred_check
        %p2166 = pneg %p122
      $region42: #{age_gender_forward.3} parent=39 // pred_check_branch
        %2168 = sbr.rel (%p2166) target = $region44
      $region43: #{age_gender_forward.3} parent=39 // pred_region
        %s2169 = smul.u32 8, %s21
        %p2170 = scmp.lt.s32.totalorder %s20, 1
        %s2171 = scalar_select %p2170, %s20, 1
        %p2172 = scmp.lt.s32.totalorder %s2169, 7
        %s2173 = scalar_select %p2172, %s2169, 7
        %s2174 = smul.addr %s2171, 8
        %s2175 = sadd.s32 %s2173, %s2174
        %s2176 = smul.addr %s2175, 4
        %s2177 = scalar_lea.vmem %s3, %s2176
      $region44: #{age_gender_forward.3} parent=39 // pred_fallthru
        _
    $region40: #{age_gender_forward.3} parent=5 // pred_fallthru
      _
  $region6: #{age_gender_forward.3} parent=0 // loop_footer
    %s13 = sadd.s32 1, %s9
  $region7: #{age_gender_forward.3} parent=0 // loop_footer_branch
    %8 = sbr.rel target = $region3
  $region8: #{age_gender_forward.3} parent=0 // loop_exit
    _

// kernel: age_gender_forward.4
$region0: #{age_gender_forward.4}
  #allocation0 [shape = 'u32[]', space=smem, size = 0x4, offset = 0x4, fixed_abs, tag = 'smem constant byte address 0x4 - core index']
  #allocation1 [shape = 'u32[144,128]{1,0:T(1,128)}', space=vmem, size = 0x12000, scoped, tag = 'internal scratch']
  #allocation2 [shape = 'bf16[10,8,384]{2,1,0:T(8,128)(2,1)}', space=vmem, size = 0xf000, scoped, tag = 'scratch operand']
  %s0 = inlined_call_operand.vmem [shape: bf16[2,8,8,128], index: 0, kind: input, shape index: {}]
  %s1 = inlined_call_operand.vmem [shape: bf16[3,384,256], index: 1, kind: input, shape index: {}]
  %s2 = inlined_call_operand.vmem [shape: f32[1,256], index: 2, kind: input, shape index: {}]
  %s3 = inlined_call_operand.vmem [shape: bf16[2,4,4,256], index: 3, kind: output, shape index: {}]
  %s4 = sld [smem:[#allocation0]]
  $region45: #{age_gender_forward.4} parent=0
    _
  %s6 = ssub.s32 1, %s4
  %s7 = scalar_select 0, %s6, %s4
  loop: start=0, step=1, limit=4
  $region2: #{age_gender_forward.4} parent=0 // loop_pre_header
    _
  $region3: #{age_gender_forward.4} parent=0 // loop_header
    %s9 = sphi 0, %s13
    %p10 = scmp.ge.s32.totalorder %s9, 4
    %s19 = sphi 0, %s21
    %s22 = sphi 0, %s19
    %s23 = sphi 0, %s22
    %s39 = sphi 0, %s23
    %s43 = sphi 0, %s43
    %s45 = sphi 0, %s43
    %s46 = sphi 0, %s45
    %s60 = sphi 0, %s46
    %s64 = sphi 0, %s64
    %s66 = sphi 0, %s64
    %s67 = sphi 0, %s66
    %s81 = sphi 0, %s67
    %s87 = sphi 0, %s89
    %s90 = sphi 0, %s87
    %s91 = sphi 0, %s90
    %s107 = sphi 0, %s91
  $region4: #{age_gender_forward.4} parent=0 // loop_header_branch
    %12 = sbr.rel (%p10) target = $region8
  $region5: #{age_gender_forward.4} parent=0 // loop_body
    %s14 = ssub.s32 %s9, 1
    %s15 = ssub.s32 %s9, 2
    %s16 = sadd.s32 %s9, 1
    %s17 = ssub.s32 %s9, %s16
    %p18 = scmp.eq.s32.totalorder %s17, 0
    %s20 = sadd.s32 %s19, 1
    %s21 = scalar_select %p18, %s19, %s20
    %p24 = pneg %p18
    %p25 = scmp.eq.s32.totalorder %s9, 1
    %p26 = por %p24, %p25
    %p27 = scmp.ne.s32.totalorder %s19, %s22
    %p28 = scmp.eq.s32.totalorder %s9, 0
    %p29 = por %p27, %p28
    %p30 = scmp.ne.s32.totalorder %s19, %s22
    %p31 = scmp.eq.s32.totalorder %s14, 1
    %p32 = por %p30, %p31
    %p33 = scmp.ne.s32.totalorder %s22, %s23
    %p34 = scmp.eq.s32.totalorder %s14, 0
    %p35 = por %p33, %p34
    %p36 = scmp.ne.s32.totalorder %s22, %s23
    %p37 = scmp.eq.s32.totalorder %s15, 1
    %p38 = por %p36, %p37
    %p40 = scmp.ne.s32.totalorder %s23, %s39
    %p41 = scmp.eq.s32.totalorder %s15, 0
    %p42 = por %p40, %p41
    %s44 = sadd.s32 %s43, 1
    %p47 = scmp.eq.s32.totalorder %s9, 1
    %p48 = scmp.ne.s32.totalorder %s43, %s45
    %p49 = scmp.eq.s32.totalorder %s9, 0
    %p50 = por %p48, %p49
    %p51 = scmp.ne.s32.totalorder %s43, %s45
    %p52 = scmp.eq.s32.totalorder %s14, 1
    %p53 = por %p51, %p52
    %p54 = scmp.ne.s32.totalorder %s45, %s46
    %p55 = scmp.eq.s32.totalorder %s14, 0
    %p56 = por %p54, %p55
    %p57 = scmp.ne.s32.totalorder %s45, %s46
    %p58 = scmp.eq.s32.totalorder %s15, 1
    %p59 = por %p57, %p58
    %p61 = scmp.ne.s32.totalorder %s46, %s60
    %p62 = scmp.eq.s32.totalorder %s15, 0
    %p63 = por %p61, %p62
    %s65 = sadd.s32 %s64, 1
    %p68 = scmp.eq.s32.totalorder %s9, 1
    %p69 = scmp.ne.s32.totalorder %s64, %s66
    %p70 = scmp.eq.s32.totalorder %s9, 0
    %p71 = por %p69, %p70
    %p72 = scmp.ne.s32.totalorder %s64, %s66
    %p73 = scmp.eq.s32.totalorder %s14, 1
    %p74 = por %p72, %p73
    %p75 = scmp.ne.s32.totalorder %s66, %s67
    %p76 = scmp.eq.s32.totalorder %s14, 0
    %p77 = por %p75, %p76
    %p78 = scmp.ne.s32.totalorder %s66, %s67
    %p79 = scmp.eq.s32.totalorder %s15, 1
    %p80 = por %p78, %p79
    %p82 = scmp.ne.s32.totalorder %s67, %s81
    %p83 = scmp.eq.s32.totalorder %s15, 0
    %p84 = por %p82, %p83
    %s85 = ssub.s32 %s9, %s16
    %p86 = scmp.eq.s32.totalorder %s85, 0
    %s88 = sadd.s32 %s87, 1
    %s89 = scalar_select %p86, %s87, %s88
    %p92 = pneg %p86
    %p93 = scmp.eq.s32.totalorder %s9, 1
    %p94 = por %p92, %p93
    %p95 = scmp.ne.s32.totalorder %s87, %s90
    %p96 = scmp.eq.s32.totalorder %s9, 0
    %p97 = por %p95, %p96
    %p98 = scmp.ne.s32.totalorder %s87, %s90
    %p99 = scmp.eq.s32.totalorder %s14, 1
    %p100 = por %p98, %p99
    %p101 = scmp.ne.s32.totalorder %s90, %s91
    %p102 = scmp.eq.s32.totalorder %s14, 0
    %p103 = por %p101, %p102
    %p104 = scmp.ne.s32.totalorder %s90, %s91
    %p105 = scmp.eq.s32.totalorder %s15, 1
    %p106 = por %p104, %p105
    %p108 = scmp.ne.s32.totalorder %s91, %s107
    %p109 = scmp.eq.s32.totalorder %s15, 0
    %p110 = por %p108, %p109
    %p111 = scmp.le.s32.totalorder 1, %s9
    %p112 = scmp.lt.s32.totalorder %s9, 3
    %p113 = pnand %p111, %p112
    %p114 = pneg %p113
    // Predicated region
    $region9: #{age_gender_forward.4} parent=5 // pred_check
      _
    $region10: #{age_gender_forward.4} parent=5 // pred_check_branch
      %116 = sbr.rel (%p113) target = $region12
    $region11: #{age_gender_forward.4} parent=5 // pred_region
      %s117 = ssub.s32 %s9, 1
      // Predicated region
      $region13: #{age_gender_forward.4} parent=11 // pred_check
        %p118 = pneg %p56
      $region14: #{age_gender_forward.4} parent=11 // pred_check_branch
        %120 = sbr.rel (%p118) target = $region16
      $region15: #{age_gender_forward.4} parent=11 // pred_region
        _
      $region16: #{age_gender_forward.4} parent=11 // pred_fallthru
        _
      // Predicated region
      $region17: #{age_gender_forward.4} parent=11 // pred_check
        %p121 = pneg %p77
      $region18: #{age_gender_forward.4} parent=11 // pred_check_branch
        %123 = sbr.rel (%p121) target = $region20
      $region19: #{age_gender_forward.4} parent=11 // pred_region
        _
      $region20: #{age_gender_forward.4} parent=11 // pred_fallthru
        _
    $region12: #{age_gender_forward.4} parent=5 // pred_fallthru
      _
    %p124 = scmp.lt.s32.totalorder %s9, 2
    // Predicated region
    $region21: #{age_gender_forward.4} parent=5 // pred_check
      %p125 = pneg %p124
    $region22: #{age_gender_forward.4} parent=5 // pred_check_branch
      %127 = sbr.rel (%p125) target = $region24
    $region23: #{age_gender_forward.4} parent=5 // pred_region
      // Predicated region
      $region25: #{age_gender_forward.4} parent=23 // pred_check
        %p128 = pneg %p29
      $region26: #{age_gender_forward.4} parent=23 // pred_check_branch
        %130 = sbr.rel (%p128) target = $region28
      $region27: #{age_gender_forward.4} parent=23 // pred_region
        %p131 = scmp.lt.s32.totalorder %s9, 1
        %s132 = scalar_select %p131, %s9, 1
        %s133 = smul.addr %s132, 8
        %s134 = smul.addr %s133, 4
        %s135 = scalar_lea.vmem %s0, %s134
      $region28: #{age_gender_forward.4} parent=23 // pred_fallthru
        _
    $region24: #{age_gender_forward.4} parent=5 // pred_fallthru
      _
    %p136 = scmp.le.s32.totalorder 1, %s9
    %p137 = scmp.lt.s32.totalorder %s9, 3
    %p138 = pnand %p136, %p137
    %p139 = pneg %p138
    // Predicated region
    $region29: #{age_gender_forward.4} parent=5 // pred_check
      _
    $region30: #{age_gender_forward.4} parent=5 // pred_check_branch
      %141 = sbr.rel (%p138) target = $region32
    $region31: #{age_gender_forward.4} parent=5 // pred_region
      %s142 = ssub.s32 %s9, 1
      %p143 = scmp.lt.s32.totalorder %s14, 1
      %s144 = scalar_select %p143, %s14, 1
      %s145 = smul.addr %s144, 8
      %s146 = smul.addr %s145, 4
      %s147 = scalar_lea.vmem %s0, %s146
      %p148 = pneg %p35
      %p149 = pneg %p32
      %p150 = pneg %p56
      %p151 = pneg %p53
      %p152 = pneg %p77
      %p153 = pneg %p74
      %p154 = pneg %p103
      %p155 = pneg %p100
      %p156 = scmp.lt.s32.totalorder %s14, 1
      %s157 = scalar_select %p156, %s14, 1
      %s158 = smul.addr %s157, 8
      %s159 = smul.addr %s158, 2
      %s160 = scalar_lea.vmem %s3, %s159
      %p161 = scmp.lt.s32.totalorder %s14, 1
      %s162 = scalar_select %p161, %s14, 1
      %s163 = smul.addr %s162, 8
      %s164 = smul.addr %s163, 4
      %s165 = scalar_lea.vmem %s0, %s164
      %p166 = scmp.lt.s32.totalorder %s14, 1
      %s167 = scalar_select %p166, %s14, 1
      %s168 = smul.addr %s167, 8
      %s169 = smul.addr %s168, 2
      %s170 = scalar_lea.vmem %s3, %s169
      %172 = vst [vmem:[#allocation2] sm:$0xff] 0
      %173 = vst [vmem:[#allocation2 + $0x8] sm:$0xf] 0
      %174 = vst [vmem:[#allocation2 + $0xc] sm:$0xff] 0
      %175 = vst [vmem:[#allocation2 + $0x14] sm:$0xf] 0
      %176 = vst [vmem:[#allocation2 + $0x18] sm:$0xff] 0
      %177 = vst [vmem:[#allocation2 + $0x20] sm:$0xf] 0
      %178 = vst [vmem:[#allocation2 + $0x24] sm:$0xff] 0
      %179 = vst [vmem:[#allocation2 + $0x2c] sm:$0xf] 0
      %180 = vst [vmem:[#allocation2 + $0x30] sm:$0xff] 0
      %181 = vst [vmem:[#allocation2 + $0x38] sm:$0xf] 0
      %182 = vst [vmem:[#allocation2 + $0x3c] sm:$0xff] 0
      %183 = vst [vmem:[#allocation2 + $0x44] sm:$0xf] 0
      %184 = vst [vmem:[#allocation2 + $0x48] sm:$0xff] 0
      %185 = vst [vmem:[#allocation2 + $0x50] sm:$0xf] 0
      %186 = vst [vmem:[#allocation2 + $0x54] sm:$0xff] 0
      %187 = vst [vmem:[#allocation2 + $0x5c] sm:$0xf] 0
      %188 = vst [vmem:[#allocation2 + $0x60] sm:$0xff] 0
      %189 = vst [vmem:[#allocation2 + $0x68] sm:$0xf] 0
      %190 = vst [vmem:[#allocation2 + $0x6c] sm:$0xff] 0
      %191 = vst [vmem:[#allocation2 + $0x74] sm:$0xf] 0
      %v192 = vld [vmem:[%s165] sm:$0xf]
      %v193 = vld [vmem:[%s165 + $0x4] sm:$0xf]
      %v194 = vld [vmem:[%s165 + $0x8] sm:$0xf]
      %v195 = vld [vmem:[%s165 + $0xc] sm:$0xf]
      %v196 = vld [vmem:[%s165 + $0x10] sm:$0xf]
      %v197 = vld [vmem:[%s165 + $0x14] sm:$0xf]
      %v198 = vld [vmem:[%s165 + $0x18] sm:$0xf]
      %v199 = vld [vmem:[%s165 + $0x1c] sm:$0xf]
      %v201 = vshrl.u32 %v192, 16
      %v203 = vrot.slane %v201, 7
      %v204 = vshll.u32 %v192, 16
      %v206 = vor.u32 %v203, %v204
      %v208 = vshrl.u32 %v193, 16
      %v210 = vrot.slane %v208, 7
      %v211 = vshll.u32 %v193, 16
      %v213 = vor.u32 %v210, %v211
      %v215 = vshrl.u32 %v194, 16
      %v217 = vrot.slane %v215, 7
      %v218 = vshll.u32 %v194, 16
      %v220 = vor.u32 %v217, %v218
      %v222 = vshrl.u32 %v195, 16
      %v224 = vrot.slane %v222, 7
      %v225 = vshll.u32 %v195, 16
      %v227 = vor.u32 %v224, %v225
      %v229 = vshrl.u32 %v196, 16
      %v231 = vrot.slane %v229, 7
      %v232 = vshll.u32 %v196, 16
      %v234 = vor.u32 %v231, %v232
      %v236 = vshrl.u32 %v197, 16
      %v238 = vrot.slane %v236, 7
      %v239 = vshll.u32 %v197, 16
      %v241 = vor.u32 %v238, %v239
      %v243 = vshrl.u32 %v198, 16
      %v245 = vrot.slane %v243, 7
      %v246 = vshll.u32 %v198, 16
      %v248 = vor.u32 %v245, %v246
      %v250 = vshrl.u32 %v199, 16
      %v252 = vrot.slane %v250, 7
      %v253 = vshll.u32 %v199, 16
      %v255 = vor.u32 %v252, %v253
      %s264 = scalar_lea.vmem [#allocation2], 12
      %vm265 = vcmask 1043456
      %vm266 = vsmask.f32 7938
      %vm267 = vmand %vm265, %vm266
      %v268 = vld [vmem:[%s264] sm:$0xf]
      %v269 = vsel %vm267, %v206, %v268
      %270 = vst [vmem:[%s264] sm:$0xf] %v269
      %v271 = vld [vmem:[%s264 + $0xc] sm:$0xf]
      %v272 = vsel %vm267, %v213, %v271
      %273 = vst [vmem:[%s264 + $0xc] sm:$0xf] %v272
      %v274 = vld [vmem:[%s264 + $0x18] sm:$0xf]
      %v275 = vsel %vm267, %v220, %v274
      %276 = vst [vmem:[%s264 + $0x18] sm:$0xf] %v275
      %v277 = vld [vmem:[%s264 + $0x24] sm:$0xf]
      %v278 = vsel %vm267, %v227, %v277
      %279 = vst [vmem:[%s264 + $0x24] sm:$0xf] %v278
      %v280 = vld [vmem:[%s264 + $0x30] sm:$0xf]
      %v281 = vsel %vm267, %v234, %v280
      %282 = vst [vmem:[%s264 + $0x30] sm:$0xf] %v281
      %v283 = vld [vmem:[%s264 + $0x3c] sm:$0xf]
      %v284 = vsel %vm267, %v241, %v283
      %285 = vst [vmem:[%s264 + $0x3c] sm:$0xf] %v284
      %v286 = vld [vmem:[%s264 + $0x48] sm:$0xf]
      %v287 = vsel %vm267, %v248, %v286
      %288 = vst [vmem:[%s264 + $0x48] sm:$0xf] %v287
      %v289 = vld [vmem:[%s264 + $0x54] sm:$0xf]
      %v290 = vsel %vm267, %v255, %v289
      %291 = vst [vmem:[%s264 + $0x54] sm:$0xf] %v290
      %v292 = vld [vmem:[%s165] sm:$0xf]
      %v293 = vld [vmem:[%s165 + $0x4] sm:$0xf]
      %v294 = vld [vmem:[%s165 + $0x8] sm:$0xf]
      %v295 = vld [vmem:[%s165 + $0xc] sm:$0xf]
      %v296 = vld [vmem:[%s165 + $0x10] sm:$0xf]
      %v297 = vld [vmem:[%s165 + $0x14] sm:$0xf]
      %v298 = vld [vmem:[%s165 + $0x18] sm:$0xf]
      %v299 = vld [vmem:[%s165 + $0x1c] sm:$0xf]
      %300 = vst [vmem:[%s264 + $0x4] sm:$0xf] %v292
      %301 = vst [vmem:[%s264 + $0x10] sm:$0xf] %v293
      %302 = vst [vmem:[%s264 + $0x1c] sm:$0xf] %v294
      %303 = vst [vmem:[%s264 + $0x28] sm:$0xf] %v295
      %304 = vst [vmem:[%s264 + $0x34] sm:$0xf] %v296
      %305 = vst [vmem:[%s264 + $0x40] sm:$0xf] %v297
      %306 = vst [vmem:[%s264 + $0x4c] sm:$0xf] %v298
      %307 = vst [vmem:[%s264 + $0x58] sm:$0xf] %v299
      %v308 = vld [vmem:[%s165] sm:$0xf]
      %v309 = vld [vmem:[%s165 + $0x4] sm:$0xf]
      %v310 = vld [vmem:[%s165 + $0x8] sm:$0xf]
      %v311 = vld [vmem:[%s165 + $0xc] sm:$0xf]
      %v312 = vld [vmem:[%s165 + $0x10] sm:$0xf]
      %v313 = vld [vmem:[%s165 + $0x14] sm:$0xf]
      %v314 = vld [vmem:[%s165 + $0x18] sm:$0xf]
      %v315 = vld [vmem:[%s165 + $0x1c] sm:$0xf]
      %v317 = vshrl.u32 %v308, 16
      %v319 = vrot.slane %v317, 4
      %v320 = vshll.u32 %v308, 16
      %v322 = vrot.slane %v320, 5
      %v323 = vor.u32 %v319, %v322
      %v324 = vrot.slane %v323, 4
      %v326 = vshrl.u32 %v309, 16
      %v328 = vrot.slane %v326, 4
      %v329 = vshll.u32 %v309, 16
      %v331 = vrot.slane %v329, 5
      %v332 = vor.u32 %v328, %v331
      %v333 = vrot.slane %v332, 4
      %v335 = vshrl.u32 %v310, 16
      %v337 = vrot.slane %v335, 4
      %v338 = vshll.u32 %v310, 16
      %v340 = vrot.slane %v338, 5
      %v341 = vor.u32 %v337, %v340
      %v342 = vrot.slane %v341, 4
      %v344 = vshrl.u32 %v311, 16
      %v346 = vrot.slane %v344, 4
      %v347 = vshll.u32 %v311, 16
      %v349 = vrot.slane %v347, 5
      %v350 = vor.u32 %v346, %v349
      %v351 = vrot.slane %v350, 4
      %v353 = vshrl.u32 %v312, 16
      %v355 = vrot.slane %v353, 4
      %v356 = vshll.u32 %v312, 16
      %v358 = vrot.slane %v356, 5
      %v359 = vor.u32 %v355, %v358
      %v360 = vrot.slane %v359, 4
      %v362 = vshrl.u32 %v313, 16
      %v364 = vrot.slane %v362, 4
      %v365 = vshll.u32 %v313, 16
      %v367 = vrot.slane %v365, 5
      %v368 = vor.u32 %v364, %v367
      %v369 = vrot.slane %v368, 4
      %v371 = vshrl.u32 %v314, 16
      %v373 = vrot.slane %v371, 4
      %v374 = vshll.u32 %v314, 16
      %v376 = vrot.slane %v374, 5
      %v377 = vor.u32 %v373, %v376
      %v378 = vrot.slane %v377, 4
      %v380 = vshrl.u32 %v315, 16
      %v382 = vrot.slane %v380, 4
      %v383 = vshll.u32 %v315, 16
      %v385 = vrot.slane %v383, 5
      %v386 = vor.u32 %v382, %v385
      %v387 = vrot.slane %v386, 4
      %vm396 = vsmask.f32 3328
      %vm397 = vmand %vm265, %vm396
      %v398 = vld [vmem:[%s264 + $0x8] sm:$0xf]
      %v399 = vsel %vm397, %v324, %v398
      %400 = vst [vmem:[%s264 + $0x8] sm:$0xf] %v399
      %v401 = vld [vmem:[%s264 + $0x14] sm:$0xf]
      %v402 = vsel %vm397, %v333, %v401
      %403 = vst [vmem:[%s264 + $0x14] sm:$0xf] %v402
      %v404 = vld [vmem:[%s264 + $0x20] sm:$0xf]
      %v405 = vsel %vm397, %v342, %v404
      %406 = vst [vmem:[%s264 + $0x20] sm:$0xf] %v405
      %v407 = vld [vmem:[%s264 + $0x2c] sm:$0xf]
      %v408 = vsel %vm397, %v351, %v407
      %409 = vst [vmem:[%s264 + $0x2c] sm:$0xf] %v408
      %v410 = vld [vmem:[%s264 + $0x38] sm:$0xf]
      %v411 = vsel %vm397, %v360, %v410
      %412 = vst [vmem:[%s264 + $0x38] sm:$0xf] %v411
      %v413 = vld [vmem:[%s264 + $0x44] sm:$0xf]
      %v414 = vsel %vm397, %v369, %v413
      %415 = vst [vmem:[%s264 + $0x44] sm:$0xf] %v414
      %v416 = vld [vmem:[%s264 + $0x50] sm:$0xf]
      %v417 = vsel %vm397, %v378, %v416
      %418 = vst [vmem:[%s264 + $0x50] sm:$0xf] %v417
      %v419 = vld [vmem:[%s264 + $0x5c] sm:$0xf]
      %v420 = vsel %vm397, %v387, %v419
      %421 = vst [vmem:[%s264 + $0x5c] sm:$0xf] %v420
      %v422 = vld [vmem:[#allocation2] sm:$0xff]
      %v423 = vld [vmem:[#allocation2 + $0x8] sm:$0xf]
      %v424 = vld [vmem:[#allocation2 + $0xc] sm:$0xff]
      %v425 = vld [vmem:[#allocation2 + $0x14] sm:$0xf]
      %v426 = vld [vmem:[#allocation2 + $0x18] sm:$0xff]
      %v427 = vld [vmem:[#allocation2 + $0x20] sm:$0xf]
      %v428 = vld [vmem:[#allocation2 + $0x24] sm:$0xff]
      %v429 = vld [vmem:[#allocation2 + $0x2c] sm:$0xf]
      %v430 = vld [vmem:[#allocation2 + $0x30] sm:$0xff]
      %v431 = vld [vmem:[#allocation2 + $0x38] sm:$0xf]
      %v432 = vld [vmem:[#allocation2 + $0x3c] sm:$0xff]
      %v433 = vld [vmem:[#allocation2 + $0x44] sm:$0xf]
      %v434 = vld [vmem:[#allocation2 + $0x48] sm:$0xff]
      %v435 = vld [vmem:[#allocation2 + $0x50] sm:$0xf]
      %v436 = vld [vmem:[#allocation2 + $0x54] sm:$0xff]
      %v437 = vld [vmem:[#allocation2 + $0x5c] sm:$0xf]
      %v438 = vld [vmem:[%s1] sm:$0xff]
      %v439 = vld [vmem:[%s1 + $0x8] sm:$0xff]
      %v440 = vld [vmem:[%s1 + $0x10] sm:$0xff]
      %v441 = vld [vmem:[%s1 + $0x18] sm:$0xff]
      %v442 = vld [vmem:[%s1 + $0x20] sm:$0xff]
      %v443 = vld [vmem:[%s1 + $0x28] sm:$0xff]
      %v444 = vld [vmem:[%s1 + $0x30] sm:$0xff]
      %v445 = vld [vmem:[%s1 + $0x38] sm:$0xff]
      %v446 = vld [vmem:[%s1 + $0x40] sm:$0xff]
      %v447 = vld [vmem:[%s1 + $0x48] sm:$0xff]
      %v448 = vld [vmem:[%s1 + $0x50] sm:$0xff]
      %v449 = vld [vmem:[%s1 + $0x58] sm:$0xff]
      %v450 = vld [vmem:[%s1 + $0x60] sm:$0xff]
      %v451 = vld [vmem:[%s1 + $0x68] sm:$0xff]
      %v452 = vld [vmem:[%s1 + $0x70] sm:$0xff]
      %v453 = vld [vmem:[%s1 + $0x78] sm:$0xff]
      %v454 = vld [vmem:[%s1 + $0x80] sm:$0xff]
      %v455 = vld [vmem:[%s1 + $0x88] sm:$0xff]
      %v456 = vld [vmem:[%s1 + $0x90] sm:$0xff]
      %v457 = vld [vmem:[%s1 + $0x98] sm:$0xff]
      %v458 = vld [vmem:[%s1 + $0xa0] sm:$0xff]
      %v459 = vld [vmem:[%s1 + $0xa8] sm:$0xff]
      %v460 = vld [vmem:[%s1 + $0xb0] sm:$0xff]
      %v461 = vld [vmem:[%s1 + $0xb8] sm:$0xff]
      %v462 = vld [vmem:[%s1 + $0xc0] sm:$0xff]
      %v463 = vld [vmem:[%s1 + $0xc8] sm:$0xff]
      %v464 = vld [vmem:[%s1 + $0xd0] sm:$0xff]
      %v465 = vld [vmem:[%s1 + $0xd8] sm:$0xff]
      %v466 = vld [vmem:[%s1 + $0xe0] sm:$0xff]
      %v467 = vld [vmem:[%s1 + $0xe8] sm:$0xff]
      %v468 = vld [vmem:[%s1 + $0xf0] sm:$0xff]
      %v469 = vld [vmem:[%s1 + $0xf8] sm:$0xff]
      %v470 = vld [vmem:[%s1 + $0x100] sm:$0xff]
      %v471 = vld [vmem:[%s1 + $0x108] sm:$0xff]
      %v472 = vld [vmem:[%s1 + $0x110] sm:$0xff]
      %v473 = vld [vmem:[%s1 + $0x118] sm:$0xff]
      %v474 = vld [vmem:[%s1 + $0x120] sm:$0xff]
      %v475 = vld [vmem:[%s1 + $0x128] sm:$0xff]
      %v476 = vld [vmem:[%s1 + $0x130] sm:$0xff]
      %v477 = vld [vmem:[%s1 + $0x138] sm:$0xff]
      %v478 = vld [vmem:[%s1 + $0x140] sm:$0xff]
      %v479 = vld [vmem:[%s1 + $0x148] sm:$0xff]
      %v480 = vld [vmem:[%s1 + $0x150] sm:$0xff]
      %v481 = vld [vmem:[%s1 + $0x158] sm:$0xff]
      %v482 = vld [vmem:[%s1 + $0x160] sm:$0xff]
      %v483 = vld [vmem:[%s1 + $0x168] sm:$0xff]
      %v484 = vld [vmem:[%s1 + $0x170] sm:$0xff]
      %v485 = vld [vmem:[%s1 + $0x178] sm:$0xff]
      %v486 = vld [vmem:[%s264] sm:$0xff]
      %v487 = vld [vmem:[%s264 + $0x8] sm:$0xf]
      %v488 = vld [vmem:[%s264 + $0xc] sm:$0xff]
      %v489 = vld [vmem:[%s264 + $0x14] sm:$0xf]
      %v490 = vld [vmem:[%s264 + $0x18] sm:$0xff]
      %v491 = vld [vmem:[%s264 + $0x20] sm:$0xf]
      %v492 = vld [vmem:[%s264 + $0x24] sm:$0xff]
      %v493 = vld [vmem:[%s264 + $0x2c] sm:$0xf]
      %v494 = vld [vmem:[%s264 + $0x30] sm:$0xff]
      %v495 = vld [vmem:[%s264 + $0x38] sm:$0xf]
      %v496 = vld [vmem:[%s264 + $0x3c] sm:$0xff]
      %v497 = vld [vmem:[%s264 + $0x44] sm:$0xf]
      %v498 = vld [vmem:[%s264 + $0x48] sm:$0xff]
      %v499 = vld [vmem:[%s264 + $0x50] sm:$0xf]
      %v500 = vld [vmem:[%s264 + $0x54] sm:$0xff]
      %v501 = vld [vmem:[%s264 + $0x5c] sm:$0xf]
      %s502 = scalar_lea.vmem %s1, 384
      %v503 = vld [vmem:[%s502] sm:$0xff]
      %v504 = vld [vmem:[%s502 + $0x8] sm:$0xff]
      %v505 = vld [vmem:[%s502 + $0x10] sm:$0xff]
      %v506 = vld [vmem:[%s502 + $0x18] sm:$0xff]
      %v507 = vld [vmem:[%s502 + $0x20] sm:$0xff]
      %v508 = vld [vmem:[%s502 + $0x28] sm:$0xff]
      %v509 = vld [vmem:[%s502 + $0x30] sm:$0xff]
      %v510 = vld [vmem:[%s502 + $0x38] sm:$0xff]
      %v511 = vld [vmem:[%s502 + $0x40] sm:$0xff]
      %v512 = vld [vmem:[%s502 + $0x48] sm:$0xff]
      %v513 = vld [vmem:[%s502 + $0x50] sm:$0xff]
      %v514 = vld [vmem:[%s502 + $0x58] sm:$0xff]
      %v515 = vld [vmem:[%s502 + $0x60] sm:$0xff]
      %v516 = vld [vmem:[%s502 + $0x68] sm:$0xff]
      %v517 = vld [vmem:[%s502 + $0x70] sm:$0xff]
      %v518 = vld [vmem:[%s502 + $0x78] sm:$0xff]
      %v519 = vld [vmem:[%s502 + $0x80] sm:$0xff]
      %v520 = vld [vmem:[%s502 + $0x88] sm:$0xff]
      %v521 = vld [vmem:[%s502 + $0x90] sm:$0xff]
      %v522 = vld [vmem:[%s502 + $0x98] sm:$0xff]
      %v523 = vld [vmem:[%s502 + $0xa0] sm:$0xff]
      %v524 = vld [vmem:[%s502 + $0xa8] sm:$0xff]
      %v525 = vld [vmem:[%s502 + $0xb0] sm:$0xff]
      %v526 = vld [vmem:[%s502 + $0xb8] sm:$0xff]
      %v527 = vld [vmem:[%s502 + $0xc0] sm:$0xff]
      %v528 = vld [vmem:[%s502 + $0xc8] sm:$0xff]
      %v529 = vld [vmem:[%s502 + $0xd0] sm:$0xff]
      %v530 = vld [vmem:[%s502 + $0xd8] sm:$0xff]
      %v531 = vld [vmem:[%s502 + $0xe0] sm:$0xff]
      %v532 = vld [vmem:[%s502 + $0xe8] sm:$0xff]
      %v533 = vld [vmem:[%s502 + $0xf0] sm:$0xff]
      %v534 = vld [vmem:[%s502 + $0xf8] sm:$0xff]
      %v535 = vld [vmem:[%s502 + $0x100] sm:$0xff]
      %v536 = vld [vmem:[%s502 + $0x108] sm:$0xff]
      %v537 = vld [vmem:[%s502 + $0x110] sm:$0xff]
      %v538 = vld [vmem:[%s502 + $0x118] sm:$0xff]
      %v539 = vld [vmem:[%s502 + $0x120] sm:$0xff]
      %v540 = vld [vmem:[%s502 + $0x128] sm:$0xff]
      %v541 = vld [vmem:[%s502 + $0x130] sm:$0xff]
      %v542 = vld [vmem:[%s502 + $0x138] sm:$0xff]
      %v543 = vld [vmem:[%s502 + $0x140] sm:$0xff]
      %v544 = vld [vmem:[%s502 + $0x148] sm:$0xff]
      %v545 = vld [vmem:[%s502 + $0x150] sm:$0xff]
      %v546 = vld [vmem:[%s502 + $0x158] sm:$0xff]
      %v547 = vld [vmem:[%s502 + $0x160] sm:$0xff]
      %v548 = vld [vmem:[%s502 + $0x168] sm:$0xff]
      %v549 = vld [vmem:[%s502 + $0x170] sm:$0xff]
      %v550 = vld [vmem:[%s502 + $0x178] sm:$0xff]
      %v567 = vunpack.c.l.b16 %v486
      %v568 = vunpack.c.h.b16 %v486
      %v569 = vunpack.c.l.b16 %v487
      %v570 = vunpack.c.l.b16 %v488
      %v571 = vunpack.c.h.b16 %v488
      %v572 = vunpack.c.l.b16 %v489
      %v573 = vunpack.c.l.b16 %v490
      %v574 = vunpack.c.h.b16 %v490
      %v575 = vunpack.c.l.b16 %v491
      %v576 = vunpack.c.l.b16 %v492
      %v577 = vunpack.c.h.b16 %v492
      %v578 = vunpack.c.l.b16 %v493
      %v579 = vunpack.c.l.b16 %v494
      %v580 = vunpack.c.h.b16 %v494
      %v581 = vunpack.c.l.b16 %v495
      %v582 = vunpack.c.l.b16 %v496
      %v583 = vunpack.c.h.b16 %v496
      %v584 = vunpack.c.l.b16 %v497
      %v585 = vunpack.c.l.b16 %v498
      %v586 = vunpack.c.h.b16 %v498
      %v587 = vunpack.c.l.b16 %v499
      %v588 = vunpack.c.l.b16 %v500
      %v589 = vunpack.c.h.b16 %v500
      %v590 = vunpack.c.l.b16 %v501
      %v591 = vpack.c.b16 %v570, %v567
      %v592 = vpack.c.b16 %v571, %v568
      %v593 = vpack.c.b16 %v572, %v569
      %v594 = vpack.c.b16 %v576, %v573
      %v595 = vpack.c.b16 %v577, %v574
      %v596 = vpack.c.b16 %v578, %v575
      %v597 = vpack.c.b16 %v582, %v579
      %v598 = vpack.c.b16 %v583, %v580
      %v599 = vpack.c.b16 %v584, %v581
      %v600 = vpack.c.b16 %v588, %v585
      %v601 = vpack.c.b16 %v589, %v586
      %v602 = vpack.c.b16 %v590, %v587
      %v663 = vunpack.c.l.b16 %v503
      %v664 = vunpack.c.h.b16 %v503
      %v665 = vunpack.c.l.b16 %v504
      %v666 = vunpack.c.h.b16 %v504
      %v667 = vunpack.c.l.b16 %v505
      %v668 = vunpack.c.h.b16 %v505
      %v669 = vunpack.c.l.b16 %v506
      %v670 = vunpack.c.h.b16 %v506
      %v671 = vunpack.c.l.b16 %v507
      %v672 = vunpack.c.h.b16 %v507
      %v673 = vunpack.c.l.b16 %v508
      %v674 = vunpack.c.h.b16 %v508
      %v675 = vunpack.c.l.b16 %v509
      %v676 = vunpack.c.h.b16 %v509
      %v677 = vunpack.c.l.b16 %v510
      %v678 = vunpack.c.h.b16 %v510
      %v679 = vunpack.c.l.b16 %v511
      %v680 = vunpack.c.h.b16 %v511
      %v681 = vunpack.c.l.b16 %v512
      %v682 = vunpack.c.h.b16 %v512
      %v683 = vunpack.c.l.b16 %v513
      %v684 = vunpack.c.h.b16 %v513
      %v685 = vunpack.c.l.b16 %v514
      %v686 = vunpack.c.h.b16 %v514
      %v687 = vunpack.c.l.b16 %v515
      %v688 = vunpack.c.h.b16 %v515
      %v689 = vunpack.c.l.b16 %v516
      %v690 = vunpack.c.h.b16 %v516
      %v691 = vunpack.c.l.b16 %v517
      %v692 = vunpack.c.h.b16 %v517
      %v693 = vunpack.c.l.b16 %v518
      %v694 = vunpack.c.h.b16 %v518
      %v695 = vunpack.c.l.b16 %v519
      %v696 = vunpack.c.h.b16 %v519
      %v697 = vunpack.c.l.b16 %v520
      %v698 = vunpack.c.h.b16 %v520
      %v699 = vunpack.c.l.b16 %v521
      %v700 = vunpack.c.h.b16 %v521
      %v701 = vunpack.c.l.b16 %v522
      %v702 = vunpack.c.h.b16 %v522
      %v703 = vunpack.c.l.b16 %v523
      %v704 = vunpack.c.h.b16 %v523
      %v705 = vunpack.c.l.b16 %v524
      %v706 = vunpack.c.h.b16 %v524
      %v707 = vunpack.c.l.b16 %v525
      %v708 = vunpack.c.h.b16 %v525
      %v709 = vunpack.c.l.b16 %v526
      %v710 = vunpack.c.h.b16 %v526
      %v711 = vunpack.c.l.b16 %v527
      %v712 = vunpack.c.h.b16 %v527
      %v713 = vunpack.c.l.b16 %v528
      %v714 = vunpack.c.h.b16 %v528
      %v715 = vunpack.c.l.b16 %v529
      %v716 = vunpack.c.h.b16 %v529
      %v717 = vunpack.c.l.b16 %v530
      %v718 = vunpack.c.h.b16 %v530
      %v719 = vunpack.c.l.b16 %v531
      %v720 = vunpack.c.h.b16 %v531
      %v721 = vunpack.c.l.b16 %v532
      %v722 = vunpack.c.h.b16 %v532
      %v723 = vunpack.c.l.b16 %v533
      %v724 = vunpack.c.h.b16 %v533
      %v725 = vunpack.c.l.b16 %v534
      %v726 = vunpack.c.h.b16 %v534
      %v727 = vunpack.c.l.b16 %v535
      %v728 = vunpack.c.h.b16 %v535
      %v729 = vunpack.c.l.b16 %v536
      %v730 = vunpack.c.h.b16 %v536
      %v731 = vunpack.c.l.b16 %v537
      %v732 = vunpack.c.h.b16 %v537
      %v733 = vunpack.c.l.b16 %v538
      %v734 = vunpack.c.h.b16 %v538
      %v735 = vunpack.c.l.b16 %v539
      %v736 = vunpack.c.h.b16 %v539
      %v737 = vunpack.c.l.b16 %v540
      %v738 = vunpack.c.h.b16 %v540
      %v739 = vunpack.c.l.b16 %v541
      %v740 = vunpack.c.h.b16 %v541
      %v741 = vunpack.c.l.b16 %v542
      %v742 = vunpack.c.h.b16 %v542
      %v743 = vunpack.c.l.b16 %v543
      %v744 = vunpack.c.h.b16 %v543
      %v745 = vunpack.c.l.b16 %v544
      %v746 = vunpack.c.h.b16 %v544
      %v747 = vunpack.c.l.b16 %v545
      %v748 = vunpack.c.h.b16 %v545
      %v749 = vunpack.c.l.b16 %v546
      %v750 = vunpack.c.h.b16 %v546
      %v751 = vunpack.c.l.b16 %v547
      %v752 = vunpack.c.h.b16 %v547
      %v753 = vunpack.c.l.b16 %v548
      %v754 = vunpack.c.h.b16 %v548
      %v755 = vunpack.c.l.b16 %v549
      %v756 = vunpack.c.h.b16 %v549
      %v757 = vunpack.c.l.b16 %v550
      %v758 = vunpack.c.h.b16 %v550
      %v759 = vpack.c.b16 %v665, %v663
      %v760 = vpack.c.b16 %v666, %v664
      %v761 = vpack.c.b16 %v669, %v667
      %v762 = vpack.c.b16 %v670, %v668
      %v763 = vpack.c.b16 %v673, %v671
      %v764 = vpack.c.b16 %v674, %v672
      %v765 = vpack.c.b16 %v677, %v675
      %v766 = vpack.c.b16 %v678, %v676
      %v767 = vpack.c.b16 %v681, %v679
      %v768 = vpack.c.b16 %v682, %v680
      %v769 = vpack.c.b16 %v685, %v683
      %v770 = vpack.c.b16 %v686, %v684
      %v771 = vpack.c.b16 %v689, %v687
      %v772 = vpack.c.b16 %v690, %v688
      %v773 = vpack.c.b16 %v693, %v691
      %v774 = vpack.c.b16 %v694, %v692
      %v775 = vpack.c.b16 %v697, %v695
      %v776 = vpack.c.b16 %v698, %v696
      %v777 = vpack.c.b16 %v701, %v699
      %v778 = vpack.c.b16 %v702, %v700
      %v779 = vpack.c.b16 %v705, %v703
      %v780 = vpack.c.b16 %v706, %v704
      %v781 = vpack.c.b16 %v709, %v707
      %v782 = vpack.c.b16 %v710, %v708
      %v783 = vpack.c.b16 %v713, %v711
      %v784 = vpack.c.b16 %v714, %v712
      %v785 = vpack.c.b16 %v717, %v715
      %v786 = vpack.c.b16 %v718, %v716
      %v787 = vpack.c.b16 %v721, %v719
      %v788 = vpack.c.b16 %v722, %v720
      %v789 = vpack.c.b16 %v725, %v723
      %v790 = vpack.c.b16 %v726, %v724
      %v791 = vpack.c.b16 %v729, %v727
      %v792 = vpack.c.b16 %v730, %v728
      %v793 = vpack.c.b16 %v733, %v731
      %v794 = vpack.c.b16 %v734, %v732
      %v795 = vpack.c.b16 %v737, %v735
      %v796 = vpack.c.b16 %v738, %v736
      %v797 = vpack.c.b16 %v741, %v739
      %v798 = vpack.c.b16 %v742, %v740
      %v799 = vpack.c.b16 %v745, %v743
      %v800 = vpack.c.b16 %v746, %v744
      %v801 = vpack.c.b16 %v749, %v747
      %v802 = vpack.c.b16 %v750, %v748
      %v803 = vpack.c.b16 %v753, %v751
      %v804 = vpack.c.b16 %v754, %v752
      %v805 = vpack.c.b16 %v757, %v755
      %v806 = vpack.c.b16 %v758, %v756
      %855 = vmatprep.subr.bf16.mxu0 %v774
      %856 = vmatpush1.bf16.msra.mxu0 %v773
      %857 = vmatprep.subr.bf16.mxu0 %v772
      %858 = vmatpush1.bf16.msra.mxu0 %v771
      %859 = vmatprep.subr.bf16.mxu0 %v770
      %860 = vmatpush1.bf16.msra.mxu0 %v769
      %861 = vmatprep.subr.bf16.mxu0 %v768
      %862 = vmatpush1.bf16.msra.mxu0 %v767
      %863 = vmatprep.subr.bf16.mxu0 %v766
      %864 = vmatpush1.bf16.msra.mxu0 %v765
      %865 = vmatprep.subr.bf16.mxu0 %v764
      %866 = vmatpush1.bf16.msra.mxu0 %v763
      %867 = vmatprep.subr.bf16.mxu0 %v762
      %868 = vmatpush1.bf16.msra.mxu0 %v761
      %869 = vmatprep.subr.bf16.mxu0 %v760
      %870 = vmatpush1.bf16.msra.mxu0 %v759
      %871 = vmatprep.subr.bf16.mxu0 %v790
      %872 = vmatpush2.bf16.msra.mxu0 %v789
      %873 = vmatprep.subr.bf16.mxu0 %v788
      %874 = vmatpush2.bf16.msra.mxu0 %v787
      %875 = vmatprep.subr.bf16.mxu0 %v786
      %876 = vmatpush2.bf16.msra.mxu0 %v785
      %877 = vmatprep.subr.bf16.mxu0 %v784
      %878 = vmatpush2.bf16.msra.mxu0 %v783
      %879 = vmatprep.subr.bf16.mxu0 %v782
      %880 = vmatpush2.bf16.msra.mxu0 %v781
      %881 = vmatprep.subr.bf16.mxu0 %v780
      %882 = vmatpush2.bf16.msra.mxu0 %v779
      %883 = vmatprep.subr.bf16.mxu0 %v778
      %884 = vmatpush2.bf16.msra.mxu0 %v777
      %885 = vmatprep.subr.bf16.mxu0 %v776
      %886 = vmatpush2.bf16.msra.mxu0 %v775
      %887 = vmatprep.mubr.bf16.mxu0 %v592
      %888 = vmatmul.mubr.bf16.gmra.mxu0 %v591
      %v889 = vpop.f32.mrf.mxu0
      %v890 = vadd.f32 0.0, %v889
      %v891 = vpop.f32.mrf.mxu0
      %v892 = vadd.f32 0.0, %v891
      %v893 = vpop.f32.mrf.mxu0
      %v894 = vadd.f32 0.0, %v893
      %v895 = vpop.f32.mrf.mxu0
      %v896 = vadd.f32 0.0, %v895
      %897 = vmatprep.mubr.bf16.mxu0 %v595
      %898 = vmatmul.mubr.bf16.gmra.mxu0 %v594
      %v899 = vpop.f32.mrf.mxu0
      %v900 = vadd.f32 0.0, %v899
      %v901 = vpop.f32.mrf.mxu0
      %v902 = vadd.f32 0.0, %v901
      %v903 = vpop.f32.mrf.mxu0
      %v904 = vadd.f32 0.0, %v903
      %v905 = vpop.f32.mrf.mxu0
      %v906 = vadd.f32 0.0, %v905
      %907 = vmatprep.mubr.bf16.mxu0 %v598
      %908 = vmatmul.mubr.bf16.gmra.mxu0 %v597
      %v909 = vpop.f32.mrf.mxu0
      %v910 = vadd.f32 0.0, %v909
      %v911 = vpop.f32.mrf.mxu0
      %v912 = vadd.f32 0.0, %v911
      %v913 = vpop.f32.mrf.mxu0
      %v914 = vadd.f32 0.0, %v913
      %v915 = vpop.f32.mrf.mxu0
      %v916 = vadd.f32 0.0, %v915
      %917 = vmatprep.mubr.bf16.mxu0 %v601
      %918 = vmatmul.mubr.bf16.gmra.mxu0 %v600
      %v919 = vpop.f32.mrf.mxu0
      %v920 = vadd.f32 0.0, %v919
      %v921 = vpop.f32.mrf.mxu0
      %v922 = vadd.f32 0.0, %v921
      %v923 = vpop.f32.mrf.mxu0
      %v924 = vadd.f32 0.0, %v923
      %v925 = vpop.f32.mrf.mxu0
      %v926 = vadd.f32 0.0, %v925
      %927 = vdwg.mxu0
      %928 = vmatprep.subr.bf16.mxu0 %v806
      %929 = vmatpush1.bf16.msra.mxu0 %v805
      %930 = vmatprep.subr.bf16.mxu0 %v804
      %931 = vmatpush1.bf16.msra.mxu0 %v803
      %932 = vmatprep.subr.bf16.mxu0 %v802
      %933 = vmatpush1.bf16.msra.mxu0 %v801
      %934 = vmatprep.subr.bf16.mxu0 %v800
      %935 = vmatpush1.bf16.msra.mxu0 %v799
      %936 = vmatprep.subr.bf16.mxu0 %v798
      %937 = vmatpush1.bf16.msra.mxu0 %v797
      %938 = vmatprep.subr.bf16.mxu0 %v796
      %939 = vmatpush1.bf16.msra.mxu0 %v795
      %940 = vmatprep.subr.bf16.mxu0 %v794
      %941 = vmatpush1.bf16.msra.mxu0 %v793
      %942 = vmatprep.subr.bf16.mxu0 %v792
      %943 = vmatpush1.bf16.msra.mxu0 %v791
      %944 = vmatprep.subr.bf16.mxu0 0
      %945 = vmatpush2.bf16.msra.mxu0 0
      %946 = vmatprep.subr.bf16.mxu0 0
      %947 = vmatpush2.bf16.msra.mxu0 0
      %948 = vmatprep.subr.bf16.mxu0 0
      %949 = vmatpush2.bf16.msra.mxu0 0
      %950 = vmatprep.subr.bf16.mxu0 0
      %951 = vmatpush2.bf16.msra.mxu0 0
      %952 = vmatprep.subr.bf16.mxu0 0
      %953 = vmatpush2.bf16.msra.mxu0 0
      %954 = vmatprep.subr.bf16.mxu0 0
      %955 = vmatpush2.bf16.msra.mxu0 0
      %956 = vmatprep.subr.bf16.mxu0 0
      %957 = vmatpush2.bf16.msra.mxu0 0
      %958 = vmatprep.subr.bf16.mxu0 0
      %959 = vmatpush2.bf16.msra.mxu0 0
      %960 = vmatprep.mubr.bf16.mxu0 0
      %961 = vmatmul.mubr.bf16.gmra.mxu0 %v593
      %v962 = vpop.f32.mrf.mxu0
      %v963 = vadd.f32 %v890, %v962
      %v964 = vpop.f32.mrf.mxu0
      %v965 = vadd.f32 %v892, %v964
      %v966 = vpop.f32.mrf.mxu0
      %v967 = vadd.f32 %v894, %v966
      %v968 = vpop.f32.mrf.mxu0
      %v969 = vadd.f32 %v896, %v968
      %970 = vmatprep.mubr.bf16.mxu0 0
      %971 = vmatmul.mubr.bf16.gmra.mxu0 %v596
      %v972 = vpop.f32.mrf.mxu0
      %v973 = vadd.f32 %v900, %v972
      %v974 = vpop.f32.mrf.mxu0
      %v975 = vadd.f32 %v902, %v974
      %v976 = vpop.f32.mrf.mxu0
      %v977 = vadd.f32 %v904, %v976
      %v978 = vpop.f32.mrf.mxu0
      %v979 = vadd.f32 %v906, %v978
      %980 = vmatprep.mubr.bf16.mxu0 0
      %981 = vmatmul.mubr.bf16.gmra.mxu0 %v599
      %v982 = vpop.f32.mrf.mxu0
      %v983 = vadd.f32 %v910, %v982
      %v984 = vpop.f32.mrf.mxu0
      %v985 = vadd.f32 %v912, %v984
      %v986 = vpop.f32.mrf.mxu0
      %v987 = vadd.f32 %v914, %v986
      %v988 = vpop.f32.mrf.mxu0
      %v989 = vadd.f32 %v916, %v988
      %990 = vmatprep.mubr.bf16.mxu0 0
      %991 = vmatmul.mubr.bf16.gmra.mxu0 %v602
      %v992 = vpop.f32.mrf.mxu0
      %v993 = vadd.f32 %v920, %v992
      %v994 = vpop.f32.mrf.mxu0
      %v995 = vadd.f32 %v922, %v994
      %v996 = vpop.f32.mrf.mxu0
      %v997 = vadd.f32 %v924, %v996
      %v998 = vpop.f32.mrf.mxu0
      %v999 = vadd.f32 %v926, %v998
      %1000 = vdwg.mxu0
      %v1017 = vunpack.c.l.b16 %v422
      %v1018 = vunpack.c.h.b16 %v422
      %v1019 = vunpack.c.l.b16 %v423
      %v1020 = vunpack.c.l.b16 %v424
      %v1021 = vunpack.c.h.b16 %v424
      %v1022 = vunpack.c.l.b16 %v425
      %v1023 = vunpack.c.l.b16 %v426
      %v1024 = vunpack.c.h.b16 %v426
      %v1025 = vunpack.c.l.b16 %v427
      %v1026 = vunpack.c.l.b16 %v428
      %v1027 = vunpack.c.h.b16 %v428
      %v1028 = vunpack.c.l.b16 %v429
      %v1029 = vunpack.c.l.b16 %v430
      %v1030 = vunpack.c.h.b16 %v430
      %v1031 = vunpack.c.l.b16 %v431
      %v1032 = vunpack.c.l.b16 %v432
      %v1033 = vunpack.c.h.b16 %v432
      %v1034 = vunpack.c.l.b16 %v433
      %v1035 = vunpack.c.l.b16 %v434
      %v1036 = vunpack.c.h.b16 %v434
      %v1037 = vunpack.c.l.b16 %v435
      %v1038 = vunpack.c.l.b16 %v436
      %v1039 = vunpack.c.h.b16 %v436
      %v1040 = vunpack.c.l.b16 %v437
      %v1041 = vpack.c.b16 %v1020, %v1017
      %v1042 = vpack.c.b16 %v1021, %v1018
      %v1043 = vpack.c.b16 %v1022, %v1019
      %v1044 = vpack.c.b16 %v1026, %v1023
      %v1045 = vpack.c.b16 %v1027, %v1024
      %v1046 = vpack.c.b16 %v1028, %v1025
      %v1047 = vpack.c.b16 %v1032, %v1029
      %v1048 = vpack.c.b16 %v1033, %v1030
      %v1049 = vpack.c.b16 %v1034, %v1031
      %v1050 = vpack.c.b16 %v1038, %v1035
      %v1051 = vpack.c.b16 %v1039, %v1036
      %v1052 = vpack.c.b16 %v1040, %v1037
      %v1113 = vunpack.c.l.b16 %v438
      %v1114 = vunpack.c.h.b16 %v438
      %v1115 = vunpack.c.l.b16 %v439
      %v1116 = vunpack.c.h.b16 %v439
      %v1117 = vunpack.c.l.b16 %v440
      %v1118 = vunpack.c.h.b16 %v440
      %v1119 = vunpack.c.l.b16 %v441
      %v1120 = vunpack.c.h.b16 %v441
      %v1121 = vunpack.c.l.b16 %v442
      %v1122 = vunpack.c.h.b16 %v442
      %v1123 = vunpack.c.l.b16 %v443
      %v1124 = vunpack.c.h.b16 %v443
      %v1125 = vunpack.c.l.b16 %v444
      %v1126 = vunpack.c.h.b16 %v444
      %v1127 = vunpack.c.l.b16 %v445
      %v1128 = vunpack.c.h.b16 %v445
      %v1129 = vunpack.c.l.b16 %v446
      %v1130 = vunpack.c.h.b16 %v446
      %v1131 = vunpack.c.l.b16 %v447
      %v1132 = vunpack.c.h.b16 %v447
      %v1133 = vunpack.c.l.b16 %v448
      %v1134 = vunpack.c.h.b16 %v448
      %v1135 = vunpack.c.l.b16 %v449
      %v1136 = vunpack.c.h.b16 %v449
      %v1137 = vunpack.c.l.b16 %v450
      %v1138 = vunpack.c.h.b16 %v450
      %v1139 = vunpack.c.l.b16 %v451
      %v1140 = vunpack.c.h.b16 %v451
      %v1141 = vunpack.c.l.b16 %v452
      %v1142 = vunpack.c.h.b16 %v452
      %v1143 = vunpack.c.l.b16 %v453
      %v1144 = vunpack.c.h.b16 %v453
      %v1145 = vunpack.c.l.b16 %v454
      %v1146 = vunpack.c.h.b16 %v454
      %v1147 = vunpack.c.l.b16 %v455
      %v1148 = vunpack.c.h.b16 %v455
      %v1149 = vunpack.c.l.b16 %v456
      %v1150 = vunpack.c.h.b16 %v456
      %v1151 = vunpack.c.l.b16 %v457
      %v1152 = vunpack.c.h.b16 %v457
      %v1153 = vunpack.c.l.b16 %v458
      %v1154 = vunpack.c.h.b16 %v458
      %v1155 = vunpack.c.l.b16 %v459
      %v1156 = vunpack.c.h.b16 %v459
      %v1157 = vunpack.c.l.b16 %v460
      %v1158 = vunpack.c.h.b16 %v460
      %v1159 = vunpack.c.l.b16 %v461
      %v1160 = vunpack.c.h.b16 %v461
      %v1161 = vunpack.c.l.b16 %v462
      %v1162 = vunpack.c.h.b16 %v462
      %v1163 = vunpack.c.l.b16 %v463
      %v1164 = vunpack.c.h.b16 %v463
      %v1165 = vunpack.c.l.b16 %v464
      %v1166 = vunpack.c.h.b16 %v464
      %v1167 = vunpack.c.l.b16 %v465
      %v1168 = vunpack.c.h.b16 %v465
      %v1169 = vunpack.c.l.b16 %v466
      %v1170 = vunpack.c.h.b16 %v466
      %v1171 = vunpack.c.l.b16 %v467
      %v1172 = vunpack.c.h.b16 %v467
      %v1173 = vunpack.c.l.b16 %v468
      %v1174 = vunpack.c.h.b16 %v468
      %v1175 = vunpack.c.l.b16 %v469
      %v1176 = vunpack.c.h.b16 %v469
      %v1177 = vunpack.c.l.b16 %v470
      %v1178 = vunpack.c.h.b16 %v470
      %v1179 = vunpack.c.l.b16 %v471
      %v1180 = vunpack.c.h.b16 %v471
      %v1181 = vunpack.c.l.b16 %v472
      %v1182 = vunpack.c.h.b16 %v472
      %v1183 = vunpack.c.l.b16 %v473
      %v1184 = vunpack.c.h.b16 %v473
      %v1185 = vunpack.c.l.b16 %v474
      %v1186 = vunpack.c.h.b16 %v474
      %v1187 = vunpack.c.l.b16 %v475
      %v1188 = vunpack.c.h.b16 %v475
      %v1189 = vunpack.c.l.b16 %v476
      %v1190 = vunpack.c.h.b16 %v476
      %v1191 = vunpack.c.l.b16 %v477
      %v1192 = vunpack.c.h.b16 %v477
      %v1193 = vunpack.c.l.b16 %v478
      %v1194 = vunpack.c.h.b16 %v478
      %v1195 = vunpack.c.l.b16 %v479
      %v1196 = vunpack.c.h.b16 %v479
      %v1197 = vunpack.c.l.b16 %v480
      %v1198 = vunpack.c.h.b16 %v480
      %v1199 = vunpack.c.l.b16 %v481
      %v1200 = vunpack.c.h.b16 %v481
      %v1201 = vunpack.c.l.b16 %v482
      %v1202 = vunpack.c.h.b16 %v482
      %v1203 = vunpack.c.l.b16 %v483
      %v1204 = vunpack.c.h.b16 %v483
      %v1205 = vunpack.c.l.b16 %v484
      %v1206 = vunpack.c.h.b16 %v484
      %v1207 = vunpack.c.l.b16 %v485
      %v1208 = vunpack.c.h.b16 %v485
      %v1209 = vpack.c.b16 %v1115, %v1113
      %v1210 = vpack.c.b16 %v1116, %v1114
      %v1211 = vpack.c.b16 %v1119, %v1117
      %v1212 = vpack.c.b16 %v1120, %v1118
      %v1213 = vpack.c.b16 %v1123, %v1121
      %v1214 = vpack.c.b16 %v1124, %v1122
      %v1215 = vpack.c.b16 %v1127, %v1125
      %v1216 = vpack.c.b16 %v1128, %v1126
      %v1217 = vpack.c.b16 %v1131, %v1129
      %v1218 = vpack.c.b16 %v1132, %v1130
      %v1219 = vpack.c.b16 %v1135, %v1133
      %v1220 = vpack.c.b16 %v1136, %v1134
      %v1221 = vpack.c.b16 %v1139, %v1137
      %v1222 = vpack.c.b16 %v1140, %v1138
      %v1223 = vpack.c.b16 %v1143, %v1141
      %v1224 = vpack.c.b16 %v1144, %v1142
      %v1225 = vpack.c.b16 %v1147, %v1145
      %v1226 = vpack.c.b16 %v1148, %v1146
      %v1227 = vpack.c.b16 %v1151, %v1149
      %v1228 = vpack.c.b16 %v1152, %v1150
      %v1229 = vpack.c.b16 %v1155, %v1153
      %v1230 = vpack.c.b16 %v1156, %v1154
      %v1231 = vpack.c.b16 %v1159, %v1157
      %v1232 = vpack.c.b16 %v1160, %v1158
      %v1233 = vpack.c.b16 %v1163, %v1161
      %v1234 = vpack.c.b16 %v1164, %v1162
      %v1235 = vpack.c.b16 %v1167, %v1165
      %v1236 = vpack.c.b16 %v1168, %v1166
      %v1237 = vpack.c.b16 %v1171, %v1169
      %v1238 = vpack.c.b16 %v1172, %v1170
      %v1239 = vpack.c.b16 %v1175, %v1173
      %v1240 = vpack.c.b16 %v1176, %v1174
      %v1241 = vpack.c.b16 %v1179, %v1177
      %v1242 = vpack.c.b16 %v1180, %v1178
      %v1243 = vpack.c.b16 %v1183, %v1181
      %v1244 = vpack.c.b16 %v1184, %v1182
      %v1245 = vpack.c.b16 %v1187, %v1185
      %v1246 = vpack.c.b16 %v1188, %v1186
      %v1247 = vpack.c.b16 %v1191, %v1189
      %v1248 = vpack.c.b16 %v1192, %v1190
      %v1249 = vpack.c.b16 %v1195, %v1193
      %v1250 = vpack.c.b16 %v1196, %v1194
      %v1251 = vpack.c.b16 %v1199, %v1197
      %v1252 = vpack.c.b16 %v1200, %v1198
      %v1253 = vpack.c.b16 %v1203, %v1201
      %v1254 = vpack.c.b16 %v1204, %v1202
      %v1255 = vpack.c.b16 %v1207, %v1205
      %v1256 = vpack.c.b16 %v1208, %v1206
      %1305 = vmatprep.subr.bf16.mxu0 %v1224
      %1306 = vmatpush1.bf16.msra.mxu0 %v1223
      %1307 = vmatprep.subr.bf16.mxu0 %v1222
      %1308 = vmatpush1.bf16.msra.mxu0 %v1221
      %1309 = vmatprep.subr.bf16.mxu0 %v1220
      %1310 = vmatpush1.bf16.msra.mxu0 %v1219
      %1311 = vmatprep.subr.bf16.mxu0 %v1218
      %1312 = vmatpush1.bf16.msra.mxu0 %v1217
      %1313 = vmatprep.subr.bf16.mxu0 %v1216
      %1314 = vmatpush1.bf16.msra.mxu0 %v1215
      %1315 = vmatprep.subr.bf16.mxu0 %v1214
      %1316 = vmatpush1.bf16.msra.mxu0 %v1213
      %1317 = vmatprep.subr.bf16.mxu0 %v1212
      %1318 = vmatpush1.bf16.msra.mxu0 %v1211
      %1319 = vmatprep.subr.bf16.mxu0 %v1210
      %1320 = vmatpush1.bf16.msra.mxu0 %v1209
      %1321 = vmatprep.subr.bf16.mxu0 %v1240
      %1322 = vmatpush2.bf16.msra.mxu0 %v1239
      %1323 = vmatprep.subr.bf16.mxu0 %v1238
      %1324 = vmatpush2.bf16.msra.mxu0 %v1237
      %1325 = vmatprep.subr.bf16.mxu0 %v1236
      %1326 = vmatpush2.bf16.msra.mxu0 %v1235
      %1327 = vmatprep.subr.bf16.mxu0 %v1234
      %1328 = vmatpush2.bf16.msra.mxu0 %v1233
      %1329 = vmatprep.subr.bf16.mxu0 %v1232
      %1330 = vmatpush2.bf16.msra.mxu0 %v1231
      %1331 = vmatprep.subr.bf16.mxu0 %v1230
      %1332 = vmatpush2.bf16.msra.mxu0 %v1229
      %1333 = vmatprep.subr.bf16.mxu0 %v1228
      %1334 = vmatpush2.bf16.msra.mxu0 %v1227
      %1335 = vmatprep.subr.bf16.mxu0 %v1226
      %1336 = vmatpush2.bf16.msra.mxu0 %v1225
      %1337 = vmatprep.mubr.bf16.mxu0 %v1042
      %1338 = vmatmul.mubr.bf16.gmra.mxu0 %v1041
      %v1339 = vpop.f32.mrf.mxu0
      %v1340 = vadd.f32 %v963, %v1339
      %v1341 = vpop.f32.mrf.mxu0
      %v1342 = vadd.f32 %v965, %v1341
      %v1343 = vpop.f32.mrf.mxu0
      %v1344 = vadd.f32 %v967, %v1343
      %v1345 = vpop.f32.mrf.mxu0
      %v1346 = vadd.f32 %v969, %v1345
      %1347 = vmatprep.mubr.bf16.mxu0 %v1045
      %1348 = vmatmul.mubr.bf16.gmra.mxu0 %v1044
      %v1349 = vpop.f32.mrf.mxu0
      %v1350 = vadd.f32 %v973, %v1349
      %v1351 = vpop.f32.mrf.mxu0
      %v1352 = vadd.f32 %v975, %v1351
      %v1353 = vpop.f32.mrf.mxu0
      %v1354 = vadd.f32 %v977, %v1353
      %v1355 = vpop.f32.mrf.mxu0
      %v1356 = vadd.f32 %v979, %v1355
      %1357 = vmatprep.mubr.bf16.mxu0 %v1048
      %1358 = vmatmul.mubr.bf16.gmra.mxu0 %v1047
      %v1359 = vpop.f32.mrf.mxu0
      %v1360 = vadd.f32 %v983, %v1359
      %v1361 = vpop.f32.mrf.mxu0
      %v1362 = vadd.f32 %v985, %v1361
      %v1363 = vpop.f32.mrf.mxu0
      %v1364 = vadd.f32 %v987, %v1363
      %v1365 = vpop.f32.mrf.mxu0
      %v1366 = vadd.f32 %v989, %v1365
      %1367 = vmatprep.mubr.bf16.mxu0 %v1051
      %1368 = vmatmul.mubr.bf16.gmra.mxu0 %v1050
      %v1369 = vpop.f32.mrf.mxu0
      %v1370 = vadd.f32 %v993, %v1369
      %v1371 = vpop.f32.mrf.mxu0
      %v1372 = vadd.f32 %v995, %v1371
      %v1373 = vpop.f32.mrf.mxu0
      %v1374 = vadd.f32 %v997, %v1373
      %v1375 = vpop.f32.mrf.mxu0
      %v1376 = vadd.f32 %v999, %v1375
      %1377 = vdwg.mxu0
      %1378 = vmatprep.subr.bf16.mxu0 %v1256
      %1379 = vmatpush1.bf16.msra.mxu0 %v1255
      %1380 = vmatprep.subr.bf16.mxu0 %v1254
      %1381 = vmatpush1.bf16.msra.mxu0 %v1253
      %1382 = vmatprep.subr.bf16.mxu0 %v1252
      %1383 = vmatpush1.bf16.msra.mxu0 %v1251
      %1384 = vmatprep.subr.bf16.mxu0 %v1250
      %1385 = vmatpush1.bf16.msra.mxu0 %v1249
      %1386 = vmatprep.subr.bf16.mxu0 %v1248
      %1387 = vmatpush1.bf16.msra.mxu0 %v1247
      %1388 = vmatprep.subr.bf16.mxu0 %v1246
      %1389 = vmatpush1.bf16.msra.mxu0 %v1245
      %1390 = vmatprep.subr.bf16.mxu0 %v1244
      %1391 = vmatpush1.bf16.msra.mxu0 %v1243
      %1392 = vmatprep.subr.bf16.mxu0 %v1242
      %1393 = vmatpush1.bf16.msra.mxu0 %v1241
      %1394 = vmatprep.subr.bf16.mxu0 0
      %1395 = vmatpush2.bf16.msra.mxu0 0
      %1396 = vmatprep.subr.bf16.mxu0 0
      %1397 = vmatpush2.bf16.msra.mxu0 0
      %1398 = vmatprep.subr.bf16.mxu0 0
      %1399 = vmatpush2.bf16.msra.mxu0 0
      %1400 = vmatprep.subr.bf16.mxu0 0
      %1401 = vmatpush2.bf16.msra.mxu0 0
      %1402 = vmatprep.subr.bf16.mxu0 0
      %1403 = vmatpush2.bf16.msra.mxu0 0
      %1404 = vmatprep.subr.bf16.mxu0 0
      %1405 = vmatpush2.bf16.msra.mxu0 0
      %1406 = vmatprep.subr.bf16.mxu0 0
      %1407 = vmatpush2.bf16.msra.mxu0 0
      %1408 = vmatprep.subr.bf16.mxu0 0
      %1409 = vmatpush2.bf16.msra.mxu0 0
      %1410 = vmatprep.mubr.bf16.mxu0 0
      %1411 = vmatmul.mubr.bf16.gmra.mxu0 %v1043
      %v1412 = vpop.f32.mrf.mxu0
      %v1413 = vadd.f32 %v1340, %v1412
      %v1414 = vpop.f32.mrf.mxu0
      %v1415 = vadd.f32 %v1342, %v1414
      %v1416 = vpop.f32.mrf.mxu0
      %v1417 = vadd.f32 %v1344, %v1416
      %v1418 = vpop.f32.mrf.mxu0
      %v1419 = vadd.f32 %v1346, %v1418
      %1420 = vmatprep.mubr.bf16.mxu0 0
      %1421 = vmatmul.mubr.bf16.gmra.mxu0 %v1046
      %v1422 = vpop.f32.mrf.mxu0
      %v1423 = vadd.f32 %v1350, %v1422
      %v1424 = vpop.f32.mrf.mxu0
      %v1425 = vadd.f32 %v1352, %v1424
      %v1426 = vpop.f32.mrf.mxu0
      %v1427 = vadd.f32 %v1354, %v1426
      %v1428 = vpop.f32.mrf.mxu0
      %v1429 = vadd.f32 %v1356, %v1428
      %1430 = vmatprep.mubr.bf16.mxu0 0
      %1431 = vmatmul.mubr.bf16.gmra.mxu0 %v1049
      %v1432 = vpop.f32.mrf.mxu0
      %v1433 = vadd.f32 %v1360, %v1432
      %v1434 = vpop.f32.mrf.mxu0
      %v1435 = vadd.f32 %v1362, %v1434
      %v1436 = vpop.f32.mrf.mxu0
      %v1437 = vadd.f32 %v1364, %v1436
      %v1438 = vpop.f32.mrf.mxu0
      %v1439 = vadd.f32 %v1366, %v1438
      %1440 = vmatprep.mubr.bf16.mxu0 0
      %1441 = vmatmul.mubr.bf16.gmra.mxu0 %v1052
      %v1442 = vpop.f32.mrf.mxu0
      %v1443 = vadd.f32 %v1370, %v1442
      %v1444 = vpop.f32.mrf.mxu0
      %v1445 = vadd.f32 %v1372, %v1444
      %v1446 = vpop.f32.mrf.mxu0
      %v1447 = vadd.f32 %v1374, %v1446
      %v1448 = vpop.f32.mrf.mxu0
      %v1449 = vadd.f32 %v1376, %v1448
      %1450 = vdwg.mxu0
      %s1451 = scalar_lea.vmem [#allocation2], 24
      %v1452 = vld [vmem:[%s1451] sm:$0xff]
      %v1453 = vld [vmem:[%s1451 + $0x8] sm:$0xf]
      %v1454 = vld [vmem:[%s1451 + $0xc] sm:$0xff]
      %v1455 = vld [vmem:[%s1451 + $0x14] sm:$0xf]
      %v1456 = vld [vmem:[%s1451 + $0x18] sm:$0xff]
      %v1457 = vld [vmem:[%s1451 + $0x20] sm:$0xf]
      %v1458 = vld [vmem:[%s1451 + $0x24] sm:$0xff]
      %v1459 = vld [vmem:[%s1451 + $0x2c] sm:$0xf]
      %v1460 = vld [vmem:[%s1451 + $0x30] sm:$0xff]
      %v1461 = vld [vmem:[%s1451 + $0x38] sm:$0xf]
      %v1462 = vld [vmem:[%s1451 + $0x3c] sm:$0xff]
      %v1463 = vld [vmem:[%s1451 + $0x44] sm:$0xf]
      %v1464 = vld [vmem:[%s1451 + $0x48] sm:$0xff]
      %v1465 = vld [vmem:[%s1451 + $0x50] sm:$0xf]
      %v1466 = vld [vmem:[%s1451 + $0x54] sm:$0xff]
      %v1467 = vld [vmem:[%s1451 + $0x5c] sm:$0xf]
      %s1468 = scalar_lea.vmem %s1, 768
      %v1469 = vld [vmem:[%s1468] sm:$0xff]
      %v1470 = vld [vmem:[%s1468 + $0x8] sm:$0xff]
      %v1471 = vld [vmem:[%s1468 + $0x10] sm:$0xff]
      %v1472 = vld [vmem:[%s1468 + $0x18] sm:$0xff]
      %v1473 = vld [vmem:[%s1468 + $0x20] sm:$0xff]
      %v1474 = vld [vmem:[%s1468 + $0x28] sm:$0xff]
      %v1475 = vld [vmem:[%s1468 + $0x30] sm:$0xff]
      %v1476 = vld [vmem:[%s1468 + $0x38] sm:$0xff]
      %v1477 = vld [vmem:[%s1468 + $0x40] sm:$0xff]
      %v1478 = vld [vmem:[%s1468 + $0x48] sm:$0xff]
      %v1479 = vld [vmem:[%s1468 + $0x50] sm:$0xff]
      %v1480 = vld [vmem:[%s1468 + $0x58] sm:$0xff]
      %v1481 = vld [vmem:[%s1468 + $0x60] sm:$0xff]
      %v1482 = vld [vmem:[%s1468 + $0x68] sm:$0xff]
      %v1483 = vld [vmem:[%s1468 + $0x70] sm:$0xff]
      %v1484 = vld [vmem:[%s1468 + $0x78] sm:$0xff]
      %v1485 = vld [vmem:[%s1468 + $0x80] sm:$0xff]
      %v1486 = vld [vmem:[%s1468 + $0x88] sm:$0xff]
      %v1487 = vld [vmem:[%s1468 + $0x90] sm:$0xff]
      %v1488 = vld [vmem:[%s1468 + $0x98] sm:$0xff]
      %v1489 = vld [vmem:[%s1468 + $0xa0] sm:$0xff]
      %v1490 = vld [vmem:[%s1468 + $0xa8] sm:$0xff]
      %v1491 = vld [vmem:[%s1468 + $0xb0] sm:$0xff]
      %v1492 = vld [vmem:[%s1468 + $0xb8] sm:$0xff]
      %v1493 = vld [vmem:[%s1468 + $0xc0] sm:$0xff]
      %v1494 = vld [vmem:[%s1468 + $0xc8] sm:$0xff]
      %v1495 = vld [vmem:[%s1468 + $0xd0] sm:$0xff]
      %v1496 = vld [vmem:[%s1468 + $0xd8] sm:$0xff]
      %v1497 = vld [vmem:[%s1468 + $0xe0] sm:$0xff]
      %v1498 = vld [vmem:[%s1468 + $0xe8] sm:$0xff]
      %v1499 = vld [vmem:[%s1468 + $0xf0] sm:$0xff]
      %v1500 = vld [vmem:[%s1468 + $0xf8] sm:$0xff]
      %v1501 = vld [vmem:[%s1468 + $0x100] sm:$0xff]
      %v1502 = vld [vmem:[%s1468 + $0x108] sm:$0xff]
      %v1503 = vld [vmem:[%s1468 + $0x110] sm:$0xff]
      %v1504 = vld [vmem:[%s1468 + $0x118] sm:$0xff]
      %v1505 = vld [vmem:[%s1468 + $0x120] sm:$0xff]
      %v1506 = vld [vmem:[%s1468 + $0x128] sm:$0xff]
      %v1507 = vld [vmem:[%s1468 + $0x130] sm:$0xff]
      %v1508 = vld [vmem:[%s1468 + $0x138] sm:$0xff]
      %v1509 = vld [vmem:[%s1468 + $0x140] sm:$0xff]
      %v1510 = vld [vmem:[%s1468 + $0x148] sm:$0xff]
      %v1511 = vld [vmem:[%s1468 + $0x150] sm:$0xff]
      %v1512 = vld [vmem:[%s1468 + $0x158] sm:$0xff]
      %v1513 = vld [vmem:[%s1468 + $0x160] sm:$0xff]
      %v1514 = vld [vmem:[%s1468 + $0x168] sm:$0xff]
      %v1515 = vld [vmem:[%s1468 + $0x170] sm:$0xff]
      %v1516 = vld [vmem:[%s1468 + $0x178] sm:$0xff]
      %v1533 = vunpack.c.l.b16 %v1452
      %v1534 = vunpack.c.h.b16 %v1452
      %v1535 = vunpack.c.l.b16 %v1453
      %v1536 = vunpack.c.l.b16 %v1454
      %v1537 = vunpack.c.h.b16 %v1454
      %v1538 = vunpack.c.l.b16 %v1455
      %v1539 = vunpack.c.l.b16 %v1456
      %v1540 = vunpack.c.h.b16 %v1456
      %v1541 = vunpack.c.l.b16 %v1457
      %v1542 = vunpack.c.l.b16 %v1458
      %v1543 = vunpack.c.h.b16 %v1458
      %v1544 = vunpack.c.l.b16 %v1459
      %v1545 = vunpack.c.l.b16 %v1460
      %v1546 = vunpack.c.h.b16 %v1460
      %v1547 = vunpack.c.l.b16 %v1461
      %v1548 = vunpack.c.l.b16 %v1462
      %v1549 = vunpack.c.h.b16 %v1462
      %v1550 = vunpack.c.l.b16 %v1463
      %v1551 = vunpack.c.l.b16 %v1464
      %v1552 = vunpack.c.h.b16 %v1464
      %v1553 = vunpack.c.l.b16 %v1465
      %v1554 = vunpack.c.l.b16 %v1466
      %v1555 = vunpack.c.h.b16 %v1466
      %v1556 = vunpack.c.l.b16 %v1467
      %v1557 = vpack.c.b16 %v1536, %v1533
      %v1558 = vpack.c.b16 %v1537, %v1534
      %v1559 = vpack.c.b16 %v1538, %v1535
      %v1560 = vpack.c.b16 %v1542, %v1539
      %v1561 = vpack.c.b16 %v1543, %v1540
      %v1562 = vpack.c.b16 %v1544, %v1541
      %v1563 = vpack.c.b16 %v1548, %v1545
      %v1564 = vpack.c.b16 %v1549, %v1546
      %v1565 = vpack.c.b16 %v1550, %v1547
      %v1566 = vpack.c.b16 %v1554, %v1551
      %v1567 = vpack.c.b16 %v1555, %v1552
      %v1568 = vpack.c.b16 %v1556, %v1553
      %v1629 = vunpack.c.l.b16 %v1469
      %v1630 = vunpack.c.h.b16 %v1469
      %v1631 = vunpack.c.l.b16 %v1470
      %v1632 = vunpack.c.h.b16 %v1470
      %v1633 = vunpack.c.l.b16 %v1471
      %v1634 = vunpack.c.h.b16 %v1471
      %v1635 = vunpack.c.l.b16 %v1472
      %v1636 = vunpack.c.h.b16 %v1472
      %v1637 = vunpack.c.l.b16 %v1473
      %v1638 = vunpack.c.h.b16 %v1473
      %v1639 = vunpack.c.l.b16 %v1474
      %v1640 = vunpack.c.h.b16 %v1474
      %v1641 = vunpack.c.l.b16 %v1475
      %v1642 = vunpack.c.h.b16 %v1475
      %v1643 = vunpack.c.l.b16 %v1476
      %v1644 = vunpack.c.h.b16 %v1476
      %v1645 = vunpack.c.l.b16 %v1477
      %v1646 = vunpack.c.h.b16 %v1477
      %v1647 = vunpack.c.l.b16 %v1478
      %v1648 = vunpack.c.h.b16 %v1478
      %v1649 = vunpack.c.l.b16 %v1479
      %v1650 = vunpack.c.h.b16 %v1479
      %v1651 = vunpack.c.l.b16 %v1480
      %v1652 = vunpack.c.h.b16 %v1480
      %v1653 = vunpack.c.l.b16 %v1481
      %v1654 = vunpack.c.h.b16 %v1481
      %v1655 = vunpack.c.l.b16 %v1482
      %v1656 = vunpack.c.h.b16 %v1482
      %v1657 = vunpack.c.l.b16 %v1483
      %v1658 = vunpack.c.h.b16 %v1483
      %v1659 = vunpack.c.l.b16 %v1484
      %v1660 = vunpack.c.h.b16 %v1484
      %v1661 = vunpack.c.l.b16 %v1485
      %v1662 = vunpack.c.h.b16 %v1485
      %v1663 = vunpack.c.l.b16 %v1486
      %v1664 = vunpack.c.h.b16 %v1486
      %v1665 = vunpack.c.l.b16 %v1487
      %v1666 = vunpack.c.h.b16 %v1487
      %v1667 = vunpack.c.l.b16 %v1488
      %v1668 = vunpack.c.h.b16 %v1488
      %v1669 = vunpack.c.l.b16 %v1489
      %v1670 = vunpack.c.h.b16 %v1489
      %v1671 = vunpack.c.l.b16 %v1490
      %v1672 = vunpack.c.h.b16 %v1490
      %v1673 = vunpack.c.l.b16 %v1491
      %v1674 = vunpack.c.h.b16 %v1491
      %v1675 = vunpack.c.l.b16 %v1492
      %v1676 = vunpack.c.h.b16 %v1492
      %v1677 = vunpack.c.l.b16 %v1493
      %v1678 = vunpack.c.h.b16 %v1493
      %v1679 = vunpack.c.l.b16 %v1494
      %v1680 = vunpack.c.h.b16 %v1494
      %v1681 = vunpack.c.l.b16 %v1495
      %v1682 = vunpack.c.h.b16 %v1495
      %v1683 = vunpack.c.l.b16 %v1496
      %v1684 = vunpack.c.h.b16 %v1496
      %v1685 = vunpack.c.l.b16 %v1497
      %v1686 = vunpack.c.h.b16 %v1497
      %v1687 = vunpack.c.l.b16 %v1498
      %v1688 = vunpack.c.h.b16 %v1498
      %v1689 = vunpack.c.l.b16 %v1499
      %v1690 = vunpack.c.h.b16 %v1499
      %v1691 = vunpack.c.l.b16 %v1500
      %v1692 = vunpack.c.h.b16 %v1500
      %v1693 = vunpack.c.l.b16 %v1501
      %v1694 = vunpack.c.h.b16 %v1501
      %v1695 = vunpack.c.l.b16 %v1502
      %v1696 = vunpack.c.h.b16 %v1502
      %v1697 = vunpack.c.l.b16 %v1503
      %v1698 = vunpack.c.h.b16 %v1503
      %v1699 = vunpack.c.l.b16 %v1504
      %v1700 = vunpack.c.h.b16 %v1504
      %v1701 = vunpack.c.l.b16 %v1505
      %v1702 = vunpack.c.h.b16 %v1505
      %v1703 = vunpack.c.l.b16 %v1506
      %v1704 = vunpack.c.h.b16 %v1506
      %v1705 = vunpack.c.l.b16 %v1507
      %v1706 = vunpack.c.h.b16 %v1507
      %v1707 = vunpack.c.l.b16 %v1508
      %v1708 = vunpack.c.h.b16 %v1508
      %v1709 = vunpack.c.l.b16 %v1509
      %v1710 = vunpack.c.h.b16 %v1509
      %v1711 = vunpack.c.l.b16 %v1510
      %v1712 = vunpack.c.h.b16 %v1510
      %v1713 = vunpack.c.l.b16 %v1511
      %v1714 = vunpack.c.h.b16 %v1511
      %v1715 = vunpack.c.l.b16 %v1512
      %v1716 = vunpack.c.h.b16 %v1512
      %v1717 = vunpack.c.l.b16 %v1513
      %v1718 = vunpack.c.h.b16 %v1513
      %v1719 = vunpack.c.l.b16 %v1514
      %v1720 = vunpack.c.h.b16 %v1514
      %v1721 = vunpack.c.l.b16 %v1515
      %v1722 = vunpack.c.h.b16 %v1515
      %v1723 = vunpack.c.l.b16 %v1516
      %v1724 = vunpack.c.h.b16 %v1516
      %v1725 = vpack.c.b16 %v1631, %v1629
      %v1726 = vpack.c.b16 %v1632, %v1630
      %v1727 = vpack.c.b16 %v1635, %v1633
      %v1728 = vpack.c.b16 %v1636, %v1634
      %v1729 = vpack.c.b16 %v1639, %v1637
      %v1730 = vpack.c.b16 %v1640, %v1638
      %v1731 = vpack.c.b16 %v1643, %v1641
      %v1732 = vpack.c.b16 %v1644, %v1642
      %v1733 = vpack.c.b16 %v1647, %v1645
      %v1734 = vpack.c.b16 %v1648, %v1646
      %v1735 = vpack.c.b16 %v1651, %v1649
      %v1736 = vpack.c.b16 %v1652, %v1650
      %v1737 = vpack.c.b16 %v1655, %v1653
      %v1738 = vpack.c.b16 %v1656, %v1654
      %v1739 = vpack.c.b16 %v1659, %v1657
      %v1740 = vpack.c.b16 %v1660, %v1658
      %v1741 = vpack.c.b16 %v1663, %v1661
      %v1742 = vpack.c.b16 %v1664, %v1662
      %v1743 = vpack.c.b16 %v1667, %v1665
      %v1744 = vpack.c.b16 %v1668, %v1666
      %v1745 = vpack.c.b16 %v1671, %v1669
      %v1746 = vpack.c.b16 %v1672, %v1670
      %v1747 = vpack.c.b16 %v1675, %v1673
      %v1748 = vpack.c.b16 %v1676, %v1674
      %v1749 = vpack.c.b16 %v1679, %v1677
      %v1750 = vpack.c.b16 %v1680, %v1678
      %v1751 = vpack.c.b16 %v1683, %v1681
      %v1752 = vpack.c.b16 %v1684, %v1682
      %v1753 = vpack.c.b16 %v1687, %v1685
      %v1754 = vpack.c.b16 %v1688, %v1686
      %v1755 = vpack.c.b16 %v1691, %v1689
      %v1756 = vpack.c.b16 %v1692, %v1690
      %v1757 = vpack.c.b16 %v1695, %v1693
      %v1758 = vpack.c.b16 %v1696, %v1694
      %v1759 = vpack.c.b16 %v1699, %v1697
      %v1760 = vpack.c.b16 %v1700, %v1698
      %v1761 = vpack.c.b16 %v1703, %v1701
      %v1762 = vpack.c.b16 %v1704, %v1702
      %v1763 = vpack.c.b16 %v1707, %v1705
      %v1764 = vpack.c.b16 %v1708, %v1706
      %v1765 = vpack.c.b16 %v1711, %v1709
      %v1766 = vpack.c.b16 %v1712, %v1710
      %v1767 = vpack.c.b16 %v1715, %v1713
      %v1768 = vpack.c.b16 %v1716, %v1714
      %v1769 = vpack.c.b16 %v1719, %v1717
      %v1770 = vpack.c.b16 %v1720, %v1718
      %v1771 = vpack.c.b16 %v1723, %v1721
      %v1772 = vpack.c.b16 %v1724, %v1722
      %1821 = vmatprep.subr.bf16.mxu0 %v1740
      %1822 = vmatpush1.bf16.msra.mxu0 %v1739
      %1823 = vmatprep.subr.bf16.mxu0 %v1738
      %1824 = vmatpush1.bf16.msra.mxu0 %v1737
      %1825 = vmatprep.subr.bf16.mxu0 %v1736
      %1826 = vmatpush1.bf16.msra.mxu0 %v1735
      %1827 = vmatprep.subr.bf16.mxu0 %v1734
      %1828 = vmatpush1.bf16.msra.mxu0 %v1733
      %1829 = vmatprep.subr.bf16.mxu0 %v1732
      %1830 = vmatpush1.bf16.msra.mxu0 %v1731
      %1831 = vmatprep.subr.bf16.mxu0 %v1730
      %1832 = vmatpush1.bf16.msra.mxu0 %v1729
      %1833 = vmatprep.subr.bf16.mxu0 %v1728
      %1834 = vmatpush1.bf16.msra.mxu0 %v1727
      %1835 = vmatprep.subr.bf16.mxu0 %v1726
      %1836 = vmatpush1.bf16.msra.mxu0 %v1725
      %1837 = vmatprep.subr.bf16.mxu0 %v1756
      %1838 = vmatpush2.bf16.msra.mxu0 %v1755
      %1839 = vmatprep.subr.bf16.mxu0 %v1754
      %1840 = vmatpush2.bf16.msra.mxu0 %v1753
      %1841 = vmatprep.subr.bf16.mxu0 %v1752
      %1842 = vmatpush2.bf16.msra.mxu0 %v1751
      %1843 = vmatprep.subr.bf16.mxu0 %v1750
      %1844 = vmatpush2.bf16.msra.mxu0 %v1749
      %1845 = vmatprep.subr.bf16.mxu0 %v1748
      %1846 = vmatpush2.bf16.msra.mxu0 %v1747
      %1847 = vmatprep.subr.bf16.mxu0 %v1746
      %1848 = vmatpush2.bf16.msra.mxu0 %v1745
      %1849 = vmatprep.subr.bf16.mxu0 %v1744
      %1850 = vmatpush2.bf16.msra.mxu0 %v1743
      %1851 = vmatprep.subr.bf16.mxu0 %v1742
      %1852 = vmatpush2.bf16.msra.mxu0 %v1741
      %1853 = vmatprep.mubr.bf16.mxu0 %v1558
      %1854 = vmatmul.mubr.bf16.gmra.mxu0 %v1557
      %v1855 = vpop.f32.mrf.mxu0
      %v1856 = vadd.f32 0.0, %v1855
      %v1857 = vpop.f32.mrf.mxu0
      %v1858 = vadd.f32 0.0, %v1857
      %v1859 = vpop.f32.mrf.mxu0
      %v1860 = vadd.f32 0.0, %v1859
      %v1861 = vpop.f32.mrf.mxu0
      %v1862 = vadd.f32 0.0, %v1861
      %1863 = vmatprep.mubr.bf16.mxu0 %v1561
      %1864 = vmatmul.mubr.bf16.gmra.mxu0 %v1560
      %v1865 = vpop.f32.mrf.mxu0
      %v1866 = vadd.f32 0.0, %v1865
      %v1867 = vpop.f32.mrf.mxu0
      %v1868 = vadd.f32 0.0, %v1867
      %v1869 = vpop.f32.mrf.mxu0
      %v1870 = vadd.f32 0.0, %v1869
      %v1871 = vpop.f32.mrf.mxu0
      %v1872 = vadd.f32 0.0, %v1871
      %1873 = vmatprep.mubr.bf16.mxu0 %v1564
      %1874 = vmatmul.mubr.bf16.gmra.mxu0 %v1563
      %v1875 = vpop.f32.mrf.mxu0
      %v1876 = vadd.f32 0.0, %v1875
      %v1877 = vpop.f32.mrf.mxu0
      %v1878 = vadd.f32 0.0, %v1877
      %v1879 = vpop.f32.mrf.mxu0
      %v1880 = vadd.f32 0.0, %v1879
      %v1881 = vpop.f32.mrf.mxu0
      %v1882 = vadd.f32 0.0, %v1881
      %1883 = vmatprep.mubr.bf16.mxu0 %v1567
      %1884 = vmatmul.mubr.bf16.gmra.mxu0 %v1566
      %v1885 = vpop.f32.mrf.mxu0
      %v1886 = vadd.f32 0.0, %v1885
      %v1887 = vpop.f32.mrf.mxu0
      %v1888 = vadd.f32 0.0, %v1887
      %v1889 = vpop.f32.mrf.mxu0
      %v1890 = vadd.f32 0.0, %v1889
      %v1891 = vpop.f32.mrf.mxu0
      %v1892 = vadd.f32 0.0, %v1891
      %1893 = vdwg.mxu0
      %1894 = vmatprep.subr.bf16.mxu0 %v1772
      %1895 = vmatpush1.bf16.msra.mxu0 %v1771
      %1896 = vmatprep.subr.bf16.mxu0 %v1770
      %1897 = vmatpush1.bf16.msra.mxu0 %v1769
      %1898 = vmatprep.subr.bf16.mxu0 %v1768
      %1899 = vmatpush1.bf16.msra.mxu0 %v1767
      %1900 = vmatprep.subr.bf16.mxu0 %v1766
      %1901 = vmatpush1.bf16.msra.mxu0 %v1765
      %1902 = vmatprep.subr.bf16.mxu0 %v1764
      %1903 = vmatpush1.bf16.msra.mxu0 %v1763
      %1904 = vmatprep.subr.bf16.mxu0 %v1762
      %1905 = vmatpush1.bf16.msra.mxu0 %v1761
      %1906 = vmatprep.subr.bf16.mxu0 %v1760
      %1907 = vmatpush1.bf16.msra.mxu0 %v1759
      %1908 = vmatprep.subr.bf16.mxu0 %v1758
      %1909 = vmatpush1.bf16.msra.mxu0 %v1757
      %1910 = vmatprep.subr.bf16.mxu0 0
      %1911 = vmatpush2.bf16.msra.mxu0 0
      %1912 = vmatprep.subr.bf16.mxu0 0
      %1913 = vmatpush2.bf16.msra.mxu0 0
      %1914 = vmatprep.subr.bf16.mxu0 0
      %1915 = vmatpush2.bf16.msra.mxu0 0
      %1916 = vmatprep.subr.bf16.mxu0 0
      %1917 = vmatpush2.bf16.msra.mxu0 0
      %1918 = vmatprep.subr.bf16.mxu0 0
      %1919 = vmatpush2.bf16.msra.mxu0 0
      %1920 = vmatprep.subr.bf16.mxu0 0
      %1921 = vmatpush2.bf16.msra.mxu0 0
      %1922 = vmatprep.subr.bf16.mxu0 0
      %1923 = vmatpush2.bf16.msra.mxu0 0
      %1924 = vmatprep.subr.bf16.mxu0 0
      %1925 = vmatpush2.bf16.msra.mxu0 0
      %1926 = vmatprep.mubr.bf16.mxu0 0
      %1927 = vmatmul.mubr.bf16.gmra.mxu0 %v1559
      %v1928 = vpop.f32.mrf.mxu0
      %v1929 = vadd.f32 %v1856, %v1928
      %v1930 = vpop.f32.mrf.mxu0
      %v1931 = vadd.f32 %v1858, %v1930
      %v1932 = vpop.f32.mrf.mxu0
      %v1933 = vadd.f32 %v1860, %v1932
      %v1934 = vpop.f32.mrf.mxu0
      %v1935 = vadd.f32 %v1862, %v1934
      %1936 = vmatprep.mubr.bf16.mxu0 0
      %1937 = vmatmul.mubr.bf16.gmra.mxu0 %v1562
      %v1938 = vpop.f32.mrf.mxu0
      %v1939 = vadd.f32 %v1866, %v1938
      %v1940 = vpop.f32.mrf.mxu0
      %v1941 = vadd.f32 %v1868, %v1940
      %v1942 = vpop.f32.mrf.mxu0
      %v1943 = vadd.f32 %v1870, %v1942
      %v1944 = vpop.f32.mrf.mxu0
      %v1945 = vadd.f32 %v1872, %v1944
      %1946 = vmatprep.mubr.bf16.mxu0 0
      %1947 = vmatmul.mubr.bf16.gmra.mxu0 %v1565
      %v1948 = vpop.f32.mrf.mxu0
      %v1949 = vadd.f32 %v1876, %v1948
      %v1950 = vpop.f32.mrf.mxu0
      %v1951 = vadd.f32 %v1878, %v1950
      %v1952 = vpop.f32.mrf.mxu0
      %v1953 = vadd.f32 %v1880, %v1952
      %v1954 = vpop.f32.mrf.mxu0
      %v1955 = vadd.f32 %v1882, %v1954
      %1956 = vmatprep.mubr.bf16.mxu0 0
      %1957 = vmatmul.mubr.bf16.gmra.mxu0 %v1568
      %v1958 = vpop.f32.mrf.mxu0
      %v1959 = vadd.f32 %v1886, %v1958
      %v1960 = vpop.f32.mrf.mxu0
      %v1961 = vadd.f32 %v1888, %v1960
      %v1962 = vpop.f32.mrf.mxu0
      %v1963 = vadd.f32 %v1890, %v1962
      %v1964 = vpop.f32.mrf.mxu0
      %v1965 = vadd.f32 %v1892, %v1964
      %1966 = vdwg.mxu0
      %v1967 = vadd.f32 %v1413, %v1929
      %v1968 = vadd.f32 %v1415, %v1931
      %v1969 = vadd.f32 %v1417, %v1933
      %v1970 = vadd.f32 %v1419, %v1935
      %v1971 = vadd.f32 %v1423, %v1939
      %v1972 = vadd.f32 %v1425, %v1941
      %v1973 = vadd.f32 %v1427, %v1943
      %v1974 = vadd.f32 %v1429, %v1945
      %v1975 = vadd.f32 %v1433, %v1949
      %v1976 = vadd.f32 %v1435, %v1951
      %v1977 = vadd.f32 %v1437, %v1953
      %v1978 = vadd.f32 %v1439, %v1955
      %v1979 = vadd.f32 %v1443, %v1959
      %v1980 = vadd.f32 %v1445, %v1961
      %v1981 = vadd.f32 %v1447, %v1963
      %v1982 = vadd.f32 %v1449, %v1965
      %v1983 = vld [vmem:[%s2] sm:$0x3]
      %v1985 = vlaneseq
      %v1986 = vshrl.u32 %v1985, 7
      %v1987 = vsub.s32 0, %v1986
      %v1988 = vrot.slane %v1983, %v1987
      %v1989 = vlaneseq
      %v1990 = vshrl.u32 %v1989, 7
      %v1991 = vsub.s32 1, %v1990
      %v1992 = vrot.slane %v1983, %v1991
      %v1995 = vadd.f32 %v1967, %v1988
      %v1996 = vadd.f32 %v1968, %v1992
      %v1997 = vadd.f32 %v1969, %v1988
      %v1998 = vadd.f32 %v1970, %v1992
      %v1999 = vadd.f32 %v1971, %v1988
      %v2000 = vadd.f32 %v1972, %v1992
      %v2001 = vadd.f32 %v1973, %v1988
      %v2002 = vadd.f32 %v1974, %v1992
      %v2003 = vadd.f32 %v1975, %v1988
      %v2004 = vadd.f32 %v1976, %v1992
      %v2005 = vadd.f32 %v1977, %v1988
      %v2006 = vadd.f32 %v1978, %v1992
      %v2007 = vadd.f32 %v1979, %v1988
      %v2008 = vadd.f32 %v1980, %v1992
      %v2009 = vadd.f32 %v1981, %v1988
      %v2010 = vadd.f32 %v1982, %v1992
      %v2011 = vmax.f32 %v1995, 0.0
      %v2012 = vmax.f32 %v1996, 0.0
      %v2013 = vmax.f32 %v1997, 0.0
      %v2014 = vmax.f32 %v1998, 0.0
      %v2015 = vmax.f32 %v1999, 0.0
      %v2016 = vmax.f32 %v2000, 0.0
      %v2017 = vmax.f32 %v2001, 0.0
      %v2018 = vmax.f32 %v2002, 0.0
      %v2019 = vmax.f32 %v2003, 0.0
      %v2020 = vmax.f32 %v2004, 0.0
      %v2021 = vmax.f32 %v2005, 0.0
      %v2022 = vmax.f32 %v2006, 0.0
      %v2023 = vmax.f32 %v2007, 0.0
      %v2024 = vmax.f32 %v2008, 0.0
      %v2025 = vmax.f32 %v2009, 0.0
      %v2026 = vmax.f32 %v2010, 0.0
      %v2043 = vcombine.low %v2011, %v2012
      %v2044 = vcombine.high %v2011, %v2012
      %v2046 = vunpack.c.l.s4 1983009808
      %v2047 = vunpack.c.0.s8 %v2046
      %v2048 = vlaneseq
      %v2049 = vshrl.u32 %v2048, 7
      %v2050 = vsub.s32 %v2047, %v2049
      %v2051 = vrot.slane %v2043, %v2050
      %v2053 = vunpack.c.l.s4 1983009808
      %v2054 = vunpack.c.0.s8 %v2053
      %v2055 = vlaneseq
      %v2056 = vshrl.u32 %v2055, 7
      %v2057 = vsub.s32 %v2054, %v2056
      %v2058 = vrot.slane %v2044, %v2057
      %v2059 = vcombine.high %v2051, %v2051
      %v2060 = vcombine.high %v2058, %v2058
      %v2061 = vcombine.low %v2013, %v2014
      %v2062 = vcombine.high %v2013, %v2014
      %v2064 = vunpack.c.l.s4 1983009808
      %v2065 = vunpack.c.0.s8 %v2064
      %v2066 = vlaneseq
      %v2067 = vshrl.u32 %v2066, 7
      %v2068 = vsub.s32 %v2065, %v2067
      %v2069 = vrot.slane %v2061, %v2068
      %v2071 = vunpack.c.l.s4 1983009808
      %v2072 = vunpack.c.0.s8 %v2071
      %v2073 = vlaneseq
      %v2074 = vshrl.u32 %v2073, 7
      %v2075 = vsub.s32 %v2072, %v2074
      %v2076 = vrot.slane %v2062, %v2075
      %v2077 = vcombine.high %v2069, %v2069
      %v2078 = vcombine.high %v2076, %v2076
      %v2079 = vcombine.low %v2015, %v2016
      %v2080 = vcombine.high %v2015, %v2016
      %v2082 = vunpack.c.l.s4 1983009808
      %v2083 = vunpack.c.0.s8 %v2082
      %v2084 = vlaneseq
      %v2085 = vshrl.u32 %v2084, 7
      %v2086 = vsub.s32 %v2083, %v2085
      %v2087 = vrot.slane %v2079, %v2086
      %v2089 = vunpack.c.l.s4 1983009808
      %v2090 = vunpack.c.0.s8 %v2089
      %v2091 = vlaneseq
      %v2092 = vshrl.u32 %v2091, 7
      %v2093 = vsub.s32 %v2090, %v2092
      %v2094 = vrot.slane %v2080, %v2093
      %v2095 = vcombine.high %v2087, %v2087
      %v2096 = vcombine.high %v2094, %v2094
      %v2097 = vcombine.low %v2017, %v2018
      %v2098 = vcombine.high %v2017, %v2018
      %v2100 = vunpack.c.l.s4 1983009808
      %v2101 = vunpack.c.0.s8 %v2100
      %v2102 = vlaneseq
      %v2103 = vshrl.u32 %v2102, 7
      %v2104 = vsub.s32 %v2101, %v2103
      %v2105 = vrot.slane %v2097, %v2104
      %v2107 = vunpack.c.l.s4 1983009808
      %v2108 = vunpack.c.0.s8 %v2107
      %v2109 = vlaneseq
      %v2110 = vshrl.u32 %v2109, 7
      %v2111 = vsub.s32 %v2108, %v2110
      %v2112 = vrot.slane %v2098, %v2111
      %v2113 = vcombine.high %v2105, %v2105
      %v2114 = vcombine.high %v2112, %v2112
      %v2115 = vcombine.low %v2019, %v2020
      %v2116 = vcombine.high %v2019, %v2020
      %v2118 = vunpack.c.l.s4 1983009808
      %v2119 = vunpack.c.0.s8 %v2118
      %v2120 = vlaneseq
      %v2121 = vshrl.u32 %v2120, 7
      %v2122 = vsub.s32 %v2119, %v2121
      %v2123 = vrot.slane %v2115, %v2122
      %v2125 = vunpack.c.l.s4 1983009808
      %v2126 = vunpack.c.0.s8 %v2125
      %v2127 = vlaneseq
      %v2128 = vshrl.u32 %v2127, 7
      %v2129 = vsub.s32 %v2126, %v2128
      %v2130 = vrot.slane %v2116, %v2129
      %v2131 = vcombine.high %v2123, %v2123
      %v2132 = vcombine.high %v2130, %v2130
      %v2133 = vcombine.low %v2021, %v2022
      %v2134 = vcombine.high %v2021, %v2022
      %v2136 = vunpack.c.l.s4 1983009808
      %v2137 = vunpack.c.0.s8 %v2136
      %v2138 = vlaneseq
      %v2139 = vshrl.u32 %v2138, 7
      %v2140 = vsub.s32 %v2137, %v2139
      %v2141 = vrot.slane %v2133, %v2140
      %v2143 = vunpack.c.l.s4 1983009808
      %v2144 = vunpack.c.0.s8 %v2143
      %v2145 = vlaneseq
      %v2146 = vshrl.u32 %v2145, 7
      %v2147 = vsub.s32 %v2144, %v2146
      %v2148 = vrot.slane %v2134, %v2147
      %v2149 = vcombine.high %v2141, %v2141
      %v2150 = vcombine.high %v2148, %v2148
      %v2151 = vcombine.low %v2023, %v2024
      %v2152 = vcombine.high %v2023, %v2024
      %v2154 = vunpack.c.l.s4 1983009808
      %v2155 = vunpack.c.0.s8 %v2154
      %v2156 = vlaneseq
      %v2157 = vshrl.u32 %v2156, 7
      %v2158 = vsub.s32 %v2155, %v2157
      %v2159 = vrot.slane %v2151, %v2158
      %v2161 = vunpack.c.l.s4 1983009808
      %v2162 = vunpack.c.0.s8 %v2161
      %v2163 = vlaneseq
      %v2164 = vshrl.u32 %v2163, 7
      %v2165 = vsub.s32 %v2162, %v2164
      %v2166 = vrot.slane %v2152, %v2165
      %v2167 = vcombine.high %v2159, %v2159
      %v2168 = vcombine.high %v2166, %v2166
      %v2169 = vcombine.low %v2025, %v2026
      %v2170 = vcombine.high %v2025, %v2026
      %v2172 = vunpack.c.l.s4 1983009808
      %v2173 = vunpack.c.0.s8 %v2172
      %v2174 = vlaneseq
      %v2175 = vshrl.u32 %v2174, 7
      %v2176 = vsub.s32 %v2173, %v2175
      %v2177 = vrot.slane %v2169, %v2176
      %v2179 = vunpack.c.l.s4 1983009808
      %v2180 = vunpack.c.0.s8 %v2179
      %v2181 = vlaneseq
      %v2182 = vshrl.u32 %v2181, 7
      %v2183 = vsub.s32 %v2180, %v2182
      %v2184 = vrot.slane %v2170, %v2183
      %v2185 = vcombine.high %v2177, %v2177
      %v2186 = vcombine.high %v2184, %v2184
      %v2219 = vmax.f32 %v2051, %v2069
      %v2220 = vmax.f32 %v2059, %v2077
      %v2221 = vmax.f32 %v2058, %v2076
      %v2222 = vmax.f32 %v2060, %v2078
      %v2223 = vmax.f32 %v2087, %v2105
      %v2224 = vmax.f32 %v2095, %v2113
      %v2225 = vmax.f32 %v2094, %v2112
      %v2226 = vmax.f32 %v2096, %v2114
      %v2227 = vmax.f32 %v2123, %v2141
      %v2228 = vmax.f32 %v2131, %v2149
      %v2229 = vmax.f32 %v2130, %v2148
      %v2230 = vmax.f32 %v2132, %v2150
      %v2231 = vmax.f32 %v2159, %v2177
      %v2232 = vmax.f32 %v2167, %v2185
      %v2233 = vmax.f32 %v2166, %v2184
      %v2234 = vmax.f32 %v2168, %v2186
      %v2251 = vrot.slane %v2219, 7
      %v2252 = vrot.slane %v2251, 2
      %v2253 = vrot.slane %v2220, 7
      %v2254 = vrot.slane %v2253, 2
      %v2255 = vrot.slane %v2221, 7
      %v2256 = vrot.slane %v2255, 2
      %v2257 = vrot.slane %v2222, 7
      %v2258 = vrot.slane %v2257, 2
      %v2259 = vrot.slane %v2223, 7
      %v2260 = vrot.slane %v2259, 2
      %v2261 = vrot.slane %v2224, 7
      %v2262 = vrot.slane %v2261, 2
      %v2263 = vrot.slane %v2225, 7
      %v2264 = vrot.slane %v2263, 2
      %v2265 = vrot.slane %v2226, 7
      %v2266 = vrot.slane %v2265, 2
      %v2267 = vrot.slane %v2227, 7
      %v2268 = vrot.slane %v2267, 2
      %v2269 = vrot.slane %v2228, 7
      %v2270 = vrot.slane %v2269, 2
      %v2271 = vrot.slane %v2229, 7
      %v2272 = vrot.slane %v2271, 2
      %v2273 = vrot.slane %v2230, 7
      %v2274 = vrot.slane %v2273, 2
      %v2275 = vrot.slane %v2231, 7
      %v2276 = vrot.slane %v2275, 2
      %v2277 = vrot.slane %v2232, 7
      %v2278 = vrot.slane %v2277, 2
      %v2279 = vrot.slane %v2233, 7
      %v2280 = vrot.slane %v2279, 2
      %v2281 = vrot.slane %v2234, 7
      %v2282 = vrot.slane %v2281, 2
      %v2299 = vmax.f32 %v2219, %v2252
      %v2300 = vmax.f32 %v2220, %v2254
      %v2301 = vmax.f32 %v2221, %v2256
      %v2302 = vmax.f32 %v2222, %v2258
      %v2303 = vmax.f32 %v2223, %v2260
      %v2304 = vmax.f32 %v2224, %v2262
      %v2305 = vmax.f32 %v2225, %v2264
      %v2306 = vmax.f32 %v2226, %v2266
      %v2307 = vmax.f32 %v2227, %v2268
      %v2308 = vmax.f32 %v2228, %v2270
      %v2309 = vmax.f32 %v2229, %v2272
      %v2310 = vmax.f32 %v2230, %v2274
      %v2311 = vmax.f32 %v2231, %v2276
      %v2312 = vmax.f32 %v2232, %v2278
      %v2313 = vmax.f32 %v2233, %v2280
      %v2314 = vmax.f32 %v2234, %v2282
      %v2331 = vlaneseq
      %v2332 = vshrl.u32 %v2331, 7
      %v2333 = vsub.s32 0, %v2332
      %v2334 = vrot.slane %v2299, %v2333
      %v2335 = vlaneseq
      %v2336 = vshrl.u32 %v2335, 7
      %v2337 = vsub.s32 2, %v2336
      %v2338 = vrot.slane %v2299, %v2337
      %v2339 = vlaneseq
      %v2340 = vshrl.u32 %v2339, 7
      %v2341 = vsub.s32 0, %v2340
      %v2342 = vrot.slane %v2300, %v2341
      %v2343 = vlaneseq
      %v2344 = vshrl.u32 %v2343, 7
      %v2345 = vsub.s32 2, %v2344
      %v2346 = vrot.slane %v2300, %v2345
      %v2347 = vlaneseq
      %v2348 = vshrl.u32 %v2347, 7
      %v2349 = vsub.s32 0, %v2348
      %v2350 = vrot.slane %v2301, %v2349
      %v2351 = vlaneseq
      %v2352 = vshrl.u32 %v2351, 7
      %v2353 = vsub.s32 2, %v2352
      %v2354 = vrot.slane %v2301, %v2353
      %v2355 = vlaneseq
      %v2356 = vshrl.u32 %v2355, 7
      %v2357 = vsub.s32 0, %v2356
      %v2358 = vrot.slane %v2302, %v2357
      %v2359 = vlaneseq
      %v2360 = vshrl.u32 %v2359, 7
      %v2361 = vsub.s32 2, %v2360
      %v2362 = vrot.slane %v2302, %v2361
      %v2363 = vlaneseq
      %v2364 = vshrl.u32 %v2363, 7
      %v2365 = vsub.s32 0, %v2364
      %v2366 = vrot.slane %v2303, %v2365
      %v2367 = vlaneseq
      %v2368 = vshrl.u32 %v2367, 7
      %v2369 = vsub.s32 2, %v2368
      %v2370 = vrot.slane %v2303, %v2369
      %v2371 = vlaneseq
      %v2372 = vshrl.u32 %v2371, 7
      %v2373 = vsub.s32 0, %v2372
      %v2374 = vrot.slane %v2304, %v2373
      %v2375 = vlaneseq
      %v2376 = vshrl.u32 %v2375, 7
      %v2377 = vsub.s32 2, %v2376
      %v2378 = vrot.slane %v2304, %v2377
      %v2379 = vlaneseq
      %v2380 = vshrl.u32 %v2379, 7
      %v2381 = vsub.s32 0, %v2380
      %v2382 = vrot.slane %v2305, %v2381
      %v2383 = vlaneseq
      %v2384 = vshrl.u32 %v2383, 7
      %v2385 = vsub.s32 2, %v2384
      %v2386 = vrot.slane %v2305, %v2385
      %v2387 = vlaneseq
      %v2388 = vshrl.u32 %v2387, 7
      %v2389 = vsub.s32 0, %v2388
      %v2390 = vrot.slane %v2306, %v2389
      %v2391 = vlaneseq
      %v2392 = vshrl.u32 %v2391, 7
      %v2393 = vsub.s32 2, %v2392
      %v2394 = vrot.slane %v2306, %v2393
      %v2395 = vlaneseq
      %v2396 = vshrl.u32 %v2395, 7
      %v2397 = vsub.s32 0, %v2396
      %v2398 = vrot.slane %v2307, %v2397
      %v2399 = vlaneseq
      %v2400 = vshrl.u32 %v2399, 7
      %v2401 = vsub.s32 2, %v2400
      %v2402 = vrot.slane %v2307, %v2401
      %v2403 = vlaneseq
      %v2404 = vshrl.u32 %v2403, 7
      %v2405 = vsub.s32 0, %v2404
      %v2406 = vrot.slane %v2308, %v2405
      %v2407 = vlaneseq
      %v2408 = vshrl.u32 %v2407, 7
      %v2409 = vsub.s32 2, %v2408
      %v2410 = vrot.slane %v2308, %v2409
      %v2411 = vlaneseq
      %v2412 = vshrl.u32 %v2411, 7
      %v2413 = vsub.s32 0, %v2412
      %v2414 = vrot.slane %v2309, %v2413
      %v2415 = vlaneseq
      %v2416 = vshrl.u32 %v2415, 7
      %v2417 = vsub.s32 2, %v2416
      %v2418 = vrot.slane %v2309, %v2417
      %v2419 = vlaneseq
      %v2420 = vshrl.u32 %v2419, 7
      %v2421 = vsub.s32 0, %v2420
      %v2422 = vrot.slane %v2310, %v2421
      %v2423 = vlaneseq
      %v2424 = vshrl.u32 %v2423, 7
      %v2425 = vsub.s32 2, %v2424
      %v2426 = vrot.slane %v2310, %v2425
      %v2427 = vlaneseq
      %v2428 = vshrl.u32 %v2427, 7
      %v2429 = vsub.s32 0, %v2428
      %v2430 = vrot.slane %v2311, %v2429
      %v2431 = vlaneseq
      %v2432 = vshrl.u32 %v2431, 7
      %v2433 = vsub.s32 2, %v2432
      %v2434 = vrot.slane %v2311, %v2433
      %v2435 = vlaneseq
      %v2436 = vshrl.u32 %v2435, 7
      %v2437 = vsub.s32 0, %v2436
      %v2438 = vrot.slane %v2312, %v2437
      %v2439 = vlaneseq
      %v2440 = vshrl.u32 %v2439, 7
      %v2441 = vsub.s32 2, %v2440
      %v2442 = vrot.slane %v2312, %v2441
      %v2443 = vlaneseq
      %v2444 = vshrl.u32 %v2443, 7
      %v2445 = vsub.s32 0, %v2444
      %v2446 = vrot.slane %v2313, %v2445
      %v2447 = vlaneseq
      %v2448 = vshrl.u32 %v2447, 7
      %v2449 = vsub.s32 2, %v2448
      %v2450 = vrot.slane %v2313, %v2449
      %v2451 = vlaneseq
      %v2452 = vshrl.u32 %v2451, 7
      %v2453 = vsub.s32 0, %v2452
      %v2454 = vrot.slane %v2314, %v2453
      %v2455 = vlaneseq
      %v2456 = vshrl.u32 %v2455, 7
      %v2457 = vsub.s32 2, %v2456
      %v2458 = vrot.slane %v2314, %v2457
      %v2491 = vpack.c.bf16 %v2334, %v2334
      %v2492 = vpack.c.bf16 %v2338, %v2338
      %v2493 = vpack.c.bf16 %v2342, %v2342
      %v2494 = vpack.c.bf16 %v2346, %v2346
      %v2495 = vpack.c.bf16 %v2350, %v2350
      %v2496 = vpack.c.bf16 %v2354, %v2354
      %v2497 = vpack.c.bf16 %v2358, %v2358
      %v2498 = vpack.c.bf16 %v2362, %v2362
      %v2499 = vpack.c.bf16 %v2366, %v2366
      %v2500 = vpack.c.bf16 %v2370, %v2370
      %v2501 = vpack.c.bf16 %v2374, %v2374
      %v2502 = vpack.c.bf16 %v2378, %v2378
      %v2503 = vpack.c.bf16 %v2382, %v2382
      %v2504 = vpack.c.bf16 %v2386, %v2386
      %v2505 = vpack.c.bf16 %v2390, %v2390
      %v2506 = vpack.c.bf16 %v2394, %v2394
      %v2507 = vpack.c.bf16 %v2398, %v2398
      %v2508 = vpack.c.bf16 %v2402, %v2402
      %v2509 = vpack.c.bf16 %v2406, %v2406
      %v2510 = vpack.c.bf16 %v2410, %v2410
      %v2511 = vpack.c.bf16 %v2414, %v2414
      %v2512 = vpack.c.bf16 %v2418, %v2418
      %v2513 = vpack.c.bf16 %v2422, %v2422
      %v2514 = vpack.c.bf16 %v2426, %v2426
      %v2515 = vpack.c.bf16 %v2430, %v2430
      %v2516 = vpack.c.bf16 %v2434, %v2434
      %v2517 = vpack.c.bf16 %v2438, %v2438
      %v2518 = vpack.c.bf16 %v2442, %v2442
      %v2519 = vpack.c.bf16 %v2446, %v2446
      %v2520 = vpack.c.bf16 %v2450, %v2450
      %v2521 = vpack.c.bf16 %v2454, %v2454
      %v2522 = vpack.c.bf16 %v2458, %v2458
      %v2555 = vcombine.low %v2491, %v2492
      %v2557 = vunpack.c.l.s4 1983009808
      %v2558 = vunpack.c.0.s8 %v2557
      %v2559 = vlaneseq
      %v2560 = vshrl.u32 %v2559, 7
      %v2561 = vsub.s32 %v2558, %v2560
      %v2562 = vrot.slane %v2555, %v2561
      %v2563 = vcombine.low %v2493, %v2494
      %v2565 = vunpack.c.l.s4 1983009808
      %v2566 = vunpack.c.0.s8 %v2565
      %v2567 = vlaneseq
      %v2568 = vshrl.u32 %v2567, 7
      %v2569 = vsub.s32 %v2566, %v2568
      %v2570 = vrot.slane %v2563, %v2569
      %v2571 = vcombine.low %v2495, %v2496
      %v2573 = vunpack.c.l.s4 1983009808
      %v2574 = vunpack.c.0.s8 %v2573
      %v2575 = vlaneseq
      %v2576 = vshrl.u32 %v2575, 7
      %v2577 = vsub.s32 %v2574, %v2576
      %v2578 = vrot.slane %v2571, %v2577
      %v2579 = vcombine.low %v2497, %v2498
      %v2581 = vunpack.c.l.s4 1983009808
      %v2582 = vunpack.c.0.s8 %v2581
      %v2583 = vlaneseq
      %v2584 = vshrl.u32 %v2583, 7
      %v2585 = vsub.s32 %v2582, %v2584
      %v2586 = vrot.slane %v2579, %v2585
      %v2587 = vcombine.low %v2499, %v2500
      %v2589 = vunpack.c.l.s4 1983009808
      %v2590 = vunpack.c.0.s8 %v2589
      %v2591 = vlaneseq
      %v2592 = vshrl.u32 %v2591, 7
      %v2593 = vsub.s32 %v2590, %v2592
      %v2594 = vrot.slane %v2587, %v2593
      %v2595 = vcombine.low %v2501, %v2502
      %v2597 = vunpack.c.l.s4 1983009808
      %v2598 = vunpack.c.0.s8 %v2597
      %v2599 = vlaneseq
      %v2600 = vshrl.u32 %v2599, 7
      %v2601 = vsub.s32 %v2598, %v2600
      %v2602 = vrot.slane %v2595, %v2601
      %v2603 = vcombine.low %v2503, %v2504
      %v2605 = vunpack.c.l.s4 1983009808
      %v2606 = vunpack.c.0.s8 %v2605
      %v2607 = vlaneseq
      %v2608 = vshrl.u32 %v2607, 7
      %v2609 = vsub.s32 %v2606, %v2608
      %v2610 = vrot.slane %v2603, %v2609
      %v2611 = vcombine.low %v2505, %v2506
      %v2613 = vunpack.c.l.s4 1983009808
      %v2614 = vunpack.c.0.s8 %v2613
      %v2615 = vlaneseq
      %v2616 = vshrl.u32 %v2615, 7
      %v2617 = vsub.s32 %v2614, %v2616
      %v2618 = vrot.slane %v2611, %v2617
      %v2619 = vcombine.low %v2507, %v2508
      %v2621 = vunpack.c.l.s4 1983009808
      %v2622 = vunpack.c.0.s8 %v2621
      %v2623 = vlaneseq
      %v2624 = vshrl.u32 %v2623, 7
      %v2625 = vsub.s32 %v2622, %v2624
      %v2626 = vrot.slane %v2619, %v2625
      %v2627 = vcombine.low %v2509, %v2510
      %v2629 = vunpack.c.l.s4 1983009808
      %v2630 = vunpack.c.0.s8 %v2629
      %v2631 = vlaneseq
      %v2632 = vshrl.u32 %v2631, 7
      %v2633 = vsub.s32 %v2630, %v2632
      %v2634 = vrot.slane %v2627, %v2633
      %v2635 = vcombine.low %v2511, %v2512
      %v2637 = vunpack.c.l.s4 1983009808
      %v2638 = vunpack.c.0.s8 %v2637
      %v2639 = vlaneseq
      %v2640 = vshrl.u32 %v2639, 7
      %v2641 = vsub.s32 %v2638, %v2640
      %v2642 = vrot.slane %v2635, %v2641
      %v2643 = vcombine.low %v2513, %v2514
      %v2645 = vunpack.c.l.s4 1983009808
      %v2646 = vunpack.c.0.s8 %v2645
      %v2647 = vlaneseq
      %v2648 = vshrl.u32 %v2647, 7
      %v2649 = vsub.s32 %v2646, %v2648
      %v2650 = vrot.slane %v2643, %v2649
      %v2651 = vcombine.low %v2515, %v2516
      %v2653 = vunpack.c.l.s4 1983009808
      %v2654 = vunpack.c.0.s8 %v2653
      %v2655 = vlaneseq
      %v2656 = vshrl.u32 %v2655, 7
      %v2657 = vsub.s32 %v2654, %v2656
      %v2658 = vrot.slane %v2651, %v2657
      %v2659 = vcombine.low %v2517, %v2518
      %v2661 = vunpack.c.l.s4 1983009808
      %v2662 = vunpack.c.0.s8 %v2661
      %v2663 = vlaneseq
      %v2664 = vshrl.u32 %v2663, 7
      %v2665 = vsub.s32 %v2662, %v2664
      %v2666 = vrot.slane %v2659, %v2665
      %v2667 = vcombine.low %v2519, %v2520
      %v2669 = vunpack.c.l.s4 1983009808
      %v2670 = vunpack.c.0.s8 %v2669
      %v2671 = vlaneseq
      %v2672 = vshrl.u32 %v2671, 7
      %v2673 = vsub.s32 %v2670, %v2672
      %v2674 = vrot.slane %v2667, %v2673
      %v2675 = vcombine.low %v2521, %v2522
      %v2677 = vunpack.c.l.s4 1983009808
      %v2678 = vunpack.c.0.s8 %v2677
      %v2679 = vlaneseq
      %v2680 = vshrl.u32 %v2679, 7
      %v2681 = vsub.s32 %v2678, %v2680
      %v2682 = vrot.slane %v2675, %v2681
      %v2684 = vunpack.c.l.s4 1983009808
      %v2685 = vunpack.c.0.s8 %v2684
      %v2686 = vlaneseq
      %v2687 = vshrl.u32 %v2686, 7
      %v2688 = vsub.s32 %v2685, %v2687
      %v2689 = vrot.slane %v2562, %v2688
      %v2691 = vunpack.c.l.s4 1983009808
      %v2692 = vunpack.c.0.s8 %v2691
      %v2693 = vlaneseq
      %v2694 = vshrl.u32 %v2693, 7
      %v2695 = vsub.s32 %v2692, %v2694
      %v2696 = vrot.slane %v2570, %v2695
      %v2698 = vunpack.c.l.s4 1983009808
      %v2699 = vunpack.c.0.s8 %v2698
      %v2700 = vlaneseq
      %v2701 = vshrl.u32 %v2700, 7
      %v2702 = vsub.s32 %v2699, %v2701
      %v2703 = vrot.slane %v2578, %v2702
      %v2705 = vunpack.c.l.s4 1983009808
      %v2706 = vunpack.c.0.s8 %v2705
      %v2707 = vlaneseq
      %v2708 = vshrl.u32 %v2707, 7
      %v2709 = vsub.s32 %v2706, %v2708
      %v2710 = vrot.slane %v2586, %v2709
      %v2712 = vunpack.c.l.s4 1983009808
      %v2713 = vunpack.c.0.s8 %v2712
      %v2714 = vlaneseq
      %v2715 = vshrl.u32 %v2714, 7
      %v2716 = vsub.s32 %v2713, %v2715
      %v2717 = vrot.slane %v2594, %v2716
      %v2719 = vunpack.c.l.s4 1983009808
      %v2720 = vunpack.c.0.s8 %v2719
      %v2721 = vlaneseq
      %v2722 = vshrl.u32 %v2721, 7
      %v2723 = vsub.s32 %v2720, %v2722
      %v2724 = vrot.slane %v2602, %v2723
      %v2726 = vunpack.c.l.s4 1983009808
      %v2727 = vunpack.c.0.s8 %v2726
      %v2728 = vlaneseq
      %v2729 = vshrl.u32 %v2728, 7
      %v2730 = vsub.s32 %v2727, %v2729
      %v2731 = vrot.slane %v2610, %v2730
      %v2733 = vunpack.c.l.s4 1983009808
      %v2734 = vunpack.c.0.s8 %v2733
      %v2735 = vlaneseq
      %v2736 = vshrl.u32 %v2735, 7
      %v2737 = vsub.s32 %v2734, %v2736
      %v2738 = vrot.slane %v2618, %v2737
      %v2740 = vunpack.c.l.s4 1983009808
      %v2741 = vunpack.c.0.s8 %v2740
      %v2742 = vlaneseq
      %v2743 = vshrl.u32 %v2742, 7
      %v2744 = vsub.s32 %v2741, %v2743
      %v2745 = vrot.slane %v2626, %v2744
      %v2747 = vunpack.c.l.s4 1983009808
      %v2748 = vunpack.c.0.s8 %v2747
      %v2749 = vlaneseq
      %v2750 = vshrl.u32 %v2749, 7
      %v2751 = vsub.s32 %v2748, %v2750
      %v2752 = vrot.slane %v2634, %v2751
      %v2754 = vunpack.c.l.s4 1983009808
      %v2755 = vunpack.c.0.s8 %v2754
      %v2756 = vlaneseq
      %v2757 = vshrl.u32 %v2756, 7
      %v2758 = vsub.s32 %v2755, %v2757
      %v2759 = vrot.slane %v2642, %v2758
      %v2761 = vunpack.c.l.s4 1983009808
      %v2762 = vunpack.c.0.s8 %v2761
      %v2763 = vlaneseq
      %v2764 = vshrl.u32 %v2763, 7
      %v2765 = vsub.s32 %v2762, %v2764
      %v2766 = vrot.slane %v2650, %v2765
      %v2768 = vunpack.c.l.s4 1983009808
      %v2769 = vunpack.c.0.s8 %v2768
      %v2770 = vlaneseq
      %v2771 = vshrl.u32 %v2770, 7
      %v2772 = vsub.s32 %v2769, %v2771
      %v2773 = vrot.slane %v2658, %v2772
      %v2775 = vunpack.c.l.s4 1983009808
      %v2776 = vunpack.c.0.s8 %v2775
      %v2777 = vlaneseq
      %v2778 = vshrl.u32 %v2777, 7
      %v2779 = vsub.s32 %v2776, %v2778
      %v2780 = vrot.slane %v2666, %v2779
      %v2782 = vunpack.c.l.s4 1983009808
      %v2783 = vunpack.c.0.s8 %v2782
      %v2784 = vlaneseq
      %v2785 = vshrl.u32 %v2784, 7
      %v2786 = vsub.s32 %v2783, %v2785
      %v2787 = vrot.slane %v2674, %v2786
      %v2789 = vunpack.c.l.s4 1983009808
      %v2790 = vunpack.c.0.s8 %v2789
      %v2791 = vlaneseq
      %v2792 = vshrl.u32 %v2791, 7
      %v2793 = vsub.s32 %v2790, %v2792
      %v2794 = vrot.slane %v2682, %v2793
      %v2795 = vunpack.c.l.b16 %v2689
      %v2796 = vunpack.c.h.b16 %v2689
      %v2797 = vunpack.c.l.b16 %v2696
      %v2798 = vunpack.c.h.b16 %v2696
      %v2799 = vunpack.c.l.b16 %v2703
      %v2800 = vunpack.c.h.b16 %v2703
      %v2801 = vunpack.c.l.b16 %v2710
      %v2802 = vunpack.c.h.b16 %v2710
      %v2803 = vunpack.c.l.b16 %v2717
      %v2804 = vunpack.c.h.b16 %v2717
      %v2805 = vunpack.c.l.b16 %v2724
      %v2806 = vunpack.c.h.b16 %v2724
      %v2807 = vunpack.c.l.b16 %v2731
      %v2808 = vunpack.c.h.b16 %v2731
      %v2809 = vunpack.c.l.b16 %v2738
      %v2810 = vunpack.c.h.b16 %v2738
      %v2811 = vunpack.c.l.b16 %v2745
      %v2812 = vunpack.c.h.b16 %v2745
      %v2813 = vunpack.c.l.b16 %v2752
      %v2814 = vunpack.c.h.b16 %v2752
      %v2815 = vunpack.c.l.b16 %v2759
      %v2816 = vunpack.c.h.b16 %v2759
      %v2817 = vunpack.c.l.b16 %v2766
      %v2818 = vunpack.c.h.b16 %v2766
      %v2819 = vunpack.c.l.b16 %v2773
      %v2820 = vunpack.c.h.b16 %v2773
      %v2821 = vunpack.c.l.b16 %v2780
      %v2822 = vunpack.c.h.b16 %v2780
      %v2823 = vunpack.c.l.b16 %v2787
      %v2824 = vunpack.c.h.b16 %v2787
      %v2825 = vunpack.c.l.b16 %v2794
      %v2826 = vunpack.c.h.b16 %v2794
      %v2827 = vrot.slane %v2797, 7
      %vm2828 = vcmask 1041409
      %v2829 = vsel %vm2828, %v2827, %v2795
      %v2830 = vrot.slane %v2799, 6
      %vm2831 = vcmask 1042434
      %v2832 = vsel %vm2831, %v2830, %v2829
      %v2833 = vrot.slane %v2801, 5
      %vm2834 = vcmask 1043459
      %v2835 = vsel %vm2834, %v2833, %v2832
      %v2836 = vrot.slane %v2798, 7
      %v2837 = vsel %vm2828, %v2836, %v2796
      %v2838 = vrot.slane %v2800, 6
      %v2839 = vsel %vm2831, %v2838, %v2837
      %v2840 = vrot.slane %v2802, 5
      %v2841 = vsel %vm2834, %v2840, %v2839
      %v2842 = vrot.slane %v2805, 7
      %v2843 = vsel %vm2828, %v2842, %v2803
      %v2844 = vrot.slane %v2807, 6
      %v2845 = vsel %vm2831, %v2844, %v2843
      %v2846 = vrot.slane %v2809, 5
      %v2847 = vsel %vm2834, %v2846, %v2845
      %v2848 = vrot.slane %v2806, 7
      %v2849 = vsel %vm2828, %v2848, %v2804
      %v2850 = vrot.slane %v2808, 6
      %v2851 = vsel %vm2831, %v2850, %v2849
      %v2852 = vrot.slane %v2810, 5
      %v2853 = vsel %vm2834, %v2852, %v2851
      %v2854 = vrot.slane %v2813, 7
      %v2855 = vsel %vm2828, %v2854, %v2811
      %v2856 = vrot.slane %v2815, 6
      %v2857 = vsel %vm2831, %v2856, %v2855
      %v2858 = vrot.slane %v2817, 5
      %v2859 = vsel %vm2834, %v2858, %v2857
      %v2860 = vrot.slane %v2814, 7
      %v2861 = vsel %vm2828, %v2860, %v2812
      %v2862 = vrot.slane %v2816, 6
      %v2863 = vsel %vm2831, %v2862, %v2861
      %v2864 = vrot.slane %v2818, 5
      %v2865 = vsel %vm2834, %v2864, %v2863
      %v2866 = vrot.slane %v2821, 7
      %v2867 = vsel %vm2828, %v2866, %v2819
      %v2868 = vrot.slane %v2823, 6
      %v2869 = vsel %vm2831, %v2868, %v2867
      %v2870 = vrot.slane %v2825, 5
      %v2871 = vsel %vm2834, %v2870, %v2869
      %v2872 = vrot.slane %v2822, 7
      %v2873 = vsel %vm2828, %v2872, %v2820
      %v2874 = vrot.slane %v2824, 6
      %v2875 = vsel %vm2831, %v2874, %v2873
      %v2876 = vrot.slane %v2826, 5
      %v2877 = vsel %vm2834, %v2876, %v2875
      %v2878 = vpack.c.b16 %v2841, %v2835
      %v2879 = vpack.c.b16 %v2853, %v2847
      %v2880 = vpack.c.b16 %v2865, %v2859
      %v2881 = vpack.c.b16 %v2877, %v2871
      %v2883 = vunpack.c.l.s4 1983009808
      %v2884 = vunpack.c.0.s8 %v2883
      %v2885 = vlaneseq
      %v2886 = vshrl.u32 %v2885, 7
      %v2887 = vsub.s32 %v2884, %v2886
      %v2888 = vrot.slane %v2878, %v2887
      %v2890 = vunpack.c.l.s4 1983009808
      %v2891 = vunpack.c.0.s8 %v2890
      %v2892 = vlaneseq
      %v2893 = vshrl.u32 %v2892, 7
      %v2894 = vsub.s32 %v2891, %v2893
      %v2895 = vrot.slane %v2879, %v2894
      %v2897 = vunpack.c.l.s4 1983009808
      %v2898 = vunpack.c.0.s8 %v2897
      %v2899 = vlaneseq
      %v2900 = vshrl.u32 %v2899, 7
      %v2901 = vsub.s32 %v2898, %v2900
      %v2902 = vrot.slane %v2880, %v2901
      %v2904 = vunpack.c.l.s4 1983009808
      %v2905 = vunpack.c.0.s8 %v2904
      %v2906 = vlaneseq
      %v2907 = vshrl.u32 %v2906, 7
      %v2908 = vsub.s32 %v2905, %v2907
      %v2909 = vrot.slane %v2881, %v2908
      %2914 = vst [vmem:[%s170] sm:$0xf] %v2888
      %2915 = vst [vmem:[%s170 + $0x4] sm:$0xf] %v2895
      %2916 = vst [vmem:[%s170 + $0x8] sm:$0xf] %v2902
      %2917 = vst [vmem:[%s170 + $0xc] sm:$0xf] %v2909
      %p2918 = scmp.lt.s32.totalorder %s14, 1
      %s2919 = scalar_select %p2918, %s14, 1
      %s2920 = smul.addr %s2919, 8
      %s2921 = smul.addr %s2920, 2
      %s2922 = scalar_lea.vmem %s3, %s2921
      // Predicated region
      $region33: #{age_gender_forward.4} parent=31 // pred_check
        %p2923 = pneg %p100
      $region34: #{age_gender_forward.4} parent=31 // pred_check_branch
        %2925 = sbr.rel (%p2923) target = $region36
      $region35: #{age_gender_forward.4} parent=31 // pred_region
        _
      $region36: #{age_gender_forward.4} parent=31 // pred_fallthru
        _
    $region32: #{age_gender_forward.4} parent=5 // pred_fallthru
      _
    %p2926 = scmp.le.s32.totalorder 2, %s9
    // Predicated region
    $region37: #{age_gender_forward.4} parent=5 // pred_check
      %p2927 = pneg %p2926
    $region38: #{age_gender_forward.4} parent=5 // pred_check_branch
      %2929 = sbr.rel (%p2927) target = $region40
    $region39: #{age_gender_forward.4} parent=5 // pred_region
      %s2930 = ssub.s32 %s9, 2
      // Predicated region
      $region41: #{age_gender_forward.4} parent=39 // pred_check
        %p2931 = pneg %p106
      $region42: #{age_gender_forward.4} parent=39 // pred_check_branch
        %2933 = sbr.rel (%p2931) target = $region44
      $region43: #{age_gender_forward.4} parent=39 // pred_region
        %p2934 = scmp.lt.s32.totalorder %s15, 1
        %s2935 = scalar_select %p2934, %s15, 1
        %s2936 = smul.addr %s2935, 8
        %s2937 = smul.addr %s2936, 2
        %s2938 = scalar_lea.vmem %s3, %s2937
      $region44: #{age_gender_forward.4} parent=39 // pred_fallthru
        _
    $region40: #{age_gender_forward.4} parent=5 // pred_fallthru
      _
  $region6: #{age_gender_forward.4} parent=0 // loop_footer
    %s13 = sadd.s32 1, %s9
  $region7: #{age_gender_forward.4} parent=0 // loop_footer_branch
    %8 = sbr.rel target = $region3
  $region8: #{age_gender_forward.4} parent=0 // loop_exit
    _

// kernel: age_gender_forward.5
$region0: #{age_gender_forward.5}
  #allocation0 [shape = 'u32[]', space=smem, size = 0x4, offset = 0x4, fixed_abs, tag = 'smem constant byte address 0x4 - core index']
  #allocation1 [shape = 'u32[144,128]{1,0:T(1,128)}', space=vmem, size = 0x12000, scoped, tag = 'internal scratch']
  #allocation2 [shape = 'f32[2,128]{1,0:T(2,128)}', space=vmem, size = 0x400, scoped, tag = 'scratch operand']
  %s0 = inlined_call_operand.vmem [shape: bf16[2,2,2048], index: 0, kind: input, shape index: {}]
  %s1 = inlined_call_operand.vmem [shape: bf16[2,2048,128], index: 1, kind: input, shape index: {}]
  %s2 = inlined_call_operand.vmem [shape: f32[2,1,128], index: 2, kind: input, shape index: {}]
  %s3 = inlined_call_operand.vmem [shape: bf16[2,128,128], index: 3, kind: input, shape index: {}]
  %s4 = inlined_call_operand.vmem [shape: f32[2,1,128], index: 4, kind: input, shape index: {}]
  %s5 = inlined_call_operand.vmem [shape: f32[2,2,128], index: 5, kind: output, shape index: {}]
  %s6 = sld [smem:[#allocation0]]
  $region61: #{age_gender_forward.5} parent=0
    _
  %s8 = ssub.s32 1, %s6
  %s9 = scalar_select 0, %s8, %s6
  loop: start=0, step=1, limit=4
  $region2: #{age_gender_forward.5} parent=0 // loop_pre_header
    _
  $region3: #{age_gender_forward.5} parent=0 // loop_header
    %s11 = sphi 0, %s15
    %p12 = scmp.ge.s32.totalorder %s11, 4
    %s18 = sphi 0, %s30
    %s19 = sphi 0, %s26
    %s20 = sphi 0, %s18
    %s21 = sphi 0, %s19
    %s22 = sphi 0, %s20
    %s23 = sphi 0, %s21
    %s35 = sphi 0, %s37
    %s38 = sphi 0, %s35
    %s39 = sphi 0, %s38
    %s55 = sphi 0, %s39
    %s63 = sphi 0, %s65
    %s66 = sphi 0, %s63
    %s67 = sphi 0, %s66
    %s83 = sphi 0, %s67
    %s89 = sphi 0, %s91
    %s92 = sphi 0, %s89
    %s93 = sphi 0, %s92
    %s109 = sphi 0, %s93
    %s115 = sphi 0, %s117
    %s118 = sphi 0, %s115
    %s119 = sphi 0, %s118
    %s135 = sphi 0, %s119
    %s141 = sphi 0, %s143
    %s144 = sphi 0, %s141
    %s145 = sphi 0, %s144
    %s161 = sphi 0, %s145
    %s167 = sphi 0, %s169
    %s170 = sphi 0, %s167
    %s171 = sphi 0, %s170
    %s187 = sphi 0, %s171
  $region4: #{age_gender_forward.5} parent=0 // loop_header_branch
    %14 = sbr.rel (%p12) target = $region8
  $region5: #{age_gender_forward.5} parent=0 // loop_body
    %s16 = ssub.s32 %s11, 1
    %s17 = ssub.s32 %s11, 2
    %s24 = sadd.s32 1, %s19
    %p25 = scmp.ge.s32.totalorder %s24, 1
    %s26 = scalar_select %p25, 0, %s24
    %s27 = sadd.s32 1, %s18
    %s28 = scalar_select %p25, %s27, %s18
    %p29 = scmp.ge.s32.totalorder %s28, 2
    %s30 = scalar_select %p29, 0, %s28
    %s31 = ssub.s32 %s18, %s30
    %s32 = ssub.s32 %s19, %s26
    %s33 = sor.u32 %s31, %s32
    %p34 = scmp.eq.s32.totalorder %s33, 0
    %s36 = sadd.s32 %s35, 1
    %s37 = scalar_select %p34, %s35, %s36
    %p40 = pneg %p34
    %p41 = scmp.eq.s32.totalorder %s11, 1
    %p42 = por %p40, %p41
    %p43 = scmp.ne.s32.totalorder %s35, %s38
    %p44 = scmp.eq.s32.totalorder %s11, 0
    %p45 = por %p43, %p44
    %p46 = scmp.ne.s32.totalorder %s35, %s38
    %p47 = scmp.eq.s32.totalorder %s16, 1
    %p48 = por %p46, %p47
    %p49 = scmp.ne.s32.totalorder %s38, %s39
    %p50 = scmp.eq.s32.totalorder %s16, 0
    %p51 = por %p49, %p50
    %p52 = scmp.ne.s32.totalorder %s38, %s39
    %p53 = scmp.eq.s32.totalorder %s17, 1
    %p54 = por %p52, %p53
    %p56 = scmp.ne.s32.totalorder %s39, %s55
    %p57 = scmp.eq.s32.totalorder %s17, 0
    %p58 = por %p56, %p57
    %s59 = ssub.s32 %s18, %s30
    %s60 = ssub.s32 %s19, %s26
    %s61 = sor.u32 %s59, %s60
    %p62 = scmp.eq.s32.totalorder %s61, 0
    %s64 = sadd.s32 %s63, 1
    %s65 = scalar_select %p62, %s63, %s64
    %p68 = pneg %p62
    %p69 = scmp.eq.s32.totalorder %s11, 1
    %p70 = por %p68, %p69
    %p71 = scmp.ne.s32.totalorder %s63, %s66
    %p72 = scmp.eq.s32.totalorder %s11, 0
    %p73 = por %p71, %p72
    %p74 = scmp.ne.s32.totalorder %s63, %s66
    %p75 = scmp.eq.s32.totalorder %s16, 1
    %p76 = por %p74, %p75
    %p77 = scmp.ne.s32.totalorder %s66, %s67
    %p78 = scmp.eq.s32.totalorder %s16, 0
    %p79 = por %p77, %p78
    %p80 = scmp.ne.s32.totalorder %s66, %s67
    %p81 = scmp.eq.s32.totalorder %s17, 1
    %p82 = por %p80, %p81
    %p84 = scmp.ne.s32.totalorder %s67, %s83
    %p85 = scmp.eq.s32.totalorder %s17, 0
    %p86 = por %p84, %p85
    %s87 = ssub.s32 %s18, %s30
    %p88 = scmp.eq.s32.totalorder %s87, 0
    %s90 = sadd.s32 %s89, 1
    %s91 = scalar_select %p88, %s89, %s90
    %p94 = pneg %p88
    %p95 = scmp.eq.s32.totalorder %s11, 1
    %p96 = por %p94, %p95
    %p97 = scmp.ne.s32.totalorder %s89, %s92
    %p98 = scmp.eq.s32.totalorder %s11, 0
    %p99 = por %p97, %p98
    %p100 = scmp.ne.s32.totalorder %s89, %s92
    %p101 = scmp.eq.s32.totalorder %s16, 1
    %p102 = por %p100, %p101
    %p103 = scmp.ne.s32.totalorder %s92, %s93
    %p104 = scmp.eq.s32.totalorder %s16, 0
    %p105 = por %p103, %p104
    %p106 = scmp.ne.s32.totalorder %s92, %s93
    %p107 = scmp.eq.s32.totalorder %s17, 1
    %p108 = por %p106, %p107
    %p110 = scmp.ne.s32.totalorder %s93, %s109
    %p111 = scmp.eq.s32.totalorder %s17, 0
    %p112 = por %p110, %p111
    %s113 = ssub.s32 %s18, %s30
    %p114 = scmp.eq.s32.totalorder %s113, 0
    %s116 = sadd.s32 %s115, 1
    %s117 = scalar_select %p114, %s115, %s116
    %p120 = pneg %p114
    %p121 = scmp.eq.s32.totalorder %s11, 1
    %p122 = por %p120, %p121
    %p123 = scmp.ne.s32.totalorder %s115, %s118
    %p124 = scmp.eq.s32.totalorder %s11, 0
    %p125 = por %p123, %p124
    %p126 = scmp.ne.s32.totalorder %s115, %s118
    %p127 = scmp.eq.s32.totalorder %s16, 1
    %p128 = por %p126, %p127
    %p129 = scmp.ne.s32.totalorder %s118, %s119
    %p130 = scmp.eq.s32.totalorder %s16, 0
    %p131 = por %p129, %p130
    %p132 = scmp.ne.s32.totalorder %s118, %s119
    %p133 = scmp.eq.s32.totalorder %s17, 1
    %p134 = por %p132, %p133
    %p136 = scmp.ne.s32.totalorder %s119, %s135
    %p137 = scmp.eq.s32.totalorder %s17, 0
    %p138 = por %p136, %p137
    %s139 = ssub.s32 %s18, %s30
    %p140 = scmp.eq.s32.totalorder %s139, 0
    %s142 = sadd.s32 %s141, 1
    %s143 = scalar_select %p140, %s141, %s142
    %p146 = pneg %p140
    %p147 = scmp.eq.s32.totalorder %s11, 1
    %p148 = por %p146, %p147
    %p149 = scmp.ne.s32.totalorder %s141, %s144
    %p150 = scmp.eq.s32.totalorder %s11, 0
    %p151 = por %p149, %p150
    %p152 = scmp.ne.s32.totalorder %s141, %s144
    %p153 = scmp.eq.s32.totalorder %s16, 1
    %p154 = por %p152, %p153
    %p155 = scmp.ne.s32.totalorder %s144, %s145
    %p156 = scmp.eq.s32.totalorder %s16, 0
    %p157 = por %p155, %p156
    %p158 = scmp.ne.s32.totalorder %s144, %s145
    %p159 = scmp.eq.s32.totalorder %s17, 1
    %p160 = por %p158, %p159
    %p162 = scmp.ne.s32.totalorder %s145, %s161
    %p163 = scmp.eq.s32.totalorder %s17, 0
    %p164 = por %p162, %p163
    %s165 = ssub.s32 %s18, %s30
    %p166 = scmp.eq.s32.totalorder %s165, 0
    %s168 = sadd.s32 %s167, 1
    %s169 = scalar_select %p166, %s167, %s168
    %p172 = pneg %p166
    %p173 = scmp.eq.s32.totalorder %s11, 1
    %p174 = por %p172, %p173
    %p175 = scmp.ne.s32.totalorder %s167, %s170
    %p176 = scmp.eq.s32.totalorder %s11, 0
    %p177 = por %p175, %p176
    %p178 = scmp.ne.s32.totalorder %s167, %s170
    %p179 = scmp.eq.s32.totalorder %s16, 1
    %p180 = por %p178, %p179
    %p181 = scmp.ne.s32.totalorder %s170, %s171
    %p182 = scmp.eq.s32.totalorder %s16, 0
    %p183 = por %p181, %p182
    %p184 = scmp.ne.s32.totalorder %s170, %s171
    %p185 = scmp.eq.s32.totalorder %s17, 1
    %p186 = por %p184, %p185
    %p188 = scmp.ne.s32.totalorder %s171, %s187
    %p189 = scmp.eq.s32.totalorder %s17, 0
    %p190 = por %p188, %p189
    %p191 = scmp.le.s32.totalorder 1, %s11
    %p192 = scmp.lt.s32.totalorder %s11, 3
    %p193 = pnand %p191, %p192
    %p194 = pneg %p193
    // Predicated region
    $region9: #{age_gender_forward.5} parent=5 // pred_check
      _
    $region10: #{age_gender_forward.5} parent=5 // pred_check_branch
      %196 = sbr.rel (%p193) target = $region12
    $region11: #{age_gender_forward.5} parent=5 // pred_region
      %s197 = ssub.s32 %s11, 1
    $region12: #{age_gender_forward.5} parent=5 // pred_fallthru
      _
    %p198 = scmp.lt.s32.totalorder %s11, 2
    // Predicated region
    $region13: #{age_gender_forward.5} parent=5 // pred_check
      %p199 = pneg %p198
    $region14: #{age_gender_forward.5} parent=5 // pred_check_branch
      %201 = sbr.rel (%p199) target = $region16
    $region15: #{age_gender_forward.5} parent=5 // pred_region
      // Predicated region
      $region17: #{age_gender_forward.5} parent=15 // pred_check
        %p202 = pneg %p45
      $region18: #{age_gender_forward.5} parent=15 // pred_check_branch
        %204 = sbr.rel (%p202) target = $region20
      $region19: #{age_gender_forward.5} parent=15 // pred_region
        %s205 = smul.u32 16, %s19
        %p206 = scmp.lt.s32.totalorder %s18, 1
        %s207 = scalar_select %p206, %s18, 1
        %p208 = scmp.lt.s32.totalorder %s205, 15
        %s209 = scalar_select %p208, %s205, 15
        %s210 = smul.addr %s207, 16
        %s211 = sadd.s32 %s209, %s210
        %s212 = scalar_lea.vmem %s0, %s211
        %s213 = smul.u32 16, %s19
      $region20: #{age_gender_forward.5} parent=15 // pred_fallthru
        _
      // Predicated region
      $region21: #{age_gender_forward.5} parent=15 // pred_check
        %p214 = pneg %p73
      $region22: #{age_gender_forward.5} parent=15 // pred_check_branch
        %216 = sbr.rel (%p214) target = $region24
      $region23: #{age_gender_forward.5} parent=15 // pred_region
        %s217 = smul.u32 256, %s19
        %p218 = scmp.lt.s32.totalorder %s18, 1
        %s219 = scalar_select %p218, %s18, 1
        %p220 = scmp.lt.s32.totalorder %s217, 255
        %s221 = scalar_select %p220, %s217, 255
        %s222 = smul.addr %s219, 256
        %s223 = sadd.s32 %s221, %s222
        %s224 = smul.addr %s223, 4
        %s225 = scalar_lea.vmem %s1, %s224
        %s226 = smul.u32 256, %s19
      $region24: #{age_gender_forward.5} parent=15 // pred_fallthru
        _
      // Predicated region
      $region25: #{age_gender_forward.5} parent=15 // pred_check
        %p227 = pneg %p99
      $region26: #{age_gender_forward.5} parent=15 // pred_check_branch
        %229 = sbr.rel (%p227) target = $region28
      $region27: #{age_gender_forward.5} parent=15 // pred_region
        %p230 = scmp.lt.s32.totalorder %s18, 1
        %s231 = scalar_select %p230, %s18, 1
        %s232 = scalar_lea.vmem %s2, %s231
      $region28: #{age_gender_forward.5} parent=15 // pred_fallthru
        _
      // Predicated region
      $region29: #{age_gender_forward.5} parent=15 // pred_check
        %p233 = pneg %p125
      $region30: #{age_gender_forward.5} parent=15 // pred_check_branch
        %235 = sbr.rel (%p233) target = $region32
      $region31: #{age_gender_forward.5} parent=15 // pred_region
        %p236 = scmp.lt.s32.totalorder %s18, 1
        %s237 = scalar_select %p236, %s18, 1
        %s238 = smul.addr %s237, 16
        %s239 = smul.addr %s238, 4
        %s240 = scalar_lea.vmem %s3, %s239
      $region32: #{age_gender_forward.5} parent=15 // pred_fallthru
        _
      // Predicated region
      $region33: #{age_gender_forward.5} parent=15 // pred_check
        %p241 = pneg %p151
      $region34: #{age_gender_forward.5} parent=15 // pred_check_branch
        %243 = sbr.rel (%p241) target = $region36
      $region35: #{age_gender_forward.5} parent=15 // pred_region
        %p244 = scmp.lt.s32.totalorder %s18, 1
        %s245 = scalar_select %p244, %s18, 1
        %s246 = scalar_lea.vmem %s4, %s245
      $region36: #{age_gender_forward.5} parent=15 // pred_fallthru
        _
    $region16: #{age_gender_forward.5} parent=5 // pred_fallthru
      _
    %p247 = scmp.le.s32.totalorder 1, %s11
    %p248 = scmp.lt.s32.totalorder %s11, 3
    %p249 = pnand %p247, %p248
    %p250 = pneg %p249
    // Predicated region
    $region37: #{age_gender_forward.5} parent=5 // pred_check
      _
    $region38: #{age_gender_forward.5} parent=5 // pred_check_branch
      %252 = sbr.rel (%p249) target = $region40
    $region39: #{age_gender_forward.5} parent=5 // pred_region
      %s253 = ssub.s32 %s11, 1
      %s254 = smul.u32 16, %s21
      %p255 = scmp.lt.s32.totalorder %s20, 1
      %s256 = scalar_select %p255, %s20, 1
      %p257 = scmp.lt.s32.totalorder %s254, 15
      %s258 = scalar_select %p257, %s254, 15
      %s259 = smul.addr %s256, 16
      %s260 = sadd.s32 %s258, %s259
      %s261 = scalar_lea.vmem %s0, %s260
      %p262 = pneg %p51
      %p263 = pneg %p48
      %s264 = smul.u32 256, %s21
      %p265 = scmp.lt.s32.totalorder %s20, 1
      %s266 = scalar_select %p265, %s20, 1
      %p267 = scmp.lt.s32.totalorder %s264, 255
      %s268 = scalar_select %p267, %s264, 255
      %s269 = smul.addr %s266, 256
      %s270 = sadd.s32 %s268, %s269
      %s271 = smul.addr %s270, 4
      %s272 = scalar_lea.vmem %s1, %s271
      %p273 = pneg %p79
      %p274 = pneg %p76
      %p275 = scmp.lt.s32.totalorder %s20, 1
      %s276 = scalar_select %p275, %s20, 1
      %s277 = scalar_lea.vmem %s2, %s276
      %p278 = pneg %p105
      %p279 = pneg %p102
      %p280 = scmp.lt.s32.totalorder %s20, 1
      %s281 = scalar_select %p280, %s20, 1
      %s282 = smul.addr %s281, 16
      %s283 = smul.addr %s282, 4
      %s284 = scalar_lea.vmem %s3, %s283
      %p285 = pneg %p131
      %p286 = pneg %p128
      %p287 = scmp.lt.s32.totalorder %s20, 1
      %s288 = scalar_select %p287, %s20, 1
      %s289 = scalar_lea.vmem %s4, %s288
      %p290 = pneg %p157
      %p291 = pneg %p154
      %p292 = pneg %p183
      %p293 = pneg %p180
      %p294 = scmp.lt.s32.totalorder %s20, 1
      %s295 = scalar_select %p294, %s20, 1
      %s296 = smul.addr %s295, 2
      %s297 = scalar_lea.vmem %s5, %s296
      %s298 = smul.u32 16, %s21
      %p299 = scmp.lt.s32.totalorder %s20, 1
      %s300 = scalar_select %p299, %s20, 1
      %p301 = scmp.lt.s32.totalorder %s298, 15
      %s302 = scalar_select %p301, %s298, 15
      %s303 = smul.addr %s300, 16
      %s304 = sadd.s32 %s302, %s303
      %s305 = scalar_lea.vmem %s0, %s304
      %s306 = smul.u32 16, %s21
      %s307 = smul.u32 256, %s21
      %p308 = scmp.lt.s32.totalorder %s20, 1
      %s309 = scalar_select %p308, %s20, 1
      %p310 = scmp.lt.s32.totalorder %s307, 255
      %s311 = scalar_select %p310, %s307, 255
      %s312 = smul.addr %s309, 256
      %s313 = sadd.s32 %s311, %s312
      %s314 = smul.addr %s313, 4
      %s315 = scalar_lea.vmem %s1, %s314
      %s316 = smul.u32 256, %s21
      %p317 = scmp.lt.s32.totalorder %s20, 1
      %s318 = scalar_select %p317, %s20, 1
      %s319 = scalar_lea.vmem %s2, %s318
      %p320 = scmp.lt.s32.totalorder %s20, 1
      %s321 = scalar_select %p320, %s20, 1
      %s322 = smul.addr %s321, 16
      %s323 = smul.addr %s322, 4
      %s324 = scalar_lea.vmem %s3, %s323
      %p325 = scmp.lt.s32.totalorder %s20, 1
      %s326 = scalar_select %p325, %s20, 1
      %s327 = scalar_lea.vmem %s4, %s326
      %p328 = scmp.lt.s32.totalorder %s20, 1
      %s329 = scalar_select %p328, %s20, 1
      %s330 = smul.addr %s329, 2
      %s331 = scalar_lea.vmem %s5, %s330
      %p333 = scmp.eq.s32.totalorder %s21, 0
      // Predicated region
      $region41: #{age_gender_forward.5} parent=39 // pred_check
        %p334 = pneg %p333
      $region42: #{age_gender_forward.5} parent=39 // pred_check_branch
        %336 = sbr.rel (%p334) target = $region44
      $region43: #{age_gender_forward.5} parent=39 // pred_region
        %337 = vst [vmem:[#allocation2] sm:$0x3] 0.0
      $region44: #{age_gender_forward.5} parent=39 // pred_fallthru
        _
      %v338 = vld [vmem:[#allocation2] sm:$0x3]
      %v339 = vld [vmem:[%s305] sm:$0xff]
      %v340 = vld [vmem:[%s305 + $0x8] sm:$0xff]
      %v341 = vld [vmem:[%s315] sm:$0xf]
      %v342 = vld [vmem:[%s315 + $0x4] sm:$0xf]
      %v343 = vld [vmem:[%s315 + $0x8] sm:$0xf]
      %v344 = vld [vmem:[%s315 + $0xc] sm:$0xf]
      %v345 = vld [vmem:[%s315 + $0x10] sm:$0xf]
      %v346 = vld [vmem:[%s315 + $0x14] sm:$0xf]
      %v347 = vld [vmem:[%s315 + $0x18] sm:$0xf]
      %v348 = vld [vmem:[%s315 + $0x1c] sm:$0xf]
      %v349 = vld [vmem:[%s315 + $0x20] sm:$0xf]
      %v350 = vld [vmem:[%s315 + $0x24] sm:$0xf]
      %v351 = vld [vmem:[%s315 + $0x28] sm:$0xf]
      %v352 = vld [vmem:[%s315 + $0x2c] sm:$0xf]
      %v353 = vld [vmem:[%s315 + $0x30] sm:$0xf]
      %v354 = vld [vmem:[%s315 + $0x34] sm:$0xf]
      %v355 = vld [vmem:[%s315 + $0x38] sm:$0xf]
      %v356 = vld [vmem:[%s315 + $0x3c] sm:$0xf]
      %v357 = vld [vmem:[%s315 + $0x40] sm:$0xf]
      %v358 = vld [vmem:[%s315 + $0x44] sm:$0xf]
      %v359 = vld [vmem:[%s315 + $0x48] sm:$0xf]
      %v360 = vld [vmem:[%s315 + $0x4c] sm:$0xf]
      %v361 = vld [vmem:[%s315 + $0x50] sm:$0xf]
      %v362 = vld [vmem:[%s315 + $0x54] sm:$0xf]
      %v363 = vld [vmem:[%s315 + $0x58] sm:$0xf]
      %v364 = vld [vmem:[%s315 + $0x5c] sm:$0xf]
      %v365 = vld [vmem:[%s315 + $0x60] sm:$0xf]
      %v366 = vld [vmem:[%s315 + $0x64] sm:$0xf]
      %v367 = vld [vmem:[%s315 + $0x68] sm:$0xf]
      %v368 = vld [vmem:[%s315 + $0x6c] sm:$0xf]
      %v369 = vld [vmem:[%s315 + $0x70] sm:$0xf]
      %v370 = vld [vmem:[%s315 + $0x74] sm:$0xf]
      %v371 = vld [vmem:[%s315 + $0x78] sm:$0xf]
      %v372 = vld [vmem:[%s315 + $0x7c] sm:$0xf]
      %v373 = vld [vmem:[%s315 + $0x80] sm:$0xf]
      %v374 = vld [vmem:[%s315 + $0x84] sm:$0xf]
      %v375 = vld [vmem:[%s315 + $0x88] sm:$0xf]
      %v376 = vld [vmem:[%s315 + $0x8c] sm:$0xf]
      %v377 = vld [vmem:[%s315 + $0x90] sm:$0xf]
      %v378 = vld [vmem:[%s315 + $0x94] sm:$0xf]
      %v379 = vld [vmem:[%s315 + $0x98] sm:$0xf]
      %v380 = vld [vmem:[%s315 + $0x9c] sm:$0xf]
      %v381 = vld [vmem:[%s315 + $0xa0] sm:$0xf]
      %v382 = vld [vmem:[%s315 + $0xa4] sm:$0xf]
      %v383 = vld [vmem:[%s315 + $0xa8] sm:$0xf]
      %v384 = vld [vmem:[%s315 + $0xac] sm:$0xf]
      %v385 = vld [vmem:[%s315 + $0xb0] sm:$0xf]
      %v386 = vld [vmem:[%s315 + $0xb4] sm:$0xf]
      %v387 = vld [vmem:[%s315 + $0xb8] sm:$0xf]
      %v388 = vld [vmem:[%s315 + $0xbc] sm:$0xf]
      %v389 = vld [vmem:[%s315 + $0xc0] sm:$0xf]
      %v390 = vld [vmem:[%s315 + $0xc4] sm:$0xf]
      %v391 = vld [vmem:[%s315 + $0xc8] sm:$0xf]
      %v392 = vld [vmem:[%s315 + $0xcc] sm:$0xf]
      %v393 = vld [vmem:[%s315 + $0xd0] sm:$0xf]
      %v394 = vld [vmem:[%s315 + $0xd4] sm:$0xf]
      %v395 = vld [vmem:[%s315 + $0xd8] sm:$0xf]
      %v396 = vld [vmem:[%s315 + $0xdc] sm:$0xf]
      %v397 = vld [vmem:[%s315 + $0xe0] sm:$0xf]
      %v398 = vld [vmem:[%s315 + $0xe4] sm:$0xf]
      %v399 = vld [vmem:[%s315 + $0xe8] sm:$0xf]
      %v400 = vld [vmem:[%s315 + $0xec] sm:$0xf]
      %v401 = vld [vmem:[%s315 + $0xf0] sm:$0xf]
      %v402 = vld [vmem:[%s315 + $0xf4] sm:$0xf]
      %v403 = vld [vmem:[%s315 + $0xf8] sm:$0xf]
      %v404 = vld [vmem:[%s315 + $0xfc] sm:$0xf]
      %v405 = vld [vmem:[%s315 + $0x100] sm:$0xf]
      %v406 = vld [vmem:[%s315 + $0x104] sm:$0xf]
      %v407 = vld [vmem:[%s315 + $0x108] sm:$0xf]
      %v408 = vld [vmem:[%s315 + $0x10c] sm:$0xf]
      %v409 = vld [vmem:[%s315 + $0x110] sm:$0xf]
      %v410 = vld [vmem:[%s315 + $0x114] sm:$0xf]
      %v411 = vld [vmem:[%s315 + $0x118] sm:$0xf]
      %v412 = vld [vmem:[%s315 + $0x11c] sm:$0xf]
      %v413 = vld [vmem:[%s315 + $0x120] sm:$0xf]
      %v414 = vld [vmem:[%s315 + $0x124] sm:$0xf]
      %v415 = vld [vmem:[%s315 + $0x128] sm:$0xf]
      %v416 = vld [vmem:[%s315 + $0x12c] sm:$0xf]
      %v417 = vld [vmem:[%s315 + $0x130] sm:$0xf]
      %v418 = vld [vmem:[%s315 + $0x134] sm:$0xf]
      %v419 = vld [vmem:[%s315 + $0x138] sm:$0xf]
      %v420 = vld [vmem:[%s315 + $0x13c] sm:$0xf]
      %v421 = vld [vmem:[%s315 + $0x140] sm:$0xf]
      %v422 = vld [vmem:[%s315 + $0x144] sm:$0xf]
      %v423 = vld [vmem:[%s315 + $0x148] sm:$0xf]
      %v424 = vld [vmem:[%s315 + $0x14c] sm:$0xf]
      %v425 = vld [vmem:[%s315 + $0x150] sm:$0xf]
      %v426 = vld [vmem:[%s315 + $0x154] sm:$0xf]
      %v427 = vld [vmem:[%s315 + $0x158] sm:$0xf]
      %v428 = vld [vmem:[%s315 + $0x15c] sm:$0xf]
      %v429 = vld [vmem:[%s315 + $0x160] sm:$0xf]
      %v430 = vld [vmem:[%s315 + $0x164] sm:$0xf]
      %v431 = vld [vmem:[%s315 + $0x168] sm:$0xf]
      %v432 = vld [vmem:[%s315 + $0x16c] sm:$0xf]
      %v433 = vld [vmem:[%s315 + $0x170] sm:$0xf]
      %v434 = vld [vmem:[%s315 + $0x174] sm:$0xf]
      %v435 = vld [vmem:[%s315 + $0x178] sm:$0xf]
      %v436 = vld [vmem:[%s315 + $0x17c] sm:$0xf]
      %v437 = vld [vmem:[%s315 + $0x180] sm:$0xf]
      %v438 = vld [vmem:[%s315 + $0x184] sm:$0xf]
      %v439 = vld [vmem:[%s315 + $0x188] sm:$0xf]
      %v440 = vld [vmem:[%s315 + $0x18c] sm:$0xf]
      %v441 = vld [vmem:[%s315 + $0x190] sm:$0xf]
      %v442 = vld [vmem:[%s315 + $0x194] sm:$0xf]
      %v443 = vld [vmem:[%s315 + $0x198] sm:$0xf]
      %v444 = vld [vmem:[%s315 + $0x19c] sm:$0xf]
      %v445 = vld [vmem:[%s315 + $0x1a0] sm:$0xf]
      %v446 = vld [vmem:[%s315 + $0x1a4] sm:$0xf]
      %v447 = vld [vmem:[%s315 + $0x1a8] sm:$0xf]
      %v448 = vld [vmem:[%s315 + $0x1ac] sm:$0xf]
      %v449 = vld [vmem:[%s315 + $0x1b0] sm:$0xf]
      %v450 = vld [vmem:[%s315 + $0x1b4] sm:$0xf]
      %v451 = vld [vmem:[%s315 + $0x1b8] sm:$0xf]
      %v452 = vld [vmem:[%s315 + $0x1bc] sm:$0xf]
      %v453 = vld [vmem:[%s315 + $0x1c0] sm:$0xf]
      %v454 = vld [vmem:[%s315 + $0x1c4] sm:$0xf]
      %v455 = vld [vmem:[%s315 + $0x1c8] sm:$0xf]
      %v456 = vld [vmem:[%s315 + $0x1cc] sm:$0xf]
      %v457 = vld [vmem:[%s315 + $0x1d0] sm:$0xf]
      %v458 = vld [vmem:[%s315 + $0x1d4] sm:$0xf]
      %v459 = vld [vmem:[%s315 + $0x1d8] sm:$0xf]
      %v460 = vld [vmem:[%s315 + $0x1dc] sm:$0xf]
      %v461 = vld [vmem:[%s315 + $0x1e0] sm:$0xf]
      %v462 = vld [vmem:[%s315 + $0x1e4] sm:$0xf]
      %v463 = vld [vmem:[%s315 + $0x1e8] sm:$0xf]
      %v464 = vld [vmem:[%s315 + $0x1ec] sm:$0xf]
      %v465 = vld [vmem:[%s315 + $0x1f0] sm:$0xf]
      %v466 = vld [vmem:[%s315 + $0x1f4] sm:$0xf]
      %v467 = vld [vmem:[%s315 + $0x1f8] sm:$0xf]
      %v468 = vld [vmem:[%s315 + $0x1fc] sm:$0xf]
      %v469 = vld [vmem:[%s315 + $0x200] sm:$0xf]
      %v470 = vld [vmem:[%s315 + $0x204] sm:$0xf]
      %v471 = vld [vmem:[%s315 + $0x208] sm:$0xf]
      %v472 = vld [vmem:[%s315 + $0x20c] sm:$0xf]
      %v473 = vld [vmem:[%s315 + $0x210] sm:$0xf]
      %v474 = vld [vmem:[%s315 + $0x214] sm:$0xf]
      %v475 = vld [vmem:[%s315 + $0x218] sm:$0xf]
      %v476 = vld [vmem:[%s315 + $0x21c] sm:$0xf]
      %v477 = vld [vmem:[%s315 + $0x220] sm:$0xf]
      %v478 = vld [vmem:[%s315 + $0x224] sm:$0xf]
      %v479 = vld [vmem:[%s315 + $0x228] sm:$0xf]
      %v480 = vld [vmem:[%s315 + $0x22c] sm:$0xf]
      %v481 = vld [vmem:[%s315 + $0x230] sm:$0xf]
      %v482 = vld [vmem:[%s315 + $0x234] sm:$0xf]
      %v483 = vld [vmem:[%s315 + $0x238] sm:$0xf]
      %v484 = vld [vmem:[%s315 + $0x23c] sm:$0xf]
      %v485 = vld [vmem:[%s315 + $0x240] sm:$0xf]
      %v486 = vld [vmem:[%s315 + $0x244] sm:$0xf]
      %v487 = vld [vmem:[%s315 + $0x248] sm:$0xf]
      %v488 = vld [vmem:[%s315 + $0x24c] sm:$0xf]
      %v489 = vld [vmem:[%s315 + $0x250] sm:$0xf]
      %v490 = vld [vmem:[%s315 + $0x254] sm:$0xf]
      %v491 = vld [vmem:[%s315 + $0x258] sm:$0xf]
      %v492 = vld [vmem:[%s315 + $0x25c] sm:$0xf]
      %v493 = vld [vmem:[%s315 + $0x260] sm:$0xf]
      %v494 = vld [vmem:[%s315 + $0x264] sm:$0xf]
      %v495 = vld [vmem:[%s315 + $0x268] sm:$0xf]
      %v496 = vld [vmem:[%s315 + $0x26c] sm:$0xf]
      %v497 = vld [vmem:[%s315 + $0x270] sm:$0xf]
      %v498 = vld [vmem:[%s315 + $0x274] sm:$0xf]
      %v499 = vld [vmem:[%s315 + $0x278] sm:$0xf]
      %v500 = vld [vmem:[%s315 + $0x27c] sm:$0xf]
      %v501 = vld [vmem:[%s315 + $0x280] sm:$0xf]
      %v502 = vld [vmem:[%s315 + $0x284] sm:$0xf]
      %v503 = vld [vmem:[%s315 + $0x288] sm:$0xf]
      %v504 = vld [vmem:[%s315 + $0x28c] sm:$0xf]
      %v505 = vld [vmem:[%s315 + $0x290] sm:$0xf]
      %v506 = vld [vmem:[%s315 + $0x294] sm:$0xf]
      %v507 = vld [vmem:[%s315 + $0x298] sm:$0xf]
      %v508 = vld [vmem:[%s315 + $0x29c] sm:$0xf]
      %v509 = vld [vmem:[%s315 + $0x2a0] sm:$0xf]
      %v510 = vld [vmem:[%s315 + $0x2a4] sm:$0xf]
      %v511 = vld [vmem:[%s315 + $0x2a8] sm:$0xf]
      %v512 = vld [vmem:[%s315 + $0x2ac] sm:$0xf]
      %v513 = vld [vmem:[%s315 + $0x2b0] sm:$0xf]
      %v514 = vld [vmem:[%s315 + $0x2b4] sm:$0xf]
      %v515 = vld [vmem:[%s315 + $0x2b8] sm:$0xf]
      %v516 = vld [vmem:[%s315 + $0x2bc] sm:$0xf]
      %v517 = vld [vmem:[%s315 + $0x2c0] sm:$0xf]
      %v518 = vld [vmem:[%s315 + $0x2c4] sm:$0xf]
      %v519 = vld [vmem:[%s315 + $0x2c8] sm:$0xf]
      %v520 = vld [vmem:[%s315 + $0x2cc] sm:$0xf]
      %v521 = vld [vmem:[%s315 + $0x2d0] sm:$0xf]
      %v522 = vld [vmem:[%s315 + $0x2d4] sm:$0xf]
      %v523 = vld [vmem:[%s315 + $0x2d8] sm:$0xf]
      %v524 = vld [vmem:[%s315 + $0x2dc] sm:$0xf]
      %v525 = vld [vmem:[%s315 + $0x2e0] sm:$0xf]
      %v526 = vld [vmem:[%s315 + $0x2e4] sm:$0xf]
      %v527 = vld [vmem:[%s315 + $0x2e8] sm:$0xf]
      %v528 = vld [vmem:[%s315 + $0x2ec] sm:$0xf]
      %v529 = vld [vmem:[%s315 + $0x2f0] sm:$0xf]
      %v530 = vld [vmem:[%s315 + $0x2f4] sm:$0xf]
      %v531 = vld [vmem:[%s315 + $0x2f8] sm:$0xf]
      %v532 = vld [vmem:[%s315 + $0x2fc] sm:$0xf]
      %v533 = vld [vmem:[%s315 + $0x300] sm:$0xf]
      %v534 = vld [vmem:[%s315 + $0x304] sm:$0xf]
      %v535 = vld [vmem:[%s315 + $0x308] sm:$0xf]
      %v536 = vld [vmem:[%s315 + $0x30c] sm:$0xf]
      %v537 = vld [vmem:[%s315 + $0x310] sm:$0xf]
      %v538 = vld [vmem:[%s315 + $0x314] sm:$0xf]
      %v539 = vld [vmem:[%s315 + $0x318] sm:$0xf]
      %v540 = vld [vmem:[%s315 + $0x31c] sm:$0xf]
      %v541 = vld [vmem:[%s315 + $0x320] sm:$0xf]
      %v542 = vld [vmem:[%s315 + $0x324] sm:$0xf]
      %v543 = vld [vmem:[%s315 + $0x328] sm:$0xf]
      %v544 = vld [vmem:[%s315 + $0x32c] sm:$0xf]
      %v545 = vld [vmem:[%s315 + $0x330] sm:$0xf]
      %v546 = vld [vmem:[%s315 + $0x334] sm:$0xf]
      %v547 = vld [vmem:[%s315 + $0x338] sm:$0xf]
      %v548 = vld [vmem:[%s315 + $0x33c] sm:$0xf]
      %v549 = vld [vmem:[%s315 + $0x340] sm:$0xf]
      %v550 = vld [vmem:[%s315 + $0x344] sm:$0xf]
      %v551 = vld [vmem:[%s315 + $0x348] sm:$0xf]
      %v552 = vld [vmem:[%s315 + $0x34c] sm:$0xf]
      %v553 = vld [vmem:[%s315 + $0x350] sm:$0xf]
      %v554 = vld [vmem:[%s315 + $0x354] sm:$0xf]
      %v555 = vld [vmem:[%s315 + $0x358] sm:$0xf]
      %v556 = vld [vmem:[%s315 + $0x35c] sm:$0xf]
      %v557 = vld [vmem:[%s315 + $0x360] sm:$0xf]
      %v558 = vld [vmem:[%s315 + $0x364] sm:$0xf]
      %v559 = vld [vmem:[%s315 + $0x368] sm:$0xf]
      %v560 = vld [vmem:[%s315 + $0x36c] sm:$0xf]
      %v561 = vld [vmem:[%s315 + $0x370] sm:$0xf]
      %v562 = vld [vmem:[%s315 + $0x374] sm:$0xf]
      %v563 = vld [vmem:[%s315 + $0x378] sm:$0xf]
      %v564 = vld [vmem:[%s315 + $0x37c] sm:$0xf]
      %v565 = vld [vmem:[%s315 + $0x380] sm:$0xf]
      %v566 = vld [vmem:[%s315 + $0x384] sm:$0xf]
      %v567 = vld [vmem:[%s315 + $0x388] sm:$0xf]
      %v568 = vld [vmem:[%s315 + $0x38c] sm:$0xf]
      %v569 = vld [vmem:[%s315 + $0x390] sm:$0xf]
      %v570 = vld [vmem:[%s315 + $0x394] sm:$0xf]
      %v571 = vld [vmem:[%s315 + $0x398] sm:$0xf]
      %v572 = vld [vmem:[%s315 + $0x39c] sm:$0xf]
      %v573 = vld [vmem:[%s315 + $0x3a0] sm:$0xf]
      %v574 = vld [vmem:[%s315 + $0x3a4] sm:$0xf]
      %v575 = vld [vmem:[%s315 + $0x3a8] sm:$0xf]
      %v576 = vld [vmem:[%s315 + $0x3ac] sm:$0xf]
      %v577 = vld [vmem:[%s315 + $0x3b0] sm:$0xf]
      %v578 = vld [vmem:[%s315 + $0x3b4] sm:$0xf]
      %v579 = vld [vmem:[%s315 + $0x3b8] sm:$0xf]
      %v580 = vld [vmem:[%s315 + $0x3bc] sm:$0xf]
      %v581 = vld [vmem:[%s315 + $0x3c0] sm:$0xf]
      %v582 = vld [vmem:[%s315 + $0x3c4] sm:$0xf]
      %v583 = vld [vmem:[%s315 + $0x3c8] sm:$0xf]
      %v584 = vld [vmem:[%s315 + $0x3cc] sm:$0xf]
      %v585 = vld [vmem:[%s315 + $0x3d0] sm:$0xf]
      %v586 = vld [vmem:[%s315 + $0x3d4] sm:$0xf]
      %v587 = vld [vmem:[%s315 + $0x3d8] sm:$0xf]
      %v588 = vld [vmem:[%s315 + $0x3dc] sm:$0xf]
      %v589 = vld [vmem:[%s315 + $0x3e0] sm:$0xf]
      %v590 = vld [vmem:[%s315 + $0x3e4] sm:$0xf]
      %v591 = vld [vmem:[%s315 + $0x3e8] sm:$0xf]
      %v592 = vld [vmem:[%s315 + $0x3ec] sm:$0xf]
      %v593 = vld [vmem:[%s315 + $0x3f0] sm:$0xf]
      %v594 = vld [vmem:[%s315 + $0x3f4] sm:$0xf]
      %v595 = vld [vmem:[%s315 + $0x3f8] sm:$0xf]
      %v596 = vld [vmem:[%s315 + $0x3fc] sm:$0xf]
      %v599 = vcombine.high %v339, %v339
      %v601 = vunpack.c.l.s4 1966171168
      %v602 = vunpack.c.0.s8 %v601
      %v603 = vlaneseq
      %v604 = vshrl.u32 %v603, 7
      %v605 = vsub.s32 %v602, %v604
      %v606 = vrot.slane %v339, %v605
      %v608 = vunpack.c.l.s4 1966171168
      %v609 = vunpack.c.0.s8 %v608
      %v610 = vlaneseq
      %v611 = vshrl.u32 %v610, 7
      %v612 = vsub.s32 %v609, %v611
      %v613 = vrot.slane %v599, %v612
      %v614 = vcombine.high %v606, %v606
      %v615 = vcombine.high %v613, %v613
      %v617 = vunpack.c.l.s4 1966171168
      %v618 = vunpack.c.0.s8 %v617
      %v619 = vlaneseq
      %v620 = vshrl.u32 %v619, 7
      %v621 = vsub.s32 %v618, %v620
      %v622 = vrot.slane %v606, %v621
      %v624 = vunpack.c.l.s4 1966171168
      %v625 = vunpack.c.0.s8 %v624
      %v626 = vlaneseq
      %v627 = vshrl.u32 %v626, 7
      %v628 = vsub.s32 %v625, %v627
      %v629 = vrot.slane %v613, %v628
      %v631 = vunpack.c.l.s4 1966171168
      %v632 = vunpack.c.0.s8 %v631
      %v633 = vlaneseq
      %v634 = vshrl.u32 %v633, 7
      %v635 = vsub.s32 %v632, %v634
      %v636 = vrot.slane %v614, %v635
      %v638 = vunpack.c.l.s4 1966171168
      %v639 = vunpack.c.0.s8 %v638
      %v640 = vlaneseq
      %v641 = vshrl.u32 %v640, 7
      %v642 = vsub.s32 %v639, %v641
      %v643 = vrot.slane %v615, %v642
      %v644 = vcombine.high %v622, %v622
      %v645 = vcombine.high %v629, %v629
      %v646 = vcombine.high %v636, %v636
      %v647 = vcombine.high %v643, %v643
      %v648 = vcombine.high %v340, %v340
      %v650 = vunpack.c.l.s4 1966171168
      %v651 = vunpack.c.0.s8 %v650
      %v652 = vlaneseq
      %v653 = vshrl.u32 %v652, 7
      %v654 = vsub.s32 %v651, %v653
      %v655 = vrot.slane %v340, %v654
      %v657 = vunpack.c.l.s4 1966171168
      %v658 = vunpack.c.0.s8 %v657
      %v659 = vlaneseq
      %v660 = vshrl.u32 %v659, 7
      %v661 = vsub.s32 %v658, %v660
      %v662 = vrot.slane %v648, %v661
      %v663 = vcombine.high %v655, %v655
      %v664 = vcombine.high %v662, %v662
      %v666 = vunpack.c.l.s4 1966171168
      %v667 = vunpack.c.0.s8 %v666
      %v668 = vlaneseq
      %v669 = vshrl.u32 %v668, 7
      %v670 = vsub.s32 %v667, %v669
      %v671 = vrot.slane %v655, %v670
      %v673 = vunpack.c.l.s4 1966171168
      %v674 = vunpack.c.0.s8 %v673
      %v675 = vlaneseq
      %v676 = vshrl.u32 %v675, 7
      %v677 = vsub.s32 %v674, %v676
      %v678 = vrot.slane %v662, %v677
      %v680 = vunpack.c.l.s4 1966171168
      %v681 = vunpack.c.0.s8 %v680
      %v682 = vlaneseq
      %v683 = vshrl.u32 %v682, 7
      %v684 = vsub.s32 %v681, %v683
      %v685 = vrot.slane %v663, %v684
      %v687 = vunpack.c.l.s4 1966171168
      %v688 = vunpack.c.0.s8 %v687
      %v689 = vlaneseq
      %v690 = vshrl.u32 %v689, 7
      %v691 = vsub.s32 %v688, %v690
      %v692 = vrot.slane %v664, %v691
      %v693 = vcombine.high %v671, %v671
      %v694 = vcombine.high %v678, %v678
      %v695 = vcombine.high %v685, %v685
      %v696 = vcombine.high %v692, %v692
      %v969 = vunpack.c.l.b16 %v341
      %v970 = vunpack.c.l.b16 %v342
      %v971 = vunpack.c.l.b16 %v343
      %v972 = vunpack.c.l.b16 %v344
      %v973 = vunpack.c.l.b16 %v345
      %v974 = vunpack.c.l.b16 %v346
      %v975 = vunpack.c.l.b16 %v347
      %v976 = vunpack.c.l.b16 %v348
      %v977 = vunpack.c.l.b16 %v349
      %v978 = vunpack.c.l.b16 %v350
      %v979 = vunpack.c.l.b16 %v351
      %v980 = vunpack.c.l.b16 %v352
      %v981 = vunpack.c.l.b16 %v353
      %v982 = vunpack.c.l.b16 %v354
      %v983 = vunpack.c.l.b16 %v355
      %v984 = vunpack.c.l.b16 %v356
      %v985 = vunpack.c.l.b16 %v357
      %v986 = vunpack.c.l.b16 %v358
      %v987 = vunpack.c.l.b16 %v359
      %v988 = vunpack.c.l.b16 %v360
      %v989 = vunpack.c.l.b16 %v361
      %v990 = vunpack.c.l.b16 %v362
      %v991 = vunpack.c.l.b16 %v363
      %v992 = vunpack.c.l.b16 %v364
      %v993 = vunpack.c.l.b16 %v365
      %v994 = vunpack.c.l.b16 %v366
      %v995 = vunpack.c.l.b16 %v367
      %v996 = vunpack.c.l.b16 %v368
      %v997 = vunpack.c.l.b16 %v369
      %v998 = vunpack.c.l.b16 %v370
      %v999 = vunpack.c.l.b16 %v371
      %v1000 = vunpack.c.l.b16 %v372
      %v1001 = vunpack.c.l.b16 %v373
      %v1002 = vunpack.c.l.b16 %v374
      %v1003 = vunpack.c.l.b16 %v375
      %v1004 = vunpack.c.l.b16 %v376
      %v1005 = vunpack.c.l.b16 %v377
      %v1006 = vunpack.c.l.b16 %v378
      %v1007 = vunpack.c.l.b16 %v379
      %v1008 = vunpack.c.l.b16 %v380
      %v1009 = vunpack.c.l.b16 %v381
      %v1010 = vunpack.c.l.b16 %v382
      %v1011 = vunpack.c.l.b16 %v383
      %v1012 = vunpack.c.l.b16 %v384
      %v1013 = vunpack.c.l.b16 %v385
      %v1014 = vunpack.c.l.b16 %v386
      %v1015 = vunpack.c.l.b16 %v387
      %v1016 = vunpack.c.l.b16 %v388
      %v1017 = vunpack.c.l.b16 %v389
      %v1018 = vunpack.c.l.b16 %v390
      %v1019 = vunpack.c.l.b16 %v391
      %v1020 = vunpack.c.l.b16 %v392
      %v1021 = vunpack.c.l.b16 %v393
      %v1022 = vunpack.c.l.b16 %v394
      %v1023 = vunpack.c.l.b16 %v395
      %v1024 = vunpack.c.l.b16 %v396
      %v1025 = vunpack.c.l.b16 %v397
      %v1026 = vunpack.c.l.b16 %v398
      %v1027 = vunpack.c.l.b16 %v399
      %v1028 = vunpack.c.l.b16 %v400
      %v1029 = vunpack.c.l.b16 %v401
      %v1030 = vunpack.c.l.b16 %v402
      %v1031 = vunpack.c.l.b16 %v403
      %v1032 = vunpack.c.l.b16 %v404
      %v1033 = vunpack.c.l.b16 %v405
      %v1034 = vunpack.c.l.b16 %v406
      %v1035 = vunpack.c.l.b16 %v407
      %v1036 = vunpack.c.l.b16 %v408
      %v1037 = vunpack.c.l.b16 %v409
      %v1038 = vunpack.c.l.b16 %v410
      %v1039 = vunpack.c.l.b16 %v411
      %v1040 = vunpack.c.l.b16 %v412
      %v1041 = vunpack.c.l.b16 %v413
      %v1042 = vunpack.c.l.b16 %v414
      %v1043 = vunpack.c.l.b16 %v415
      %v1044 = vunpack.c.l.b16 %v416
      %v1045 = vunpack.c.l.b16 %v417
      %v1046 = vunpack.c.l.b16 %v418
      %v1047 = vunpack.c.l.b16 %v419
      %v1048 = vunpack.c.l.b16 %v420
      %v1049 = vunpack.c.l.b16 %v421
      %v1050 = vunpack.c.l.b16 %v422
      %v1051 = vunpack.c.l.b16 %v423
      %v1052 = vunpack.c.l.b16 %v424
      %v1053 = vunpack.c.l.b16 %v425
      %v1054 = vunpack.c.l.b16 %v426
      %v1055 = vunpack.c.l.b16 %v427
      %v1056 = vunpack.c.l.b16 %v428
      %v1057 = vunpack.c.l.b16 %v429
      %v1058 = vunpack.c.l.b16 %v430
      %v1059 = vunpack.c.l.b16 %v431
      %v1060 = vunpack.c.l.b16 %v432
      %v1061 = vunpack.c.l.b16 %v433
      %v1062 = vunpack.c.l.b16 %v434
      %v1063 = vunpack.c.l.b16 %v435
      %v1064 = vunpack.c.l.b16 %v436
      %v1065 = vunpack.c.l.b16 %v437
      %v1066 = vunpack.c.l.b16 %v438
      %v1067 = vunpack.c.l.b16 %v439
      %v1068 = vunpack.c.l.b16 %v440
      %v1069 = vunpack.c.l.b16 %v441
      %v1070 = vunpack.c.l.b16 %v442
      %v1071 = vunpack.c.l.b16 %v443
      %v1072 = vunpack.c.l.b16 %v444
      %v1073 = vunpack.c.l.b16 %v445
      %v1074 = vunpack.c.l.b16 %v446
      %v1075 = vunpack.c.l.b16 %v447
      %v1076 = vunpack.c.l.b16 %v448
      %v1077 = vunpack.c.l.b16 %v449
      %v1078 = vunpack.c.l.b16 %v450
      %v1079 = vunpack.c.l.b16 %v451
      %v1080 = vunpack.c.l.b16 %v452
      %v1081 = vunpack.c.l.b16 %v453
      %v1082 = vunpack.c.l.b16 %v454
      %v1083 = vunpack.c.l.b16 %v455
      %v1084 = vunpack.c.l.b16 %v456
      %v1085 = vunpack.c.l.b16 %v457
      %v1086 = vunpack.c.l.b16 %v458
      %v1087 = vunpack.c.l.b16 %v459
      %v1088 = vunpack.c.l.b16 %v460
      %v1089 = vunpack.c.l.b16 %v461
      %v1090 = vunpack.c.l.b16 %v462
      %v1091 = vunpack.c.l.b16 %v463
      %v1092 = vunpack.c.l.b16 %v464
      %v1093 = vunpack.c.l.b16 %v465
      %v1094 = vunpack.c.l.b16 %v466
      %v1095 = vunpack.c.l.b16 %v467
      %v1096 = vunpack.c.l.b16 %v468
      %v1097 = vunpack.c.l.b16 %v469
      %v1098 = vunpack.c.l.b16 %v470
      %v1099 = vunpack.c.l.b16 %v471
      %v1100 = vunpack.c.l.b16 %v472
      %v1101 = vunpack.c.l.b16 %v473
      %v1102 = vunpack.c.l.b16 %v474
      %v1103 = vunpack.c.l.b16 %v475
      %v1104 = vunpack.c.l.b16 %v476
      %v1105 = vunpack.c.l.b16 %v477
      %v1106 = vunpack.c.l.b16 %v478
      %v1107 = vunpack.c.l.b16 %v479
      %v1108 = vunpack.c.l.b16 %v480
      %v1109 = vunpack.c.l.b16 %v481
      %v1110 = vunpack.c.l.b16 %v482
      %v1111 = vunpack.c.l.b16 %v483
      %v1112 = vunpack.c.l.b16 %v484
      %v1113 = vunpack.c.l.b16 %v485
      %v1114 = vunpack.c.l.b16 %v486
      %v1115 = vunpack.c.l.b16 %v487
      %v1116 = vunpack.c.l.b16 %v488
      %v1117 = vunpack.c.l.b16 %v489
      %v1118 = vunpack.c.l.b16 %v490
      %v1119 = vunpack.c.l.b16 %v491
      %v1120 = vunpack.c.l.b16 %v492
      %v1121 = vunpack.c.l.b16 %v493
      %v1122 = vunpack.c.l.b16 %v494
      %v1123 = vunpack.c.l.b16 %v495
      %v1124 = vunpack.c.l.b16 %v496
      %v1125 = vunpack.c.l.b16 %v497
      %v1126 = vunpack.c.l.b16 %v498
      %v1127 = vunpack.c.l.b16 %v499
      %v1128 = vunpack.c.l.b16 %v500
      %v1129 = vunpack.c.l.b16 %v501
      %v1130 = vunpack.c.l.b16 %v502
      %v1131 = vunpack.c.l.b16 %v503
      %v1132 = vunpack.c.l.b16 %v504
      %v1133 = vunpack.c.l.b16 %v505
      %v1134 = vunpack.c.l.b16 %v506
      %v1135 = vunpack.c.l.b16 %v507
      %v1136 = vunpack.c.l.b16 %v508
      %v1137 = vunpack.c.l.b16 %v509
      %v1138 = vunpack.c.l.b16 %v510
      %v1139 = vunpack.c.l.b16 %v511
      %v1140 = vunpack.c.l.b16 %v512
      %v1141 = vunpack.c.l.b16 %v513
      %v1142 = vunpack.c.l.b16 %v514
      %v1143 = vunpack.c.l.b16 %v515
      %v1144 = vunpack.c.l.b16 %v516
      %v1145 = vunpack.c.l.b16 %v517
      %v1146 = vunpack.c.l.b16 %v518
      %v1147 = vunpack.c.l.b16 %v519
      %v1148 = vunpack.c.l.b16 %v520
      %v1149 = vunpack.c.l.b16 %v521
      %v1150 = vunpack.c.l.b16 %v522
      %v1151 = vunpack.c.l.b16 %v523
      %v1152 = vunpack.c.l.b16 %v524
      %v1153 = vunpack.c.l.b16 %v525
      %v1154 = vunpack.c.l.b16 %v526
      %v1155 = vunpack.c.l.b16 %v527
      %v1156 = vunpack.c.l.b16 %v528
      %v1157 = vunpack.c.l.b16 %v529
      %v1158 = vunpack.c.l.b16 %v530
      %v1159 = vunpack.c.l.b16 %v531
      %v1160 = vunpack.c.l.b16 %v532
      %v1161 = vunpack.c.l.b16 %v533
      %v1162 = vunpack.c.l.b16 %v534
      %v1163 = vunpack.c.l.b16 %v535
      %v1164 = vunpack.c.l.b16 %v536
      %v1165 = vunpack.c.l.b16 %v537
      %v1166 = vunpack.c.l.b16 %v538
      %v1167 = vunpack.c.l.b16 %v539
      %v1168 = vunpack.c.l.b16 %v540
      %v1169 = vunpack.c.l.b16 %v541
      %v1170 = vunpack.c.l.b16 %v542
      %v1171 = vunpack.c.l.b16 %v543
      %v1172 = vunpack.c.l.b16 %v544
      %v1173 = vunpack.c.l.b16 %v545
      %v1174 = vunpack.c.l.b16 %v546
      %v1175 = vunpack.c.l.b16 %v547
      %v1176 = vunpack.c.l.b16 %v548
      %v1177 = vunpack.c.l.b16 %v549
      %v1178 = vunpack.c.l.b16 %v550
      %v1179 = vunpack.c.l.b16 %v551
      %v1180 = vunpack.c.l.b16 %v552
      %v1181 = vunpack.c.l.b16 %v553
      %v1182 = vunpack.c.l.b16 %v554
      %v1183 = vunpack.c.l.b16 %v555
      %v1184 = vunpack.c.l.b16 %v556
      %v1185 = vunpack.c.l.b16 %v557
      %v1186 = vunpack.c.l.b16 %v558
      %v1187 = vunpack.c.l.b16 %v559
      %v1188 = vunpack.c.l.b16 %v560
      %v1189 = vunpack.c.l.b16 %v561
      %v1190 = vunpack.c.l.b16 %v562
      %v1191 = vunpack.c.l.b16 %v563
      %v1192 = vunpack.c.l.b16 %v564
      %v1193 = vunpack.c.l.b16 %v565
      %v1194 = vunpack.c.l.b16 %v566
      %v1195 = vunpack.c.l.b16 %v567
      %v1196 = vunpack.c.l.b16 %v568
      %v1197 = vunpack.c.l.b16 %v569
      %v1198 = vunpack.c.l.b16 %v570
      %v1199 = vunpack.c.l.b16 %v571
      %v1200 = vunpack.c.l.b16 %v572
      %v1201 = vunpack.c.l.b16 %v573
      %v1202 = vunpack.c.l.b16 %v574
      %v1203 = vunpack.c.l.b16 %v575
      %v1204 = vunpack.c.l.b16 %v576
      %v1205 = vunpack.c.l.b16 %v577
      %v1206 = vunpack.c.l.b16 %v578
      %v1207 = vunpack.c.l.b16 %v579
      %v1208 = vunpack.c.l.b16 %v580
      %v1209 = vunpack.c.l.b16 %v581
      %v1210 = vunpack.c.l.b16 %v582
      %v1211 = vunpack.c.l.b16 %v583
      %v1212 = vunpack.c.l.b16 %v584
      %v1213 = vunpack.c.l.b16 %v585
      %v1214 = vunpack.c.l.b16 %v586
      %v1215 = vunpack.c.l.b16 %v587
      %v1216 = vunpack.c.l.b16 %v588
      %v1217 = vunpack.c.l.b16 %v589
      %v1218 = vunpack.c.l.b16 %v590
      %v1219 = vunpack.c.l.b16 %v591
      %v1220 = vunpack.c.l.b16 %v592
      %v1221 = vunpack.c.l.b16 %v593
      %v1222 = vunpack.c.l.b16 %v594
      %v1223 = vunpack.c.l.b16 %v595
      %v1224 = vunpack.c.l.b16 %v596
      %v1225 = vpack.c.b16 %v970, %v969
      %v1226 = vpack.c.b16 %v972, %v971
      %v1227 = vpack.c.b16 %v974, %v973
      %v1228 = vpack.c.b16 %v976, %v975
      %v1229 = vpack.c.b16 %v978, %v977
      %v1230 = vpack.c.b16 %v980, %v979
      %v1231 = vpack.c.b16 %v982, %v981
      %v1232 = vpack.c.b16 %v984, %v983
      %v1233 = vpack.c.b16 %v986, %v985
      %v1234 = vpack.c.b16 %v988, %v987
      %v1235 = vpack.c.b16 %v990, %v989
      %v1236 = vpack.c.b16 %v992, %v991
      %v1237 = vpack.c.b16 %v994, %v993
      %v1238 = vpack.c.b16 %v996, %v995
      %v1239 = vpack.c.b16 %v998, %v997
      %v1240 = vpack.c.b16 %v1000, %v999
      %v1241 = vpack.c.b16 %v1002, %v1001
      %v1242 = vpack.c.b16 %v1004, %v1003
      %v1243 = vpack.c.b16 %v1006, %v1005
      %v1244 = vpack.c.b16 %v1008, %v1007
      %v1245 = vpack.c.b16 %v1010, %v1009
      %v1246 = vpack.c.b16 %v1012, %v1011
      %v1247 = vpack.c.b16 %v1014, %v1013
      %v1248 = vpack.c.b16 %v1016, %v1015
      %v1249 = vpack.c.b16 %v1018, %v1017
      %v1250 = vpack.c.b16 %v1020, %v1019
      %v1251 = vpack.c.b16 %v1022, %v1021
      %v1252 = vpack.c.b16 %v1024, %v1023
      %v1253 = vpack.c.b16 %v1026, %v1025
      %v1254 = vpack.c.b16 %v1028, %v1027
      %v1255 = vpack.c.b16 %v1030, %v1029
      %v1256 = vpack.c.b16 %v1032, %v1031
      %v1257 = vpack.c.b16 %v1034, %v1033
      %v1258 = vpack.c.b16 %v1036, %v1035
      %v1259 = vpack.c.b16 %v1038, %v1037
      %v1260 = vpack.c.b16 %v1040, %v1039
      %v1261 = vpack.c.b16 %v1042, %v1041
      %v1262 = vpack.c.b16 %v1044, %v1043
      %v1263 = vpack.c.b16 %v1046, %v1045
      %v1264 = vpack.c.b16 %v1048, %v1047
      %v1265 = vpack.c.b16 %v1050, %v1049
      %v1266 = vpack.c.b16 %v1052, %v1051
      %v1267 = vpack.c.b16 %v1054, %v1053
      %v1268 = vpack.c.b16 %v1056, %v1055
      %v1269 = vpack.c.b16 %v1058, %v1057
      %v1270 = vpack.c.b16 %v1060, %v1059
      %v1271 = vpack.c.b16 %v1062, %v1061
      %v1272 = vpack.c.b16 %v1064, %v1063
      %v1273 = vpack.c.b16 %v1066, %v1065
      %v1274 = vpack.c.b16 %v1068, %v1067
      %v1275 = vpack.c.b16 %v1070, %v1069
      %v1276 = vpack.c.b16 %v1072, %v1071
      %v1277 = vpack.c.b16 %v1074, %v1073
      %v1278 = vpack.c.b16 %v1076, %v1075
      %v1279 = vpack.c.b16 %v1078, %v1077
      %v1280 = vpack.c.b16 %v1080, %v1079
      %v1281 = vpack.c.b16 %v1082, %v1081
      %v1282 = vpack.c.b16 %v1084, %v1083
      %v1283 = vpack.c.b16 %v1086, %v1085
      %v1284 = vpack.c.b16 %v1088, %v1087
      %v1285 = vpack.c.b16 %v1090, %v1089
      %v1286 = vpack.c.b16 %v1092, %v1091
      %v1287 = vpack.c.b16 %v1094, %v1093
      %v1288 = vpack.c.b16 %v1096, %v1095
      %v1289 = vpack.c.b16 %v1098, %v1097
      %v1290 = vpack.c.b16 %v1100, %v1099
      %v1291 = vpack.c.b16 %v1102, %v1101
      %v1292 = vpack.c.b16 %v1104, %v1103
      %v1293 = vpack.c.b16 %v1106, %v1105
      %v1294 = vpack.c.b16 %v1108, %v1107
      %v1295 = vpack.c.b16 %v1110, %v1109
      %v1296 = vpack.c.b16 %v1112, %v1111
      %v1297 = vpack.c.b16 %v1114, %v1113
      %v1298 = vpack.c.b16 %v1116, %v1115
      %v1299 = vpack.c.b16 %v1118, %v1117
      %v1300 = vpack.c.b16 %v1120, %v1119
      %v1301 = vpack.c.b16 %v1122, %v1121
      %v1302 = vpack.c.b16 %v1124, %v1123
      %v1303 = vpack.c.b16 %v1126, %v1125
      %v1304 = vpack.c.b16 %v1128, %v1127
      %v1305 = vpack.c.b16 %v1130, %v1129
      %v1306 = vpack.c.b16 %v1132, %v1131
      %v1307 = vpack.c.b16 %v1134, %v1133
      %v1308 = vpack.c.b16 %v1136, %v1135
      %v1309 = vpack.c.b16 %v1138, %v1137
      %v1310 = vpack.c.b16 %v1140, %v1139
      %v1311 = vpack.c.b16 %v1142, %v1141
      %v1312 = vpack.c.b16 %v1144, %v1143
      %v1313 = vpack.c.b16 %v1146, %v1145
      %v1314 = vpack.c.b16 %v1148, %v1147
      %v1315 = vpack.c.b16 %v1150, %v1149
      %v1316 = vpack.c.b16 %v1152, %v1151
      %v1317 = vpack.c.b16 %v1154, %v1153
      %v1318 = vpack.c.b16 %v1156, %v1155
      %v1319 = vpack.c.b16 %v1158, %v1157
      %v1320 = vpack.c.b16 %v1160, %v1159
      %v1321 = vpack.c.b16 %v1162, %v1161
      %v1322 = vpack.c.b16 %v1164, %v1163
      %v1323 = vpack.c.b16 %v1166, %v1165
      %v1324 = vpack.c.b16 %v1168, %v1167
      %v1325 = vpack.c.b16 %v1170, %v1169
      %v1326 = vpack.c.b16 %v1172, %v1171
      %v1327 = vpack.c.b16 %v1174, %v1173
      %v1328 = vpack.c.b16 %v1176, %v1175
      %v1329 = vpack.c.b16 %v1178, %v1177
      %v1330 = vpack.c.b16 %v1180, %v1179
      %v1331 = vpack.c.b16 %v1182, %v1181
      %v1332 = vpack.c.b16 %v1184, %v1183
      %v1333 = vpack.c.b16 %v1186, %v1185
      %v1334 = vpack.c.b16 %v1188, %v1187
      %v1335 = vpack.c.b16 %v1190, %v1189
      %v1336 = vpack.c.b16 %v1192, %v1191
      %v1337 = vpack.c.b16 %v1194, %v1193
      %v1338 = vpack.c.b16 %v1196, %v1195
      %v1339 = vpack.c.b16 %v1198, %v1197
      %v1340 = vpack.c.b16 %v1200, %v1199
      %v1341 = vpack.c.b16 %v1202, %v1201
      %v1342 = vpack.c.b16 %v1204, %v1203
      %v1343 = vpack.c.b16 %v1206, %v1205
      %v1344 = vpack.c.b16 %v1208, %v1207
      %v1345 = vpack.c.b16 %v1210, %v1209
      %v1346 = vpack.c.b16 %v1212, %v1211
      %v1347 = vpack.c.b16 %v1214, %v1213
      %v1348 = vpack.c.b16 %v1216, %v1215
      %v1349 = vpack.c.b16 %v1218, %v1217
      %v1350 = vpack.c.b16 %v1220, %v1219
      %v1351 = vpack.c.b16 %v1222, %v1221
      %v1352 = vpack.c.b16 %v1224, %v1223
      %1481 = vmatprep.subr.bf16.mxu0 0
      %1482 = vmatpush1.bf16.msra.mxu0 %v1232
      %1483 = vmatprep.subr.bf16.mxu0 0
      %1484 = vmatpush1.bf16.msra.mxu0 %v1231
      %1485 = vmatprep.subr.bf16.mxu0 0
      %1486 = vmatpush1.bf16.msra.mxu0 %v1230
      %1487 = vmatprep.subr.bf16.mxu0 0
      %1488 = vmatpush1.bf16.msra.mxu0 %v1229
      %1489 = vmatprep.subr.bf16.mxu0 0
      %1490 = vmatpush1.bf16.msra.mxu0 %v1228
      %1491 = vmatprep.subr.bf16.mxu0 0
      %1492 = vmatpush1.bf16.msra.mxu0 %v1227
      %1493 = vmatprep.subr.bf16.mxu0 0
      %1494 = vmatpush1.bf16.msra.mxu0 %v1226
      %1495 = vmatprep.subr.bf16.mxu0 0
      %1496 = vmatpush1.bf16.msra.mxu0 %v1225
      %1497 = vmatprep.subr.bf16.mxu0 0
      %1498 = vmatpush2.bf16.msra.mxu0 %v1240
      %1499 = vmatprep.subr.bf16.mxu0 0
      %1500 = vmatpush2.bf16.msra.mxu0 %v1239
      %1501 = vmatprep.subr.bf16.mxu0 0
      %1502 = vmatpush2.bf16.msra.mxu0 %v1238
      %1503 = vmatprep.subr.bf16.mxu0 0
      %1504 = vmatpush2.bf16.msra.mxu0 %v1237
      %1505 = vmatprep.subr.bf16.mxu0 0
      %1506 = vmatpush2.bf16.msra.mxu0 %v1236
      %1507 = vmatprep.subr.bf16.mxu0 0
      %1508 = vmatpush2.bf16.msra.mxu0 %v1235
      %1509 = vmatprep.subr.bf16.mxu0 0
      %1510 = vmatpush2.bf16.msra.mxu0 %v1234
      %1511 = vmatprep.subr.bf16.mxu0 0
      %1512 = vmatpush2.bf16.msra.mxu0 %v1233
      %1513 = vmatprep.mubr.bf16.mxu0 %v636
      %1514 = vmatmul.mubr.bf16.gmra.mxu0 %v622
      %v1515 = vpop.f32.mrf.mxu0
      %v1516 = vadd.f32 0.0, %v1515
      %v1517 = vpop.f32.mrf.mxu0
      %v1518 = vpop.f32.mrf.mxu0
      %v1519 = vpop.f32.mrf.mxu0
      %1520 = vdwg.mxu0
      %1521 = vmatprep.subr.bf16.mxu0 0
      %1522 = vmatpush1.bf16.msra.mxu0 %v1248
      %1523 = vmatprep.subr.bf16.mxu0 0
      %1524 = vmatpush1.bf16.msra.mxu0 %v1247
      %1525 = vmatprep.subr.bf16.mxu0 0
      %1526 = vmatpush1.bf16.msra.mxu0 %v1246
      %1527 = vmatprep.subr.bf16.mxu0 0
      %1528 = vmatpush1.bf16.msra.mxu0 %v1245
      %1529 = vmatprep.subr.bf16.mxu0 0
      %1530 = vmatpush1.bf16.msra.mxu0 %v1244
      %1531 = vmatprep.subr.bf16.mxu0 0
      %1532 = vmatpush1.bf16.msra.mxu0 %v1243
      %1533 = vmatprep.subr.bf16.mxu0 0
      %1534 = vmatpush1.bf16.msra.mxu0 %v1242
      %1535 = vmatprep.subr.bf16.mxu0 0
      %1536 = vmatpush1.bf16.msra.mxu0 %v1241
      %1537 = vmatprep.subr.bf16.mxu0 0
      %1538 = vmatpush2.bf16.msra.mxu0 %v1256
      %1539 = vmatprep.subr.bf16.mxu0 0
      %1540 = vmatpush2.bf16.msra.mxu0 %v1255
      %1541 = vmatprep.subr.bf16.mxu0 0
      %1542 = vmatpush2.bf16.msra.mxu0 %v1254
      %1543 = vmatprep.subr.bf16.mxu0 0
      %1544 = vmatpush2.bf16.msra.mxu0 %v1253
      %1545 = vmatprep.subr.bf16.mxu0 0
      %1546 = vmatpush2.bf16.msra.mxu0 %v1252
      %1547 = vmatprep.subr.bf16.mxu0 0
      %1548 = vmatpush2.bf16.msra.mxu0 %v1251
      %1549 = vmatprep.subr.bf16.mxu0 0
      %1550 = vmatpush2.bf16.msra.mxu0 %v1250
      %1551 = vmatprep.subr.bf16.mxu0 0
      %1552 = vmatpush2.bf16.msra.mxu0 %v1249
      %1553 = vmatprep.mubr.bf16.mxu0 %v646
      %1554 = vmatmul.mubr.bf16.gmra.mxu0 %v644
      %v1555 = vpop.f32.mrf.mxu0
      %v1556 = vadd.f32 %v1516, %v1555
      %v1557 = vpop.f32.mrf.mxu0
      %v1558 = vpop.f32.mrf.mxu0
      %v1559 = vpop.f32.mrf.mxu0
      %1560 = vdwg.mxu0
      %1561 = vmatprep.subr.bf16.mxu0 0
      %1562 = vmatpush1.bf16.msra.mxu0 %v1264
      %1563 = vmatprep.subr.bf16.mxu0 0
      %1564 = vmatpush1.bf16.msra.mxu0 %v1263
      %1565 = vmatprep.subr.bf16.mxu0 0
      %1566 = vmatpush1.bf16.msra.mxu0 %v1262
      %1567 = vmatprep.subr.bf16.mxu0 0
      %1568 = vmatpush1.bf16.msra.mxu0 %v1261
      %1569 = vmatprep.subr.bf16.mxu0 0
      %1570 = vmatpush1.bf16.msra.mxu0 %v1260
      %1571 = vmatprep.subr.bf16.mxu0 0
      %1572 = vmatpush1.bf16.msra.mxu0 %v1259
      %1573 = vmatprep.subr.bf16.mxu0 0
      %1574 = vmatpush1.bf16.msra.mxu0 %v1258
      %1575 = vmatprep.subr.bf16.mxu0 0
      %1576 = vmatpush1.bf16.msra.mxu0 %v1257
      %1577 = vmatprep.subr.bf16.mxu0 0
      %1578 = vmatpush2.bf16.msra.mxu0 %v1272
      %1579 = vmatprep.subr.bf16.mxu0 0
      %1580 = vmatpush2.bf16.msra.mxu0 %v1271
      %1581 = vmatprep.subr.bf16.mxu0 0
      %1582 = vmatpush2.bf16.msra.mxu0 %v1270
      %1583 = vmatprep.subr.bf16.mxu0 0
      %1584 = vmatpush2.bf16.msra.mxu0 %v1269
      %1585 = vmatprep.subr.bf16.mxu0 0
      %1586 = vmatpush2.bf16.msra.mxu0 %v1268
      %1587 = vmatprep.subr.bf16.mxu0 0
      %1588 = vmatpush2.bf16.msra.mxu0 %v1267
      %1589 = vmatprep.subr.bf16.mxu0 0
      %1590 = vmatpush2.bf16.msra.mxu0 %v1266
      %1591 = vmatprep.subr.bf16.mxu0 0
      %1592 = vmatpush2.bf16.msra.mxu0 %v1265
      %1593 = vmatprep.mubr.bf16.mxu0 %v643
      %1594 = vmatmul.mubr.bf16.gmra.mxu0 %v629
      %v1595 = vpop.f32.mrf.mxu0
      %v1596 = vadd.f32 %v1556, %v1595
      %v1597 = vpop.f32.mrf.mxu0
      %v1598 = vpop.f32.mrf.mxu0
      %v1599 = vpop.f32.mrf.mxu0
      %1600 = vdwg.mxu0
      %1601 = vmatprep.subr.bf16.mxu0 0
      %1602 = vmatpush1.bf16.msra.mxu0 %v1280
      %1603 = vmatprep.subr.bf16.mxu0 0
      %1604 = vmatpush1.bf16.msra.mxu0 %v1279
      %1605 = vmatprep.subr.bf16.mxu0 0
      %1606 = vmatpush1.bf16.msra.mxu0 %v1278
      %1607 = vmatprep.subr.bf16.mxu0 0
      %1608 = vmatpush1.bf16.msra.mxu0 %v1277
      %1609 = vmatprep.subr.bf16.mxu0 0
      %1610 = vmatpush1.bf16.msra.mxu0 %v1276
      %1611 = vmatprep.subr.bf16.mxu0 0
      %1612 = vmatpush1.bf16.msra.mxu0 %v1275
      %1613 = vmatprep.subr.bf16.mxu0 0
      %1614 = vmatpush1.bf16.msra.mxu0 %v1274
      %1615 = vmatprep.subr.bf16.mxu0 0
      %1616 = vmatpush1.bf16.msra.mxu0 %v1273
      %1617 = vmatprep.subr.bf16.mxu0 0
      %1618 = vmatpush2.bf16.msra.mxu0 %v1288
      %1619 = vmatprep.subr.bf16.mxu0 0
      %1620 = vmatpush2.bf16.msra.mxu0 %v1287
      %1621 = vmatprep.subr.bf16.mxu0 0
      %1622 = vmatpush2.bf16.msra.mxu0 %v1286
      %1623 = vmatprep.subr.bf16.mxu0 0
      %1624 = vmatpush2.bf16.msra.mxu0 %v1285
      %1625 = vmatprep.subr.bf16.mxu0 0
      %1626 = vmatpush2.bf16.msra.mxu0 %v1284
      %1627 = vmatprep.subr.bf16.mxu0 0
      %1628 = vmatpush2.bf16.msra.mxu0 %v1283
      %1629 = vmatprep.subr.bf16.mxu0 0
      %1630 = vmatpush2.bf16.msra.mxu0 %v1282
      %1631 = vmatprep.subr.bf16.mxu0 0
      %1632 = vmatpush2.bf16.msra.mxu0 %v1281
      %1633 = vmatprep.mubr.bf16.mxu0 %v647
      %1634 = vmatmul.mubr.bf16.gmra.mxu0 %v645
      %v1635 = vpop.f32.mrf.mxu0
      %v1636 = vadd.f32 %v1596, %v1635
      %v1637 = vpop.f32.mrf.mxu0
      %v1638 = vpop.f32.mrf.mxu0
      %v1639 = vpop.f32.mrf.mxu0
      %1640 = vdwg.mxu0
      %1641 = vmatprep.subr.bf16.mxu0 0
      %1642 = vmatpush1.bf16.msra.mxu0 %v1296
      %1643 = vmatprep.subr.bf16.mxu0 0
      %1644 = vmatpush1.bf16.msra.mxu0 %v1295
      %1645 = vmatprep.subr.bf16.mxu0 0
      %1646 = vmatpush1.bf16.msra.mxu0 %v1294
      %1647 = vmatprep.subr.bf16.mxu0 0
      %1648 = vmatpush1.bf16.msra.mxu0 %v1293
      %1649 = vmatprep.subr.bf16.mxu0 0
      %1650 = vmatpush1.bf16.msra.mxu0 %v1292
      %1651 = vmatprep.subr.bf16.mxu0 0
      %1652 = vmatpush1.bf16.msra.mxu0 %v1291
      %1653 = vmatprep.subr.bf16.mxu0 0
      %1654 = vmatpush1.bf16.msra.mxu0 %v1290
      %1655 = vmatprep.subr.bf16.mxu0 0
      %1656 = vmatpush1.bf16.msra.mxu0 %v1289
      %1657 = vmatprep.subr.bf16.mxu0 0
      %1658 = vmatpush2.bf16.msra.mxu0 %v1304
      %1659 = vmatprep.subr.bf16.mxu0 0
      %1660 = vmatpush2.bf16.msra.mxu0 %v1303
      %1661 = vmatprep.subr.bf16.mxu0 0
      %1662 = vmatpush2.bf16.msra.mxu0 %v1302
      %1663 = vmatprep.subr.bf16.mxu0 0
      %1664 = vmatpush2.bf16.msra.mxu0 %v1301
      %1665 = vmatprep.subr.bf16.mxu0 0
      %1666 = vmatpush2.bf16.msra.mxu0 %v1300
      %1667 = vmatprep.subr.bf16.mxu0 0
      %1668 = vmatpush2.bf16.msra.mxu0 %v1299
      %1669 = vmatprep.subr.bf16.mxu0 0
      %1670 = vmatpush2.bf16.msra.mxu0 %v1298
      %1671 = vmatprep.subr.bf16.mxu0 0
      %1672 = vmatpush2.bf16.msra.mxu0 %v1297
      %1673 = vmatprep.mubr.bf16.mxu0 %v685
      %1674 = vmatmul.mubr.bf16.gmra.mxu0 %v671
      %v1675 = vpop.f32.mrf.mxu0
      %v1676 = vadd.f32 %v1636, %v1675
      %v1677 = vpop.f32.mrf.mxu0
      %v1678 = vpop.f32.mrf.mxu0
      %v1679 = vpop.f32.mrf.mxu0
      %1680 = vdwg.mxu0
      %1681 = vmatprep.subr.bf16.mxu0 0
      %1682 = vmatpush1.bf16.msra.mxu0 %v1312
      %1683 = vmatprep.subr.bf16.mxu0 0
      %1684 = vmatpush1.bf16.msra.mxu0 %v1311
      %1685 = vmatprep.subr.bf16.mxu0 0
      %1686 = vmatpush1.bf16.msra.mxu0 %v1310
      %1687 = vmatprep.subr.bf16.mxu0 0
      %1688 = vmatpush1.bf16.msra.mxu0 %v1309
      %1689 = vmatprep.subr.bf16.mxu0 0
      %1690 = vmatpush1.bf16.msra.mxu0 %v1308
      %1691 = vmatprep.subr.bf16.mxu0 0
      %1692 = vmatpush1.bf16.msra.mxu0 %v1307
      %1693 = vmatprep.subr.bf16.mxu0 0
      %1694 = vmatpush1.bf16.msra.mxu0 %v1306
      %1695 = vmatprep.subr.bf16.mxu0 0
      %1696 = vmatpush1.bf16.msra.mxu0 %v1305
      %1697 = vmatprep.subr.bf16.mxu0 0
      %1698 = vmatpush2.bf16.msra.mxu0 %v1320
      %1699 = vmatprep.subr.bf16.mxu0 0
      %1700 = vmatpush2.bf16.msra.mxu0 %v1319
      %1701 = vmatprep.subr.bf16.mxu0 0
      %1702 = vmatpush2.bf16.msra.mxu0 %v1318
      %1703 = vmatprep.subr.bf16.mxu0 0
      %1704 = vmatpush2.bf16.msra.mxu0 %v1317
      %1705 = vmatprep.subr.bf16.mxu0 0
      %1706 = vmatpush2.bf16.msra.mxu0 %v1316
      %1707 = vmatprep.subr.bf16.mxu0 0
      %1708 = vmatpush2.bf16.msra.mxu0 %v1315
      %1709 = vmatprep.subr.bf16.mxu0 0
      %1710 = vmatpush2.bf16.msra.mxu0 %v1314
      %1711 = vmatprep.subr.bf16.mxu0 0
      %1712 = vmatpush2.bf16.msra.mxu0 %v1313
      %1713 = vmatprep.mubr.bf16.mxu0 %v695
      %1714 = vmatmul.mubr.bf16.gmra.mxu0 %v693
      %v1715 = vpop.f32.mrf.mxu0
      %v1716 = vadd.f32 %v1676, %v1715
      %v1717 = vpop.f32.mrf.mxu0
      %v1718 = vpop.f32.mrf.mxu0
      %v1719 = vpop.f32.mrf.mxu0
      %1720 = vdwg.mxu0
      %1721 = vmatprep.subr.bf16.mxu0 0
      %1722 = vmatpush1.bf16.msra.mxu0 %v1328
      %1723 = vmatprep.subr.bf16.mxu0 0
      %1724 = vmatpush1.bf16.msra.mxu0 %v1327
      %1725 = vmatprep.subr.bf16.mxu0 0
      %1726 = vmatpush1.bf16.msra.mxu0 %v1326
      %1727 = vmatprep.subr.bf16.mxu0 0
      %1728 = vmatpush1.bf16.msra.mxu0 %v1325
      %1729 = vmatprep.subr.bf16.mxu0 0
      %1730 = vmatpush1.bf16.msra.mxu0 %v1324
      %1731 = vmatprep.subr.bf16.mxu0 0
      %1732 = vmatpush1.bf16.msra.mxu0 %v1323
      %1733 = vmatprep.subr.bf16.mxu0 0
      %1734 = vmatpush1.bf16.msra.mxu0 %v1322
      %1735 = vmatprep.subr.bf16.mxu0 0
      %1736 = vmatpush1.bf16.msra.mxu0 %v1321
      %1737 = vmatprep.subr.bf16.mxu0 0
      %1738 = vmatpush2.bf16.msra.mxu0 %v1336
      %1739 = vmatprep.subr.bf16.mxu0 0
      %1740 = vmatpush2.bf16.msra.mxu0 %v1335
      %1741 = vmatprep.subr.bf16.mxu0 0
      %1742 = vmatpush2.bf16.msra.mxu0 %v1334
      %1743 = vmatprep.subr.bf16.mxu0 0
      %1744 = vmatpush2.bf16.msra.mxu0 %v1333
      %1745 = vmatprep.subr.bf16.mxu0 0
      %1746 = vmatpush2.bf16.msra.mxu0 %v1332
      %1747 = vmatprep.subr.bf16.mxu0 0
      %1748 = vmatpush2.bf16.msra.mxu0 %v1331
      %1749 = vmatprep.subr.bf16.mxu0 0
      %1750 = vmatpush2.bf16.msra.mxu0 %v1330
      %1751 = vmatprep.subr.bf16.mxu0 0
      %1752 = vmatpush2.bf16.msra.mxu0 %v1329
      %1753 = vmatprep.mubr.bf16.mxu0 %v692
      %1754 = vmatmul.mubr.bf16.gmra.mxu0 %v678
      %v1755 = vpop.f32.mrf.mxu0
      %v1756 = vadd.f32 %v1716, %v1755
      %v1757 = vpop.f32.mrf.mxu0
      %v1758 = vpop.f32.mrf.mxu0
      %v1759 = vpop.f32.mrf.mxu0
      %1760 = vdwg.mxu0
      %1761 = vmatprep.subr.bf16.mxu0 0
      %1762 = vmatpush1.bf16.msra.mxu0 %v1344
      %1763 = vmatprep.subr.bf16.mxu0 0
      %1764 = vmatpush1.bf16.msra.mxu0 %v1343
      %1765 = vmatprep.subr.bf16.mxu0 0
      %1766 = vmatpush1.bf16.msra.mxu0 %v1342
      %1767 = vmatprep.subr.bf16.mxu0 0
      %1768 = vmatpush1.bf16.msra.mxu0 %v1341
      %1769 = vmatprep.subr.bf16.mxu0 0
      %1770 = vmatpush1.bf16.msra.mxu0 %v1340
      %1771 = vmatprep.subr.bf16.mxu0 0
      %1772 = vmatpush1.bf16.msra.mxu0 %v1339
      %1773 = vmatprep.subr.bf16.mxu0 0
      %1774 = vmatpush1.bf16.msra.mxu0 %v1338
      %1775 = vmatprep.subr.bf16.mxu0 0
      %1776 = vmatpush1.bf16.msra.mxu0 %v1337
      %1777 = vmatprep.subr.bf16.mxu0 0
      %1778 = vmatpush2.bf16.msra.mxu0 %v1352
      %1779 = vmatprep.subr.bf16.mxu0 0
      %1780 = vmatpush2.bf16.msra.mxu0 %v1351
      %1781 = vmatprep.subr.bf16.mxu0 0
      %1782 = vmatpush2.bf16.msra.mxu0 %v1350
      %1783 = vmatprep.subr.bf16.mxu0 0
      %1784 = vmatpush2.bf16.msra.mxu0 %v1349
      %1785 = vmatprep.subr.bf16.mxu0 0
      %1786 = vmatpush2.bf16.msra.mxu0 %v1348
      %1787 = vmatprep.subr.bf16.mxu0 0
      %1788 = vmatpush2.bf16.msra.mxu0 %v1347
      %1789 = vmatprep.subr.bf16.mxu0 0
      %1790 = vmatpush2.bf16.msra.mxu0 %v1346
      %1791 = vmatprep.subr.bf16.mxu0 0
      %1792 = vmatpush2.bf16.msra.mxu0 %v1345
      %1793 = vmatprep.mubr.bf16.mxu0 %v696
      %1794 = vmatmul.mubr.bf16.gmra.mxu0 %v694
      %v1795 = vpop.f32.mrf.mxu0
      %v1796 = vadd.f32 %v1756, %v1795
      %v1797 = vpop.f32.mrf.mxu0
      %v1798 = vpop.f32.mrf.mxu0
      %v1799 = vpop.f32.mrf.mxu0
      %1800 = vdwg.mxu0
      %v1801 = vadd.f32 %v338, %v1796
      %1802 = vst [vmem:[#allocation2] sm:$0x3] %v1801
      // Predicated region
      $region45: #{age_gender_forward.5} parent=39 // pred_check
        %p1803 = pneg %p333
      $region46: #{age_gender_forward.5} parent=39 // pred_check_branch
        %1805 = sbr.rel (%p1803) target = $region48
      $region47: #{age_gender_forward.5} parent=39 // pred_region
        %v1806 = vld [vmem:[#allocation2] sm:$0x3]
        %v1807 = vld [vmem:[%s319] sm:$0x1]
        %v1809 = vlaneseq
        %v1810 = vshrl.u32 %v1809, 7
        %v1811 = vsub.s32 0, %v1810
        %v1812 = vrot.slane %v1807, %v1811
        %v1814 = vadd.f32 %v1806, %v1812
        %v1815 = vpack.c.bf16 %v1814, %v1814
        %v1816 = vld [vmem:[%s324] sm:$0xf]
        %v1817 = vld [vmem:[%s324 + $0x4] sm:$0xf]
        %v1818 = vld [vmem:[%s324 + $0x8] sm:$0xf]
        %v1819 = vld [vmem:[%s324 + $0xc] sm:$0xf]
        %v1820 = vld [vmem:[%s324 + $0x10] sm:$0xf]
        %v1821 = vld [vmem:[%s324 + $0x14] sm:$0xf]
        %v1822 = vld [vmem:[%s324 + $0x18] sm:$0xf]
        %v1823 = vld [vmem:[%s324 + $0x1c] sm:$0xf]
        %v1824 = vld [vmem:[%s324 + $0x20] sm:$0xf]
        %v1825 = vld [vmem:[%s324 + $0x24] sm:$0xf]
        %v1826 = vld [vmem:[%s324 + $0x28] sm:$0xf]
        %v1827 = vld [vmem:[%s324 + $0x2c] sm:$0xf]
        %v1828 = vld [vmem:[%s324 + $0x30] sm:$0xf]
        %v1829 = vld [vmem:[%s324 + $0x34] sm:$0xf]
        %v1830 = vld [vmem:[%s324 + $0x38] sm:$0xf]
        %v1831 = vld [vmem:[%s324 + $0x3c] sm:$0xf]
        %v1832 = vld [vmem:[%s327] sm:$0x1]
        %v1834 = vlaneseq
        %v1835 = vshrl.u32 %v1834, 7
        %v1836 = vsub.s32 0, %v1835
        %v1837 = vrot.slane %v1832, %v1836
        %v1855 = vunpack.c.l.b16 %v1816
        %v1856 = vunpack.c.l.b16 %v1817
        %v1857 = vunpack.c.l.b16 %v1818
        %v1858 = vunpack.c.l.b16 %v1819
        %v1859 = vunpack.c.l.b16 %v1820
        %v1860 = vunpack.c.l.b16 %v1821
        %v1861 = vunpack.c.l.b16 %v1822
        %v1862 = vunpack.c.l.b16 %v1823
        %v1863 = vunpack.c.l.b16 %v1824
        %v1864 = vunpack.c.l.b16 %v1825
        %v1865 = vunpack.c.l.b16 %v1826
        %v1866 = vunpack.c.l.b16 %v1827
        %v1867 = vunpack.c.l.b16 %v1828
        %v1868 = vunpack.c.l.b16 %v1829
        %v1869 = vunpack.c.l.b16 %v1830
        %v1870 = vunpack.c.l.b16 %v1831
        %v1871 = vpack.c.b16 %v1856, %v1855
        %v1872 = vpack.c.b16 %v1858, %v1857
        %v1873 = vpack.c.b16 %v1860, %v1859
        %v1874 = vpack.c.b16 %v1862, %v1861
        %v1875 = vpack.c.b16 %v1864, %v1863
        %v1876 = vpack.c.b16 %v1866, %v1865
        %v1877 = vpack.c.b16 %v1868, %v1867
        %v1878 = vpack.c.b16 %v1870, %v1869
        %1887 = vmatprep.subr.bf16.mxu0 0
        %1888 = vmatpush1.bf16.msra.mxu0 %v1878
        %1889 = vmatprep.subr.bf16.mxu0 0
        %1890 = vmatpush1.bf16.msra.mxu0 %v1877
        %1891 = vmatprep.subr.bf16.mxu0 0
        %1892 = vmatpush1.bf16.msra.mxu0 %v1876
        %1893 = vmatprep.subr.bf16.mxu0 0
        %1894 = vmatpush1.bf16.msra.mxu0 %v1875
        %1895 = vmatprep.subr.bf16.mxu0 0
        %1896 = vmatpush1.bf16.msra.mxu0 %v1874
        %1897 = vmatprep.subr.bf16.mxu0 0
        %1898 = vmatpush1.bf16.msra.mxu0 %v1873
        %1899 = vmatprep.subr.bf16.mxu0 0
        %1900 = vmatpush1.bf16.msra.mxu0 %v1872
        %1901 = vmatprep.subr.bf16.mxu0 0
        %1902 = vmatpush1.bf16.msra.mxu0 %v1871
        %1903 = vmatprep.subr.bf16.mxu0 0
        %1904 = vmatpush2.bf16.msra.mxu0 0
        %1905 = vmatprep.subr.bf16.mxu0 0
        %1906 = vmatpush2.bf16.msra.mxu0 0
        %1907 = vmatprep.subr.bf16.mxu0 0
        %1908 = vmatpush2.bf16.msra.mxu0 0
        %1909 = vmatprep.subr.bf16.mxu0 0
        %1910 = vmatpush2.bf16.msra.mxu0 0
        %1911 = vmatprep.subr.bf16.mxu0 0
        %1912 = vmatpush2.bf16.msra.mxu0 0
        %1913 = vmatprep.subr.bf16.mxu0 0
        %1914 = vmatpush2.bf16.msra.mxu0 0
        %1915 = vmatprep.subr.bf16.mxu0 0
        %1916 = vmatpush2.bf16.msra.mxu0 0
        %1917 = vmatprep.subr.bf16.mxu0 0
        %1918 = vmatpush2.bf16.msra.mxu0 0
        %1919 = vmatprep.mubr.bf16.mxu0 0
        %1920 = vmatmul.mubr.bf16.gmra.mxu0 %v1815
        %v1921 = vpop.f32.mrf.mxu0
        %v1922 = vadd.f32 %v1837, %v1921
        %v1923 = vpop.f32.mrf.mxu0
        %v1924 = vpop.f32.mrf.mxu0
        %v1925 = vpop.f32.mrf.mxu0
        %1926 = vdwg.mxu0
        %1927 = vst [vmem:[%s331] sm:$0x3] %v1922
      $region48: #{age_gender_forward.5} parent=39 // pred_fallthru
        _
      %p1928 = scmp.lt.s32.totalorder %s20, 1
      %s1929 = scalar_select %p1928, %s20, 1
      %s1930 = smul.addr %s1929, 2
      %s1931 = scalar_lea.vmem %s5, %s1930
      // Predicated region
      $region49: #{age_gender_forward.5} parent=39 // pred_check
        %p1932 = pneg %p180
      $region50: #{age_gender_forward.5} parent=39 // pred_check_branch
        %1934 = sbr.rel (%p1932) target = $region52
      $region51: #{age_gender_forward.5} parent=39 // pred_region
        _
      $region52: #{age_gender_forward.5} parent=39 // pred_fallthru
        _
    $region40: #{age_gender_forward.5} parent=5 // pred_fallthru
      _
    %p1935 = scmp.le.s32.totalorder 2, %s11
    // Predicated region
    $region53: #{age_gender_forward.5} parent=5 // pred_check
      %p1936 = pneg %p1935
    $region54: #{age_gender_forward.5} parent=5 // pred_check_branch
      %1938 = sbr.rel (%p1936) target = $region56
    $region55: #{age_gender_forward.5} parent=5 // pred_region
      %s1939 = ssub.s32 %s11, 2
      // Predicated region
      $region57: #{age_gender_forward.5} parent=55 // pred_check
        %p1940 = pneg %p186
      $region58: #{age_gender_forward.5} parent=55 // pred_check_branch
        %1942 = sbr.rel (%p1940) target = $region60
      $region59: #{age_gender_forward.5} parent=55 // pred_region
        %p1943 = scmp.lt.s32.totalorder %s22, 1
        %s1944 = scalar_select %p1943, %s22, 1
        %s1945 = smul.addr %s1944, 2
        %s1946 = scalar_lea.vmem %s5, %s1945
      $region60: #{age_gender_forward.5} parent=55 // pred_fallthru
        _
    $region56: #{age_gender_forward.5} parent=5 // pred_fallthru
      _
  $region6: #{age_gender_forward.5} parent=0 // loop_footer
    %s15 = sadd.s32 1, %s11
  $region7: #{age_gender_forward.5} parent=0 // loop_footer_branch
    %10 = sbr.rel target = $region3
  $region8: #{age_gender_forward.5} parent=0 // loop_exit
    _

</llo_original>
